<compile_context>
chip_gen: v6e
topology: v6e:2x2x1
jax: 0.10.0
libtpu: 0.0.40
codegen_flags: <defaults>
</compile_context>

<pallas_src>
import jax
import jax.numpy as jnp
from jax import lax
from jax.experimental import pallas as pl
from jax.experimental.pallas import tpu as pltpu
import numpy as np

LANES = 128


# ---------------------------------------------------------------------------
# Pallas kernels
# ---------------------------------------------------------------------------
def _conv_relu_pool_kernel(x_ref, w_ref, b_ref, o_ref):
    """Fused conv-as-matmul + bias + ReLU + 2x2 average pool.

    x_ref: (4, TQ, K) bf16  -- 4 pool phases (ry,rx) of the im2col patches
    w_ref: (K, 128) bf16    -- zero-padded conv weight, rows ordered (dy,dx,ci)
    b_ref: (1, 128) f32
    o_ref: (TQ, 128) f32    -- pooled, relu'd conv output (one row per pooled
                               spatial position)
    """
    b = b_ref[...]
    acc = jnp.maximum(
        jnp.dot(x_ref[0], w_ref[...], preferred_element_type=jnp.float32) + b,
        0.0)
    for ph in range(1, 4):                      # static 4-phase unroll
        acc = acc + jnp.maximum(
            jnp.dot(x_ref[ph], w_ref[...],
                    preferred_element_type=jnp.float32) + b, 0.0)
    o_ref[...] = 0.25 * acc


def _fc_fused_kernel(x_ref, w1_ref, b1_ref, w2_ref, b2_ref, w3_ref, b3_ref,
                     o_ref):
    """Fused Linear(400->64)+ReLU -> Linear(64->32)+ReLU -> Linear(32->10).

    All weights are bf16 and zero-padded to 128 output lanes (fc1 input padded
    to 512); intermediates stay in vregs/VMEM (no HBM round trips).
    """
    h = jnp.dot(x_ref[...], w1_ref[...], preferred_element_type=jnp.float32)
    h = jnp.maximum(h + b1_ref[...], 0.0)
    h = jnp.dot(h.astype(jnp.bfloat16), w2_ref[...],
                preferred_element_type=jnp.float32)
    h = jnp.maximum(h + b2_ref[...], 0.0)
    h = jnp.dot(h.astype(jnp.bfloat16), w3_ref[...],
                preferred_element_type=jnp.float32)
    o_ref[...] = h + b3_ref[...]


# ---------------------------------------------------------------------------
# Pallas wrappers
# ---------------------------------------------------------------------------
def _conv_relu_pool(patches_ph, w_pad, b_pad, tq):
    """Fused conv+ReLU+AvgPool2d(2) over batch-folded pooled rows.

    patches_ph: (4, Mp, K) bf16, Mp % tq == 0, tq % 8 == 0, K % 128 == 0.
    Returns (Mp, 128) f32.
    """
    _, mp, k = patches_ph.shape
    co = w_pad.shape[1]
    assert co == LANES and k % LANES == 0 and mp % tq == 0 and tq % 8 == 0
    return pl.pallas_call(
        _conv_relu_pool_kernel,
        out_shape=jax.ShapeDtypeStruct((mp, co), jnp.float32),
        grid=(mp // tq,),
        in_specs=[
            pl.BlockSpec((4, tq, k), lambda i: (0, i, 0)),
            pl.BlockSpec((k, co), lambda i: (0, 0)),
            pl.BlockSpec((1, co), lambda i: (0, 0)),
        ],
        out_specs=pl.BlockSpec((tq, co), lambda i: (i, 0)),
        compiler_params=pltpu.CompilerParams(
            dimension_semantics=("parallel",)),
    )(patches_ph, w_pad, b_pad)


def _fc_fused(flat, pp, tm):
    """Fused FC tail. flat: (M, 512) bf16 with M % tm == 0, tm % 8 == 0."""
    m, k = flat.shape
    assert m % tm == 0 and tm % 8 == 0 and k % LANES == 0
    const = lambda i: (0, 0)
    return pl.pallas_call(
        _fc_fused_kernel,
        out_shape=jax.ShapeDtypeStruct((m, LANES), jnp.float32),
        grid=(m // tm,),
        in_specs=[
            pl.BlockSpec((tm, k), lambda i: (i, 0)),
            pl.BlockSpec((k, LANES), const),
            pl.BlockSpec((1, LANES), const),
            pl.BlockSpec((LANES, LANES), const),
            pl.BlockSpec((1, LANES), const),
            pl.BlockSpec((LANES, LANES), const),
            pl.BlockSpec((1, LANES), const),
        ],
        out_specs=pl.BlockSpec((tm, LANES), lambda i: (i, 0)),
        compiler_params=pltpu.CompilerParams(
            dimension_semantics=("parallel",)),
    )(flat, pp["fc1_w"], pp["fc1_b"], pp["fc2_w"], pp["fc2_b"],
      pp["fc3_w"], pp["fc3_b"])


# ---------------------------------------------------------------------------
# Glue helpers (small XLA ops)
# ---------------------------------------------------------------------------
def _round_up(v, m):
    return (v + m - 1) // m * m


def _pad_last(x, target):
    return jnp.pad(x, [(0, 0)] * (x.ndim - 1) + [(0, target - x.shape[-1])])


def _pick_tiles(m_real, max_tile):
    """(m_padded, tile): tile % 8 == 0, m_padded % tile == 0, grid >= 2 steps."""
    max_tile = max(8, (max_tile // 8) * 8)
    if m_real <= 2 * max_tile:
        m_pad = _round_up(max(m_real, 16), 16)
        return m_pad, m_pad // 2
    m_pad = _round_up(m_real, 2 * max_tile)       # even step count for v7x
    return m_pad, max_tile


def _im2col_pool_phases(x, kh, kw):
    """x: (N,H,W,C) -> (4, N*Hp*Wp, kh*kw*C), pool-phase-major patch rows.

    'valid' conv; Ho=H-kh+1 must be even. Row (ph, n*Hp*Wp + py*Wp + px) holds
    the patch feeding conv output (2*py+ry, 2*px+rx) with ph = 2*ry + rx;
    feature order is (dy, dx, c).
    """
    n, h, w, c = x.shape
    ho, wo = h - kh + 1, w - kw + 1
    hp, wp = ho // 2, wo // 2
    cols = [x[:, dy:dy + ho, dx:dx + wo, :]
            for dy in range(kh) for dx in range(kw)]
    p = jnp.stack(cols, axis=3)                      # (N, Ho, Wo, kh*kw, C)
    p = p.reshape(n, hp, 2, wp, 2, kh * kw * c)      # split pool phases
    p = p.transpose(2, 4, 0, 1, 3, 5)                # (ry, rx, N, Hp, Wp, K)
    return p.reshape(4, n * hp * wp, kh * kw * c), hp, wp


# ---------------------------------------------------------------------------
# One-time parameter prep: bf16 weights, lane-dense (128-wide) layouts
# ---------------------------------------------------------------------------
def prepare_params(p):
    f32, bf16 = jnp.float32, jnp.bfloat16

    def padded(a, rows, cols, dtype):
        a = a.astype(f32)
        a = jnp.pad(a, ((0, rows - a.shape[0]), (0, cols - a.shape[1])))
        return a.astype(dtype)

    # conv weights: (co, ci, kh, kw) -> rows (dy, dx, ci), cols co
    w1 = p["w1"].transpose(2, 3, 1, 0).reshape(25, 6)      # (25, 6)
    w2 = p["w2"].transpose(2, 3, 1, 0).reshape(150, 16)    # (150, 16)
    # fc1: PyTorch flatten order is (c, h, w); our compact flat is (h, w, c).
    fc1 = p["fc1_w"].reshape(16, 5, 5, 64).transpose(1, 2, 0, 3).reshape(400, 64)

    return {
        "w1": padded(w1, 128, 128, bf16),
        "b1": padded(p["b1"].reshape(1, 6), 1, 128, f32),
        "w2": padded(w2, 256, 128, bf16),
        "b2": padded(p["b2"].reshape(1, 16), 1, 128, f32),
        "fc1_w": padded(fc1, 512, 128, bf16),
        "fc1_b": padded(p["fc1_b"].reshape(1, 64), 1, 128, f32),
        "fc2_w": padded(p["fc2_w"], 128, 128, bf16),
        "fc2_b": padded(p["fc2_b"].reshape(1, 32), 1, 128, f32),
        "fc3_w": padded(p["fc3_w"], 128, 128, bf16),
        "fc3_b": padded(p["fc3_b"].reshape(1, 10), 1, 128, f32),
    }


# ---------------------------------------------------------------------------
# LeNet forward (Pallas): 3 pallas_calls total
# ---------------------------------------------------------------------------
def lenet_pallas(x, pp):
    n = x.shape[0]
    x = x.astype(jnp.float32)

    # ---- Conv2d(1,6,k=5,pad=2) + ReLU + AvgPool2d(2), fused -----------------
    xp = jnp.pad(x[:, 0], ((0, 0), (2, 2), (2, 2)))[..., None]    # (N,32,32,1)
    ph1, hp1, wp1 = _im2col_pool_phases(xp, 5, 5)                 # (4, N*196, 25)
    ph1 = _pad_last(ph1, 128)                                     # K -> 128
    m1 = n * hp1 * wp1
    mp1, tq1 = _pick_tiles(m1, 512)
    ph1 = jnp.pad(ph1, ((0, 0), (0, mp1 - m1), (0, 0))).astype(jnp.bfloat16)
    p1 = _conv_relu_pool(ph1, pp["w1"], pp["b1"], tq1)            # (mp1, 128) f32
    p1 = p1[:m1].reshape(n, hp1, wp1, 128)                        # (N,14,14,128)

    # ---- Conv2d(6,16,k=5) + ReLU + AvgPool2d(2), fused ----------------------
    # TODO(synk): build these patches in-kernel (pl.ds over a VMEM image tile)
    #             to remove the lane-slice relayout + 25x duplication in HBM.
    ph2, hp2, wp2 = _im2col_pool_phases(p1[..., :6], 5, 5)        # (4, N*25, 150)
    ph2 = _pad_last(ph2, 256)                                     # K -> 256
    m2 = n * hp2 * wp2
    mp2, tq2 = _pick_tiles(m2, 512)
    ph2 = jnp.pad(ph2, ((0, 0), (0, mp2 - m2), (0, 0))).astype(jnp.bfloat16)
    p2 = _conv_relu_pool(ph2, pp["w2"], pp["b2"], tq2)            # (mp2, 128) f32
    p2 = p2[:m2].reshape(n, hp2, wp2, 128)                        # (N,5,5,128)

    # ---- Flatten (compact 400 real features, pad K to 512) + fused FC tail --
    flat = p2[..., :16].reshape(n, 16 * hp2 * wp2)                # (N, 400)
    flat = _pad_last(flat, 512)
    m_fc, tm_fc = _pick_tiles(n, 512)
    flat = jnp.pad(flat, ((0, m_fc - n), (0, 0))).astype(jnp.bfloat16)
    out = _fc_fused(flat, pp, tm_fc)                              # (m_fc, 128)
    return out[:n, :10]


# ---------------------------------------------------------------------------
# Pure-JAX reference (PyTorch semantics, for correctness checking)
# ---------------------------------------------------------------------------
def lenet_reference(x, params):
    hi = lax.Precision.HIGHEST
    a = lax.conv_general_dilated(
        x, params["w1"], (1, 1), ((2, 2), (2, 2)),
        dimension_numbers=("NCHW", "OIHW", "NCHW"), precision=hi)
    a = jnp.maximum(a + params["b1"][None, :, None, None], 0.0)
    N, C, H, W = a.shape
    a = a.reshape(N, C, H // 2, 2, W // 2, 2).mean(axis=(3, 5))

    a = lax.conv_general_dilated(
        a, params["w2"], (1, 1), ((0, 0), (0, 0)),
        dimension_numbers=("NCHW", "OIHW", "NCHW"), precision=hi)
    a = jnp.maximum(a + params["b2"][None, :, None, None], 0.0)
    N, C, H, W = a.shape
    a = a.reshape(N, C, H // 2, 2, W // 2, 2).mean(axis=(3, 5))

    a = a.reshape(N, -1)
    a = jnp.maximum(jnp.dot(a, params["fc1_w"], precision=hi) + params["fc1_b"], 0.0)
    a = jnp.maximum(jnp.dot(a, params["fc2_w"], precision=hi) + params["fc2_b"], 0.0)
    return jnp.dot(a, params["fc3_w"], precision=hi) + params["fc3_b"]


# ---------------------------------------------------------------------------
# Main
# ---------------------------------------------------------------------------
if __name__ == "__main__":
    key = jax.random.PRNGKey(0)
    ks = jax.random.split(key, 11)

    def init(k, shape, scale=0.1):
        return scale * jax.random.normal(k, shape, jnp.float32)

    params = {
        "w1": init(ks[0], (6, 1, 5, 5)),
        "b1": init(ks[1], (6,)),
        "w2": init(ks[2], (16, 6, 5, 5)),
        "b2": init(ks[3], (16,)),
        "fc1_w": init(ks[4], (400, 64)),
        "fc1_b": init(ks[5], (64,)),
        "fc2_w": init(ks[6], (64, 32)),
        "fc2_b": init(ks[7], (32,)),
        "fc3_w": init(ks[8], (32, 10)),
        "fc3_b": init(ks[9], (10,)),
    }

    # LeNet's Linear(16*5*5, ...) requires 28x28 spatial input (like MNIST).
    x = jax.random.normal(ks[10], (2, 1, 28, 28), jnp.float32)

    prepped = prepare_params(params)          # one-time weight layout/padding
    fwd = jax.jit(lenet_pallas)

    out = jax.block_until_ready(fwd(x, prepped))
    assert out.shape == (2, 10)

    ref = jax.block_until_ready(lenet_reference(x, params))
    # Tolerance is looser than the previous rev because the Pallas matmuls now
    # run as single-pass bf16 on the MXU (per perf review) vs the f32 HIGHEST
    # reference; measured error is ~1e-3, well inside 2e-2.
    np.testing.assert_allclose(np.asarray(out), np.asarray(ref),
                               rtol=2e-2, atol=2e-2)

    print("KERNEL_OK")
</pallas_src>

<mosaic_0001>
module attributes {stable_mosaic.version = 11 : i64} {
  func.func @_conv_relu_pool_kernel(%arg0: i32, %arg1: memref<4x200x128xbf16, #tpu.memory_space<vmem>>, %arg2: memref<128x128xbf16, #tpu.memory_space<vmem>>, %arg3: memref<1x128xf32, #tpu.memory_space<vmem>>, %arg4: memref<200x128xf32, #tpu.memory_space<vmem>>) attributes {dimension_semantics = [#tpu.dimension_semantics<parallel>], iteration_bounds = array<i64: 2>, scalar_prefetch = 0 : i64, scratch_operands = 0 : i64, tpu.core_type = #tpu.core_type<tc>, window_params = [{transform_indices = @transform_0, window_bounds = array<i64: 4, 200, 128>}, {pipeline_mode = #tpu.pipeline_mode<synchronous>, transform_indices = @transform_1, window_bounds = array<i64: 128, 128>}, {pipeline_mode = #tpu.pipeline_mode<synchronous>, transform_indices = @transform_2, window_bounds = array<i64: 1, 128>}, {transform_indices = @transform_3, window_bounds = array<i64: 200, 128>}]} {
    %c0 = arith.constant 0 : index
    %c0_0 = arith.constant 0 : index
    %0 = vector.load %arg3[%c0, %c0_0] : memref<1x128xf32, #tpu.memory_space<vmem>>, vector<1x128xf32>
    %c0_1 = arith.constant 0 : index
    %c0_2 = arith.constant 0 : index
    %c0_3 = arith.constant 0 : index
    %1 = vector.load %arg1[%c0_1, %c0_2, %c0_3] : memref<4x200x128xbf16, #tpu.memory_space<vmem>>, vector<1x200x128xbf16>
    %2 = vector.shape_cast %1 : vector<1x200x128xbf16> to vector<200x128xbf16>
    %c0_4 = arith.constant 0 : index
    %c0_5 = arith.constant 0 : index
    %3 = vector.load %arg2[%c0_4, %c0_5] : memref<128x128xbf16, #tpu.memory_space<vmem>>, vector<128x128xbf16>
    %cst = arith.constant dense<0.000000e+00> : vector<200x128xf32>
    %4 = tpu.matmul %2, %3, %cst {dimension_numbers = #tpu.dot_dimension_numbers<[1], [0], [0], [1], [0, 0, 1, 1], [], []>} : vector<200x128xbf16>, vector<128x128xbf16>, vector<200x128xf32> -> vector<200x128xf32>
    %5 = vector.broadcast %0 : vector<1x128xf32> to vector<200x128xf32>
    %6 = arith.addf %4, %5 : vector<200x128xf32>
    %cst_6 = arith.constant 0.000000e+00 : f32
    %7 = vector.broadcast %cst_6 : f32 to vector<200x128xf32>
    %8 = arith.maximumf %6, %7 : vector<200x128xf32>
    %c1 = arith.constant 1 : index
    %c0_7 = arith.constant 0 : index
    %c0_8 = arith.constant 0 : index
    %9 = vector.load %arg1[%c1, %c0_7, %c0_8] : memref<4x200x128xbf16, #tpu.memory_space<vmem>>, vector<1x200x128xbf16>
    %10 = vector.shape_cast %9 : vector<1x200x128xbf16> to vector<200x128xbf16>
    %c0_9 = arith.constant 0 : index
    %c0_10 = arith.constant 0 : index
    %11 = vector.load %arg2[%c0_9, %c0_10] : memref<128x128xbf16, #tpu.memory_space<vmem>>, vector<128x128xbf16>
    %cst_11 = arith.constant dense<0.000000e+00> : vector<200x128xf32>
    %12 = tpu.matmul %10, %11, %cst_11 {dimension_numbers = #tpu.dot_dimension_numbers<[1], [0], [0], [1], [0, 0, 1, 1], [], []>} : vector<200x128xbf16>, vector<128x128xbf16>, vector<200x128xf32> -> vector<200x128xf32>
    %13 = vector.broadcast %0 : vector<1x128xf32> to vector<200x128xf32>
    %14 = arith.addf %12, %13 : vector<200x128xf32>
    %cst_12 = arith.constant 0.000000e+00 : f32
    %15 = vector.broadcast %cst_12 : f32 to vector<200x128xf32>
    %16 = arith.maximumf %14, %15 : vector<200x128xf32>
    %17 = arith.addf %8, %16 : vector<200x128xf32>
    %c2 = arith.constant 2 : index
    %c0_13 = arith.constant 0 : index
    %c0_14 = arith.constant 0 : index
    %18 = vector.load %arg1[%c2, %c0_13, %c0_14] : memref<4x200x128xbf16, #tpu.memory_space<vmem>>, vector<1x200x128xbf16>
    %19 = vector.shape_cast %18 : vector<1x200x128xbf16> to vector<200x128xbf16>
    %c0_15 = arith.constant 0 : index
    %c0_16 = arith.constant 0 : index
    %20 = vector.load %arg2[%c0_15, %c0_16] : memref<128x128xbf16, #tpu.memory_space<vmem>>, vector<128x128xbf16>
    %cst_17 = arith.constant dense<0.000000e+00> : vector<200x128xf32>
    %21 = tpu.matmul %19, %20, %cst_17 {dimension_numbers = #tpu.dot_dimension_numbers<[1], [0], [0], [1], [0, 0, 1, 1], [], []>} : vector<200x128xbf16>, vector<128x128xbf16>, vector<200x128xf32> -> vector<200x128xf32>
    %22 = vector.broadcast %0 : vector<1x128xf32> to vector<200x128xf32>
    %23 = arith.addf %21, %22 : vector<200x128xf32>
    %cst_18 = arith.constant 0.000000e+00 : f32
    %24 = vector.broadcast %cst_18 : f32 to vector<200x128xf32>
    %25 = arith.maximumf %23, %24 : vector<200x128xf32>
    %26 = arith.addf %17, %25 : vector<200x128xf32>
    %c3 = arith.constant 3 : index
    %c0_19 = arith.constant 0 : index
    %c0_20 = arith.constant 0 : index
    %27 = vector.load %arg1[%c3, %c0_19, %c0_20] : memref<4x200x128xbf16, #tpu.memory_space<vmem>>, vector<1x200x128xbf16>
    %28 = vector.shape_cast %27 : vector<1x200x128xbf16> to vector<200x128xbf16>
    %c0_21 = arith.constant 0 : index
    %c0_22 = arith.constant 0 : index
    %29 = vector.load %arg2[%c0_21, %c0_22] : memref<128x128xbf16, #tpu.memory_space<vmem>>, vector<128x128xbf16>
    %cst_23 = arith.constant dense<0.000000e+00> : vector<200x128xf32>
    %30 = tpu.matmul %28, %29, %cst_23 {dimension_numbers = #tpu.dot_dimension_numbers<[1], [0], [0], [1], [0, 0, 1, 1], [], []>} : vector<200x128xbf16>, vector<128x128xbf16>, vector<200x128xf32> -> vector<200x128xf32>
    %31 = vector.broadcast %0 : vector<1x128xf32> to vector<200x128xf32>
    %32 = arith.addf %30, %31 : vector<200x128xf32>
    %cst_24 = arith.constant 0.000000e+00 : f32
    %33 = vector.broadcast %cst_24 : f32 to vector<200x128xf32>
    %34 = arith.maximumf %32, %33 : vector<200x128xf32>
    %35 = arith.addf %26, %34 : vector<200x128xf32>
    %cst_25 = arith.constant 2.500000e-01 : f32
    %36 = vector.broadcast %cst_25 : f32 to vector<200x128xf32>
    %37 = arith.mulf %36, %35 : vector<200x128xf32>
    %c0_26 = arith.constant 0 : index
    %c0_27 = arith.constant 0 : index
    %38 = vector.load %arg4[%c0_26, %c0_27] : memref<200x128xf32, #tpu.memory_space<vmem>>, vector<200x128xf32>
    tpu.vector_store %arg4[%c0_26, %c0_27], %37 {strides = array<i32>} : memref<200x128xf32, #tpu.memory_space<vmem>>, vector<200x128xf32>,
    return
  }
  func.func @transform_0(%arg0: i32) -> (i32, i32, i32) {
    %c0_i32 = arith.constant 0 : i32
    %c0_i32_0 = arith.constant 0 : i32
    %c0_i32_1 = arith.constant 0 : i32
    return %c0_i32, %arg0, %c0_i32_0 : i32, i32, i32
  }
  func.func @transform_1(%arg0: i32) -> (i32, i32) {
    %c0_i32 = arith.constant 0 : i32
    %c0_i32_0 = arith.constant 0 : i32
    %c0_i32_1 = arith.constant 0 : i32
    return %c0_i32, %c0_i32_0 : i32, i32
  }
  func.func @transform_2(%arg0: i32) -> (i32, i32) {
    %c0_i32 = arith.constant 0 : i32
    %c0_i32_0 = arith.constant 0 : i32
    %c0_i32_1 = arith.constant 0 : i32
    return %c0_i32, %c0_i32_0 : i32, i32
  }
  func.func @transform_3(%arg0: i32) -> (i32, i32) {
    %c0_i32 = arith.constant 0 : i32
    %c0_i32_0 = arith.constant 0 : i32
    return %arg0, %c0_i32 : i32, i32
  }
}

module attributes {stable_mosaic.version = 11 : i64} {
  func.func @_conv_relu_pool_kernel(%arg0: i32, %arg1: memref<4x32x256xbf16, #tpu.memory_space<vmem>>, %arg2: memref<256x128xbf16, #tpu.memory_space<vmem>>, %arg3: memref<1x128xf32, #tpu.memory_space<vmem>>, %arg4: memref<32x128xf32, #tpu.memory_space<vmem>>) attributes {dimension_semantics = [#tpu.dimension_semantics<parallel>], iteration_bounds = array<i64: 2>, scalar_prefetch = 0 : i64, scratch_operands = 0 : i64, tpu.core_type = #tpu.core_type<tc>, window_params = [{transform_indices = @transform_0, window_bounds = array<i64: 4, 32, 256>}, {pipeline_mode = #tpu.pipeline_mode<synchronous>, transform_indices = @transform_1, window_bounds = array<i64: 256, 128>}, {pipeline_mode = #tpu.pipeline_mode<synchronous>, transform_indices = @transform_2, window_bounds = array<i64: 1, 128>}, {transform_indices = @transform_3, window_bounds = array<i64: 32, 128>}]} {
    %c0 = arith.constant 0 : index
    %c0_0 = arith.constant 0 : index
    %0 = vector.load %arg3[%c0, %c0_0] : memref<1x128xf32, #tpu.memory_space<vmem>>, vector<1x128xf32>
    %c0_1 = arith.constant 0 : index
    %c0_2 = arith.constant 0 : index
    %c0_3 = arith.constant 0 : index
    %1 = vector.load %arg1[%c0_1, %c0_2, %c0_3] : memref<4x32x256xbf16, #tpu.memory_space<vmem>>, vector<1x32x256xbf16>
    %2 = vector.shape_cast %1 : vector<1x32x256xbf16> to vector<32x256xbf16>
    %c0_4 = arith.constant 0 : index
    %c0_5 = arith.constant 0 : index
    %3 = vector.load %arg2[%c0_4, %c0_5] : memref<256x128xbf16, #tpu.memory_space<vmem>>, vector<256x128xbf16>
    %cst = arith.constant dense<0.000000e+00> : vector<32x128xf32>
    %4 = tpu.matmul %2, %3, %cst {dimension_numbers = #tpu.dot_dimension_numbers<[1], [0], [0], [1], [0, 0, 1, 1], [], []>} : vector<32x256xbf16>, vector<256x128xbf16>, vector<32x128xf32> -> vector<32x128xf32>
    %5 = vector.broadcast %0 : vector<1x128xf32> to vector<32x128xf32>
    %6 = arith.addf %4, %5 : vector<32x128xf32>
    %cst_6 = arith.constant 0.000000e+00 : f32
    %7 = vector.broadcast %cst_6 : f32 to vector<32x128xf32>
    %8 = arith.maximumf %6, %7 : vector<32x128xf32>
    %c1 = arith.constant 1 : index
    %c0_7 = arith.constant 0 : index
    %c0_8 = arith.constant 0 : index
    %9 = vector.load %arg1[%c1, %c0_7, %c0_8] : memref<4x32x256xbf16, #tpu.memory_space<vmem>>, vector<1x32x256xbf16>
    %10 = vector.shape_cast %9 : vector<1x32x256xbf16> to vector<32x256xbf16>
    %c0_9 = arith.constant 0 : index
    %c0_10 = arith.constant 0 : index
    %11 = vector.load %arg2[%c0_9, %c0_10] : memref<256x128xbf16, #tpu.memory_space<vmem>>, vector<256x128xbf16>
    %cst_11 = arith.constant dense<0.000000e+00> : vector<32x128xf32>
    %12 = tpu.matmul %10, %11, %cst_11 {dimension_numbers = #tpu.dot_dimension_numbers<[1], [0], [0], [1], [0, 0, 1, 1], [], []>} : vector<32x256xbf16>, vector<256x128xbf16>, vector<32x128xf32> -> vector<32x128xf32>
    %13 = vector.broadcast %0 : vector<1x128xf32> to vector<32x128xf32>
    %14 = arith.addf %12, %13 : vector<32x128xf32>
    %cst_12 = arith.constant 0.000000e+00 : f32
    %15 = vector.broadcast %cst_12 : f32 to vector<32x128xf32>
    %16 = arith.maximumf %14, %15 : vector<32x128xf32>
    %17 = arith.addf %8, %16 : vector<32x128xf32>
    %c2 = arith.constant 2 : index
    %c0_13 = arith.constant 0 : index
    %c0_14 = arith.constant 0 : index
    %18 = vector.load %arg1[%c2, %c0_13, %c0_14] : memref<4x32x256xbf16, #tpu.memory_space<vmem>>, vector<1x32x256xbf16>
    %19 = vector.shape_cast %18 : vector<1x32x256xbf16> to vector<32x256xbf16>
    %c0_15 = arith.constant 0 : index
    %c0_16 = arith.constant 0 : index
    %20 = vector.load %arg2[%c0_15, %c0_16] : memref<256x128xbf16, #tpu.memory_space<vmem>>, vector<256x128xbf16>
    %cst_17 = arith.constant dense<0.000000e+00> : vector<32x128xf32>
    %21 = tpu.matmul %19, %20, %cst_17 {dimension_numbers = #tpu.dot_dimension_numbers<[1], [0], [0], [1], [0, 0, 1, 1], [], []>} : vector<32x256xbf16>, vector<256x128xbf16>, vector<32x128xf32> -> vector<32x128xf32>
    %22 = vector.broadcast %0 : vector<1x128xf32> to vector<32x128xf32>
    %23 = arith.addf %21, %22 : vector<32x128xf32>
    %cst_18 = arith.constant 0.000000e+00 : f32
    %24 = vector.broadcast %cst_18 : f32 to vector<32x128xf32>
    %25 = arith.maximumf %23, %24 : vector<32x128xf32>
    %26 = arith.addf %17, %25 : vector<32x128xf32>
    %c3 = arith.constant 3 : index
    %c0_19 = arith.constant 0 : index
    %c0_20 = arith.constant 0 : index
    %27 = vector.load %arg1[%c3, %c0_19, %c0_20] : memref<4x32x256xbf16, #tpu.memory_space<vmem>>, vector<1x32x256xbf16>
    %28 = vector.shape_cast %27 : vector<1x32x256xbf16> to vector<32x256xbf16>
    %c0_21 = arith.constant 0 : index
    %c0_22 = arith.constant 0 : index
    %29 = vector.load %arg2[%c0_21, %c0_22] : memref<256x128xbf16, #tpu.memory_space<vmem>>, vector<256x128xbf16>
    %cst_23 = arith.constant dense<0.000000e+00> : vector<32x128xf32>
    %30 = tpu.matmul %28, %29, %cst_23 {dimension_numbers = #tpu.dot_dimension_numbers<[1], [0], [0], [1], [0, 0, 1, 1], [], []>} : vector<32x256xbf16>, vector<256x128xbf16>, vector<32x128xf32> -> vector<32x128xf32>
    %31 = vector.broadcast %0 : vector<1x128xf32> to vector<32x128xf32>
    %32 = arith.addf %30, %31 : vector<32x128xf32>
    %cst_24 = arith.constant 0.000000e+00 : f32
    %33 = vector.broadcast %cst_24 : f32 to vector<32x128xf32>
    %34 = arith.maximumf %32, %33 : vector<32x128xf32>
    %35 = arith.addf %26, %34 : vector<32x128xf32>
    %cst_25 = arith.constant 2.500000e-01 : f32
    %36 = vector.broadcast %cst_25 : f32 to vector<32x128xf32>
    %37 = arith.mulf %36, %35 : vector<32x128xf32>
    %c0_26 = arith.constant 0 : index
    %c0_27 = arith.constant 0 : index
    %38 = vector.load %arg4[%c0_26, %c0_27] : memref<32x128xf32, #tpu.memory_space<vmem>>, vector<32x128xf32>
    tpu.vector_store %arg4[%c0_26, %c0_27], %37 {strides = array<i32>} : memref<32x128xf32, #tpu.memory_space<vmem>>, vector<32x128xf32>,
    return
  }
  func.func @transform_0(%arg0: i32) -> (i32, i32, i32) {
    %c0_i32 = arith.constant 0 : i32
    %c0_i32_0 = arith.constant 0 : i32
    %c0_i32_1 = arith.constant 0 : i32
    return %c0_i32, %arg0, %c0_i32_0 : i32, i32, i32
  }
  func.func @transform_1(%arg0: i32) -> (i32, i32) {
    %c0_i32 = arith.constant 0 : i32
    %c0_i32_0 = arith.constant 0 : i32
    %c0_i32_1 = arith.constant 0 : i32
    return %c0_i32, %c0_i32_0 : i32, i32
  }
  func.func @transform_2(%arg0: i32) -> (i32, i32) {
    %c0_i32 = arith.constant 0 : i32
    %c0_i32_0 = arith.constant 0 : i32
    %c0_i32_1 = arith.constant 0 : i32
    return %c0_i32, %c0_i32_0 : i32, i32
  }
  func.func @transform_3(%arg0: i32) -> (i32, i32) {
    %c0_i32 = arith.constant 0 : i32
    %c0_i32_0 = arith.constant 0 : i32
    return %arg0, %c0_i32 : i32, i32
  }
}

module attributes {stable_mosaic.version = 11 : i64} {
  func.func @_fc_fused_kernel(%arg0: i32, %arg1: memref<8x512xbf16, #tpu.memory_space<vmem>>, %arg2: memref<512x128xbf16, #tpu.memory_space<vmem>>, %arg3: memref<1x128xf32, #tpu.memory_space<vmem>>, %arg4: memref<128x128xbf16, #tpu.memory_space<vmem>>, %arg5: memref<1x128xf32, #tpu.memory_space<vmem>>, %arg6: memref<128x128xbf16, #tpu.memory_space<vmem>>, %arg7: memref<1x128xf32, #tpu.memory_space<vmem>>, %arg8: memref<8x128xf32, #tpu.memory_space<vmem>>) attributes {dimension_semantics = [#tpu.dimension_semantics<parallel>], iteration_bounds = array<i64: 2>, scalar_prefetch = 0 : i64, scratch_operands = 0 : i64, tpu.core_type = #tpu.core_type<tc>, window_params = [{transform_indices = @transform_0, window_bounds = array<i64: 8, 512>}, {pipeline_mode = #tpu.pipeline_mode<synchronous>, transform_indices = @transform_1, window_bounds = array<i64: 512, 128>}, {pipeline_mode = #tpu.pipeline_mode<synchronous>, transform_indices = @transform_2, window_bounds = array<i64: 1, 128>}, {pipeline_mode = #tpu.pipeline_mode<synchronous>, transform_indices = @transform_3, window_bounds = array<i64: 128, 128>}, {pipeline_mode = #tpu.pipeline_mode<synchronous>, transform_indices = @transform_4, window_bounds = array<i64: 1, 128>}, {pipeline_mode = #tpu.pipeline_mode<synchronous>, transform_indices = @transform_5, window_bounds = array<i64: 128, 128>}, {pipeline_mode = #tpu.pipeline_mode<synchronous>, transform_indices = @transform_6, window_bounds = array<i64: 1, 128>}, {transform_indices = @transform_7, window_bounds = array<i64: 8, 128>}]} {
    %c0 = arith.constant 0 : index
    %c0_0 = arith.constant 0 : index
    %0 = vector.load %arg1[%c0, %c0_0] : memref<8x512xbf16, #tpu.memory_space<vmem>>, vector<8x512xbf16>
    %c0_1 = arith.constant 0 : index
    %c0_2 = arith.constant 0 : index
    %1 = vector.load %arg2[%c0_1, %c0_2] : memref<512x128xbf16, #tpu.memory_space<vmem>>, vector<512x128xbf16>
    %cst = arith.constant dense<0.000000e+00> : vector<8x128xf32>
    %2 = tpu.matmul %0, %1, %cst {dimension_numbers = #tpu.dot_dimension_numbers<[1], [0], [0], [1], [0, 0, 1, 1], [], []>} : vector<8x512xbf16>, vector<512x128xbf16>, vector<8x128xf32> -> vector<8x128xf32>
    %c0_3 = arith.constant 0 : index
    %c0_4 = arith.constant 0 : index
    %3 = vector.load %arg3[%c0_3, %c0_4] : memref<1x128xf32, #tpu.memory_space<vmem>>, vector<1x128xf32>
    %4 = vector.broadcast %3 : vector<1x128xf32> to vector<8x128xf32>
    %5 = arith.addf %2, %4 : vector<8x128xf32>
    %cst_5 = arith.constant 0.000000e+00 : f32
    %6 = vector.broadcast %cst_5 : f32 to vector<8x128xf32>
    %7 = arith.maximumf %5, %6 : vector<8x128xf32>
    %8 = arith.truncf %7 : vector<8x128xf32> to vector<8x128xbf16>
    %c0_6 = arith.constant 0 : index
    %c0_7 = arith.constant 0 : index
    %9 = vector.load %arg4[%c0_6, %c0_7] : memref<128x128xbf16, #tpu.memory_space<vmem>>, vector<128x128xbf16>
    %cst_8 = arith.constant dense<0.000000e+00> : vector<8x128xf32>
    %10 = tpu.matmul %8, %9, %cst_8 {dimension_numbers = #tpu.dot_dimension_numbers<[1], [0], [0], [1], [0, 0, 1, 1], [], []>} : vector<8x128xbf16>, vector<128x128xbf16>, vector<8x128xf32> -> vector<8x128xf32>
    %c0_9 = arith.constant 0 : index
    %c0_10 = arith.constant 0 : index
    %11 = vector.load %arg5[%c0_9, %c0_10] : memref<1x128xf32, #tpu.memory_space<vmem>>, vector<1x128xf32>
    %12 = vector.broadcast %11 : vector<1x128xf32> to vector<8x128xf32>
    %13 = arith.addf %10, %12 : vector<8x128xf32>
    %cst_11 = arith.constant 0.000000e+00 : f32
    %14 = vector.broadcast %cst_11 : f32 to vector<8x128xf32>
    %15 = arith.maximumf %13, %14 : vector<8x128xf32>
    %16 = arith.truncf %15 : vector<8x128xf32> to vector<8x128xbf16>
    %c0_12 = arith.constant 0 : index
    %c0_13 = arith.constant 0 : index
    %17 = vector.load %arg6[%c0_12, %c0_13] : memref<128x128xbf16, #tpu.memory_space<vmem>>, vector<128x128xbf16>
    %cst_14 = arith.constant dense<0.000000e+00> : vector<8x128xf32>
    %18 = tpu.matmul %16, %17, %cst_14 {dimension_numbers = #tpu.dot_dimension_numbers<[1], [0], [0], [1], [0, 0, 1, 1], [], []>} : vector<8x128xbf16>, vector<128x128xbf16>, vector<8x128xf32> -> vector<8x128xf32>
    %c0_15 = arith.constant 0 : index
    %c0_16 = arith.constant 0 : index
    %19 = vector.load %arg7[%c0_15, %c0_16] : memref<1x128xf32, #tpu.memory_space<vmem>>, vector<1x128xf32>
    %20 = vector.broadcast %19 : vector<1x128xf32> to vector<8x128xf32>
    %21 = arith.addf %18, %20 : vector<8x128xf32>
    %c0_17 = arith.constant 0 : index
    %c0_18 = arith.constant 0 : index
    %22 = vector.load %arg8[%c0_17, %c0_18] : memref<8x128xf32, #tpu.memory_space<vmem>>, vector<8x128xf32>
    tpu.vector_store %arg8[%c0_17, %c0_18], %21 {strides = array<i32>} : memref<8x128xf32, #tpu.memory_space<vmem>>, vector<8x128xf32>,
    return
  }
  func.func @transform_0(%arg0: i32) -> (i32, i32) {
    %c0_i32 = arith.constant 0 : i32
    %c0_i32_0 = arith.constant 0 : i32
    return %arg0, %c0_i32 : i32, i32
  }
  func.func @transform_1(%arg0: i32) -> (i32, i32) {
    %c0_i32 = arith.constant 0 : i32
    %c0_i32_0 = arith.constant 0 : i32
    %c0_i32_1 = arith.constant 0 : i32
    return %c0_i32, %c0_i32_0 : i32, i32
  }
  func.func @transform_2(%arg0: i32) -> (i32, i32) {
    %c0_i32 = arith.constant 0 : i32
    %c0_i32_0 = arith.constant 0 : i32
    %c0_i32_1 = arith.constant 0 : i32
    return %c0_i32, %c0_i32_0 : i32, i32
  }
  func.func @transform_3(%arg0: i32) -> (i32, i32) {
    %c0_i32 = arith.constant 0 : i32
    %c0_i32_0 = arith.constant 0 : i32
    %c0_i32_1 = arith.constant 0 : i32
    return %c0_i32, %c0_i32_0 : i32, i32
  }
  func.func @transform_4(%arg0: i32) -> (i32, i32) {
    %c0_i32 = arith.constant 0 : i32
    %c0_i32_0 = arith.constant 0 : i32
    %c0_i32_1 = arith.constant 0 : i32
    return %c0_i32, %c0_i32_0 : i32, i32
  }
  func.func @transform_5(%arg0: i32) -> (i32, i32) {
    %c0_i32 = arith.constant 0 : i32
    %c0_i32_0 = arith.constant 0 : i32
    %c0_i32_1 = arith.constant 0 : i32
    return %c0_i32, %c0_i32_0 : i32, i32
  }
  func.func @transform_6(%arg0: i32) -> (i32, i32) {
    %c0_i32 = arith.constant 0 : i32
    %c0_i32_0 = arith.constant 0 : i32
    %c0_i32_1 = arith.constant 0 : i32
    return %c0_i32, %c0_i32_0 : i32, i32
  }
  func.func @transform_7(%arg0: i32) -> (i32, i32) {
    %c0_i32 = arith.constant 0 : i32
    %c0_i32_0 = arith.constant 0 : i32
    return %arg0, %c0_i32 : i32, i32
  }
}

</mosaic_0001>

<llo_original>
// kernel: lenet_pallas.3
$region0: #{lenet_pallas.3}
  #allocation0 [shape = 'u32[]', space=smem, size = 0x4, offset = 0x4, fixed_abs, tag = 'smem constant byte address 0x4 - core index']
  #allocation1 [shape = 'u32[144,128]{1,0:T(1,128)}', space=vmem, size = 0x12000, scoped, tag = 'internal scratch']
  %s0 = inlined_call_operand.vmem [shape: bf16[4,400,128], index: 0, kind: input, shape index: {}]
  %s1 = inlined_call_operand.vmem [shape: bf16[128,128], index: 1, kind: input, shape index: {}]
  %s2 = inlined_call_operand.vmem [shape: f32[1,128], index: 2, kind: input, shape index: {}]
  %s3 = inlined_call_operand.vmem [shape: f32[400,128], index: 3, kind: output, shape index: {}]
  %s4 = sld [smem:[#allocation0]]
  $region86: #{lenet_pallas.3} parent=0
    _
  %s6 = ssub.s32 1, %s4
  %s7 = scalar_select 0, %s6, %s4
  $region1: #{lenet_pallas.3} parent=0
    #allocation2 [shape = 'u8[409600]{0}', space=vmem, size = 0x64000, scoped, tag = 'input window, operand 0']
    loop: start=0, step=1, limit=4
    $region2: #{lenet_pallas.3} parent=1 // loop_pre_header
      _
    $region3: #{lenet_pallas.3} parent=1 // loop_header
      %s9 = sphi 0, %s13
      %p10 = scmp.ge.s32.totalorder %s9, 4
      %s19 = sphi 0, %s21
      %s22 = sphi 0, %s19
      %s23 = sphi 0, %s22
      %s39 = sphi 0, %s23
      %s43 = sphi 0, %s43
      %s45 = sphi 0, %s43
      %s46 = sphi 0, %s45
      %s60 = sphi 0, %s46
      %s64 = sphi 0, %s64
      %s66 = sphi 0, %s64
      %s67 = sphi 0, %s66
      %s81 = sphi 0, %s67
      %s87 = sphi 0, %s89
      %s90 = sphi 0, %s87
      %s91 = sphi 0, %s90
      %s107 = sphi 0, %s91
    $region4: #{lenet_pallas.3} parent=1 // loop_header_branch
      %12 = sbr.rel (%p10) target = $region8
    $region5: #{lenet_pallas.3} parent=1 // loop_body
      %s14 = ssub.s32 %s9, 1
      %s15 = ssub.s32 %s9, 2
      %s16 = sadd.s32 %s9, 1
      %s17 = ssub.s32 %s9, %s16
      %p18 = scmp.eq.s32.totalorder %s17, 0
      %s20 = sadd.s32 %s19, 1
      %s21 = scalar_select %p18, %s19, %s20
      %p24 = pneg %p18
      %p25 = scmp.eq.s32.totalorder %s9, 1
      %p26 = por %p24, %p25
      %p27 = scmp.ne.s32.totalorder %s19, %s22
      %p28 = scmp.eq.s32.totalorder %s9, 0
      %p29 = por %p27, %p28
      %p30 = scmp.ne.s32.totalorder %s19, %s22
      %p31 = scmp.eq.s32.totalorder %s14, 1
      %p32 = por %p30, %p31
      %p33 = scmp.ne.s32.totalorder %s22, %s23
      %p34 = scmp.eq.s32.totalorder %s14, 0
      %p35 = por %p33, %p34
      %p36 = scmp.ne.s32.totalorder %s22, %s23
      %p37 = scmp.eq.s32.totalorder %s15, 1
      %p38 = por %p36, %p37
      %p40 = scmp.ne.s32.totalorder %s23, %s39
      %p41 = scmp.eq.s32.totalorder %s15, 0
      %p42 = por %p40, %p41
      %s44 = sadd.s32 %s43, 1
      %p47 = scmp.eq.s32.totalorder %s9, 1
      %p48 = scmp.ne.s32.totalorder %s43, %s45
      %p49 = scmp.eq.s32.totalorder %s9, 0
      %p50 = por %p48, %p49
      %p51 = scmp.ne.s32.totalorder %s43, %s45
      %p52 = scmp.eq.s32.totalorder %s14, 1
      %p53 = por %p51, %p52
      %p54 = scmp.ne.s32.totalorder %s45, %s46
      %p55 = scmp.eq.s32.totalorder %s14, 0
      %p56 = por %p54, %p55
      %p57 = scmp.ne.s32.totalorder %s45, %s46
      %p58 = scmp.eq.s32.totalorder %s15, 1
      %p59 = por %p57, %p58
      %p61 = scmp.ne.s32.totalorder %s46, %s60
      %p62 = scmp.eq.s32.totalorder %s15, 0
      %p63 = por %p61, %p62
      %s65 = sadd.s32 %s64, 1
      %p68 = scmp.eq.s32.totalorder %s9, 1
      %p69 = scmp.ne.s32.totalorder %s64, %s66
      %p70 = scmp.eq.s32.totalorder %s9, 0
      %p71 = por %p69, %p70
      %p72 = scmp.ne.s32.totalorder %s64, %s66
      %p73 = scmp.eq.s32.totalorder %s14, 1
      %p74 = por %p72, %p73
      %p75 = scmp.ne.s32.totalorder %s66, %s67
      %p76 = scmp.eq.s32.totalorder %s14, 0
      %p77 = por %p75, %p76
      %p78 = scmp.ne.s32.totalorder %s66, %s67
      %p79 = scmp.eq.s32.totalorder %s15, 1
      %p80 = por %p78, %p79
      %p82 = scmp.ne.s32.totalorder %s67, %s81
      %p83 = scmp.eq.s32.totalorder %s15, 0
      %p84 = por %p82, %p83
      %s85 = ssub.s32 %s9, %s16
      %p86 = scmp.eq.s32.totalorder %s85, 0
      %s88 = sadd.s32 %s87, 1
      %s89 = scalar_select %p86, %s87, %s88
      %p92 = pneg %p86
      %p93 = scmp.eq.s32.totalorder %s9, 1
      %p94 = por %p92, %p93
      %p95 = scmp.ne.s32.totalorder %s87, %s90
      %p96 = scmp.eq.s32.totalorder %s9, 0
      %p97 = por %p95, %p96
      %p98 = scmp.ne.s32.totalorder %s87, %s90
      %p99 = scmp.eq.s32.totalorder %s14, 1
      %p100 = por %p98, %p99
      %p101 = scmp.ne.s32.totalorder %s90, %s91
      %p102 = scmp.eq.s32.totalorder %s14, 0
      %p103 = por %p101, %p102
      %p104 = scmp.ne.s32.totalorder %s90, %s91
      %p105 = scmp.eq.s32.totalorder %s15, 1
      %p106 = por %p104, %p105
      %p108 = scmp.ne.s32.totalorder %s91, %s107
      %p109 = scmp.eq.s32.totalorder %s15, 0
      %p110 = por %p108, %p109
      %p111 = scmp.le.s32.totalorder 1, %s9
      %p112 = scmp.lt.s32.totalorder %s9, 3
      %p113 = pnand %p111, %p112
      %p114 = pneg %p113
      // Predicated region
      $region9: #{lenet_pallas.3} parent=5 // pred_check
        _
      $region10: #{lenet_pallas.3} parent=5 // pred_check_branch
        %116 = sbr.rel (%p113) target = $region12
      $region11: #{lenet_pallas.3} parent=5 // pred_region
        %s117 = ssub.s32 %s9, 1
        // Predicated region
        $region13: #{lenet_pallas.3} parent=11 // pred_check
          %p118 = pneg %p56
        $region14: #{lenet_pallas.3} parent=11 // pred_check_branch
          %120 = sbr.rel (%p118) target = $region16
        $region15: #{lenet_pallas.3} parent=11 // pred_region
          _
        $region16: #{lenet_pallas.3} parent=11 // pred_fallthru
          _
        // Predicated region
        $region17: #{lenet_pallas.3} parent=11 // pred_check
          %p121 = pneg %p77
        $region18: #{lenet_pallas.3} parent=11 // pred_check_branch
          %123 = sbr.rel (%p121) target = $region20
        $region19: #{lenet_pallas.3} parent=11 // pred_region
          _
        $region20: #{lenet_pallas.3} parent=11 // pred_fallthru
          _
      $region12: #{lenet_pallas.3} parent=5 // pred_fallthru
        _
      %p124 = scmp.lt.s32.totalorder %s9, 2
      // Predicated region
      $region21: #{lenet_pallas.3} parent=5 // pred_check
        %p125 = pneg %p124
      $region22: #{lenet_pallas.3} parent=5 // pred_check_branch
        %127 = sbr.rel (%p125) target = $region24
      $region23: #{lenet_pallas.3} parent=5 // pred_region
        // Predicated region
        $region25: #{lenet_pallas.3} parent=23 // pred_check
          %p128 = pneg %p29
        $region26: #{lenet_pallas.3} parent=23 // pred_check_branch
          %130 = sbr.rel (%p128) target = $region28
        $region27: #{lenet_pallas.3} parent=23 // pred_region
          %s131 = sand.u32 %s19, 1
          %s132 = sand.u32 %s19, 1
          %s133 = smul.addr %s132, 400
          %s134 = scalar_lea.vmem [#allocation2], %s133
          %s135 = smul.u32 25, %s9
          %s136 = smul.addr %s135, 4
          %s137 = scalar_lea.vmem %s0, %s136
          // Predicated region
          $region29: #{lenet_pallas.3} parent=27 // pred_check
            _
          $region30: #{lenet_pallas.3} parent=27 // pred_check_branch
            %139 = sbr.rel (0) target = $region32
          $region31: #{lenet_pallas.3} parent=27 // pred_region
            // Predicated region
            $region33: #{lenet_pallas.3} parent=31 // pred_check
              _
            $region34: #{lenet_pallas.3} parent=31 // pred_check_branch
              %141 = sbr.rel target = $region36
            $region35: #{lenet_pallas.3} parent=31 // pred_region
              // Predicated region
              $region48: #{lenet_pallas.3} parent=35 // pred_check
                _
              $region49: #{lenet_pallas.3} parent=35 // pred_check_branch
                %355 = sbr.rel (0) target = $region51
              $region50: #{lenet_pallas.3} parent=35 // pred_region
                loop: start=0, step=1, limit=1
                $region52: #{lenet_pallas.3} parent=50 // loop_pre_header
                  _
                $region53: #{lenet_pallas.3} parent=50 // loop_header
                  %s357 = sphi 0, %s361
                  %p358 = scmp.ge.s32.totalorder %s357, 1
                  %s362 = sphi %s137, %s137
                  %s363 = sphi %s134, %s134
                $region54: #{lenet_pallas.3} parent=50 // loop_header_branch
                  %360 = sbr.rel (%p358) target = $region58
                $region55: #{lenet_pallas.3} parent=50 // loop_body
                  _
                $region56: #{lenet_pallas.3} parent=50 // loop_footer
                  %s361 = sadd.s32 1, %s357
                $region57: #{lenet_pallas.3} parent=50 // loop_footer_branch
                  %356 = sbr.rel target = $region53
                $region58: #{lenet_pallas.3} parent=50 // loop_exit
                  _
                %s365 = ssub.s32 16, 1
                loop: start=0, step=1, limit=1
                $region59: #{lenet_pallas.3} parent=50 // loop_pre_header
                  _
                $region60: #{lenet_pallas.3} parent=50 // loop_header
                  %s367 = sphi 0, %s371
                  %p368 = scmp.ge.s32.totalorder %s367, 1
                  %s372 = sphi %s137, %s137
                  %s373 = sphi %s134, %s134
                $region61: #{lenet_pallas.3} parent=50 // loop_header_branch
                  %370 = sbr.rel (%p368) target = $region65
                $region62: #{lenet_pallas.3} parent=50 // loop_body
                  %v374 = vld [vmem:[%s372] sm:%s365]
                  %375 = vst [vmem:[%s373] sm:%s365] %v374
                  %v376 = vld [vmem:[%s372 + $0x4] sm:%s365]
                  %377 = vst [vmem:[%s373 + $0x4] sm:%s365] %v376
                  %v378 = vld [vmem:[%s372 + $0x8] sm:%s365]
                  %379 = vst [vmem:[%s373 + $0x8] sm:%s365] %v378
                  %v380 = vld [vmem:[%s372 + $0xc] sm:%s365]
                  %381 = vst [vmem:[%s373 + $0xc] sm:%s365] %v380
                  %v382 = vld [vmem:[%s372 + $0x10] sm:%s365]
                  %383 = vst [vmem:[%s373 + $0x10] sm:%s365] %v382
                  %v384 = vld [vmem:[%s372 + $0x14] sm:%s365]
                  %385 = vst [vmem:[%s373 + $0x14] sm:%s365] %v384
                  %v386 = vld [vmem:[%s372 + $0x18] sm:%s365]
                  %387 = vst [vmem:[%s373 + $0x18] sm:%s365] %v386
                  %v388 = vld [vmem:[%s372 + $0x1c] sm:%s365]
                  %389 = vst [vmem:[%s373 + $0x1c] sm:%s365] %v388
                  %v390 = vld [vmem:[%s372 + $0x20] sm:%s365]
                  %391 = vst [vmem:[%s373 + $0x20] sm:%s365] %v390
                  %v392 = vld [vmem:[%s372 + $0x24] sm:%s365]
                  %393 = vst [vmem:[%s373 + $0x24] sm:%s365] %v392
                  %v394 = vld [vmem:[%s372 + $0x28] sm:%s365]
                  %395 = vst [vmem:[%s373 + $0x28] sm:%s365] %v394
                  %v396 = vld [vmem:[%s372 + $0x2c] sm:%s365]
                  %397 = vst [vmem:[%s373 + $0x2c] sm:%s365] %v396
                  %v398 = vld [vmem:[%s372 + $0x30] sm:%s365]
                  %399 = vst [vmem:[%s373 + $0x30] sm:%s365] %v398
                  %v400 = vld [vmem:[%s372 + $0x34] sm:%s365]
                  %401 = vst [vmem:[%s373 + $0x34] sm:%s365] %v400
                  %v402 = vld [vmem:[%s372 + $0x38] sm:%s365]
                  %403 = vst [vmem:[%s373 + $0x38] sm:%s365] %v402
                  %v404 = vld [vmem:[%s372 + $0x3c] sm:%s365]
                  %405 = vst [vmem:[%s373 + $0x3c] sm:%s365] %v404
                  %v406 = vld [vmem:[%s372 + $0x40] sm:%s365]
                  %407 = vst [vmem:[%s373 + $0x40] sm:%s365] %v406
                  %v408 = vld [vmem:[%s372 + $0x44] sm:%s365]
                  %409 = vst [vmem:[%s373 + $0x44] sm:%s365] %v408
                  %v410 = vld [vmem:[%s372 + $0x48] sm:%s365]
                  %411 = vst [vmem:[%s373 + $0x48] sm:%s365] %v410
                  %v412 = vld [vmem:[%s372 + $0x4c] sm:%s365]
                  %413 = vst [vmem:[%s373 + $0x4c] sm:%s365] %v412
                  %v414 = vld [vmem:[%s372 + $0x50] sm:%s365]
                  %415 = vst [vmem:[%s373 + $0x50] sm:%s365] %v414
                  %v416 = vld [vmem:[%s372 + $0x54] sm:%s365]
                  %417 = vst [vmem:[%s373 + $0x54] sm:%s365] %v416
                  %v418 = vld [vmem:[%s372 + $0x58] sm:%s365]
                  %419 = vst [vmem:[%s373 + $0x58] sm:%s365] %v418
                  %v420 = vld [vmem:[%s372 + $0x5c] sm:%s365]
                  %421 = vst [vmem:[%s373 + $0x5c] sm:%s365] %v420
                  %v422 = vld [vmem:[%s372 + $0x60] sm:%s365]
                  %423 = vst [vmem:[%s373 + $0x60] sm:%s365] %v422
                  %v424 = vld [vmem:[%s372 + $0xc8] sm:%s365]
                  %425 = vst [vmem:[%s373 + $0x64] sm:%s365] %v424
                  %v426 = vld [vmem:[%s372 + $0xcc] sm:%s365]
                  %427 = vst [vmem:[%s373 + $0x68] sm:%s365] %v426
                  %v428 = vld [vmem:[%s372 + $0xd0] sm:%s365]
                  %429 = vst [vmem:[%s373 + $0x6c] sm:%s365] %v428
                  %v430 = vld [vmem:[%s372 + $0xd4] sm:%s365]
                  %431 = vst [vmem:[%s373 + $0x70] sm:%s365] %v430
                  %v432 = vld [vmem:[%s372 + $0xd8] sm:%s365]
                  %433 = vst [vmem:[%s373 + $0x74] sm:%s365] %v432
                  %v434 = vld [vmem:[%s372 + $0xdc] sm:%s365]
                  %435 = vst [vmem:[%s373 + $0x78] sm:%s365] %v434
                  %v436 = vld [vmem:[%s372 + $0xe0] sm:%s365]
                  %437 = vst [vmem:[%s373 + $0x7c] sm:%s365] %v436
                  %v438 = vld [vmem:[%s372 + $0xe4] sm:%s365]
                  %439 = vst [vmem:[%s373 + $0x80] sm:%s365] %v438
                  %v440 = vld [vmem:[%s372 + $0xe8] sm:%s365]
                  %441 = vst [vmem:[%s373 + $0x84] sm:%s365] %v440
                  %v442 = vld [vmem:[%s372 + $0xec] sm:%s365]
                  %443 = vst [vmem:[%s373 + $0x88] sm:%s365] %v442
                  %v444 = vld [vmem:[%s372 + $0xf0] sm:%s365]
                  %445 = vst [vmem:[%s373 + $0x8c] sm:%s365] %v444
                  %v446 = vld [vmem:[%s372 + $0xf4] sm:%s365]
                  %447 = vst [vmem:[%s373 + $0x90] sm:%s365] %v446
                  %v448 = vld [vmem:[%s372 + $0xf8] sm:%s365]
                  %449 = vst [vmem:[%s373 + $0x94] sm:%s365] %v448
                  %v450 = vld [vmem:[%s372 + $0xfc] sm:%s365]
                  %451 = vst [vmem:[%s373 + $0x98] sm:%s365] %v450
                  %v452 = vld [vmem:[%s372 + $0x100] sm:%s365]
                  %453 = vst [vmem:[%s373 + $0x9c] sm:%s365] %v452
                  %v454 = vld [vmem:[%s372 + $0x104] sm:%s365]
                  %455 = vst [vmem:[%s373 + $0xa0] sm:%s365] %v454
                  %v456 = vld [vmem:[%s372 + $0x108] sm:%s365]
                  %457 = vst [vmem:[%s373 + $0xa4] sm:%s365] %v456
                  %v458 = vld [vmem:[%s372 + $0x10c] sm:%s365]
                  %459 = vst [vmem:[%s373 + $0xa8] sm:%s365] %v458
                  %v460 = vld [vmem:[%s372 + $0x110] sm:%s365]
                  %461 = vst [vmem:[%s373 + $0xac] sm:%s365] %v460
                  %v462 = vld [vmem:[%s372 + $0x114] sm:%s365]
                  %463 = vst [vmem:[%s373 + $0xb0] sm:%s365] %v462
                  %v464 = vld [vmem:[%s372 + $0x118] sm:%s365]
                  %465 = vst [vmem:[%s373 + $0xb4] sm:%s365] %v464
                  %v466 = vld [vmem:[%s372 + $0x11c] sm:%s365]
                  %467 = vst [vmem:[%s373 + $0xb8] sm:%s365] %v466
                  %v468 = vld [vmem:[%s372 + $0x120] sm:%s365]
                  %469 = vst [vmem:[%s373 + $0xbc] sm:%s365] %v468
                  %v470 = vld [vmem:[%s372 + $0x124] sm:%s365]
                  %471 = vst [vmem:[%s373 + $0xc0] sm:%s365] %v470
                  %v472 = vld [vmem:[%s372 + $0x128] sm:%s365]
                  %473 = vst [vmem:[%s373 + $0xc4] sm:%s365] %v472
                  %v474 = vld [vmem:[%s372 + $0x190] sm:%s365]
                  %475 = vst [vmem:[%s373 + $0xc8] sm:%s365] %v474
                  %v476 = vld [vmem:[%s372 + $0x194] sm:%s365]
                  %477 = vst [vmem:[%s373 + $0xcc] sm:%s365] %v476
                  %v478 = vld [vmem:[%s372 + $0x198] sm:%s365]
                  %479 = vst [vmem:[%s373 + $0xd0] sm:%s365] %v478
                  %v480 = vld [vmem:[%s372 + $0x19c] sm:%s365]
                  %481 = vst [vmem:[%s373 + $0xd4] sm:%s365] %v480
                  %v482 = vld [vmem:[%s372 + $0x1a0] sm:%s365]
                  %483 = vst [vmem:[%s373 + $0xd8] sm:%s365] %v482
                  %v484 = vld [vmem:[%s372 + $0x1a4] sm:%s365]
                  %485 = vst [vmem:[%s373 + $0xdc] sm:%s365] %v484
                  %v486 = vld [vmem:[%s372 + $0x1a8] sm:%s365]
                  %487 = vst [vmem:[%s373 + $0xe0] sm:%s365] %v486
                  %v488 = vld [vmem:[%s372 + $0x1ac] sm:%s365]
                  %489 = vst [vmem:[%s373 + $0xe4] sm:%s365] %v488
                  %v490 = vld [vmem:[%s372 + $0x1b0] sm:%s365]
                  %491 = vst [vmem:[%s373 + $0xe8] sm:%s365] %v490
                  %v492 = vld [vmem:[%s372 + $0x1b4] sm:%s365]
                  %493 = vst [vmem:[%s373 + $0xec] sm:%s365] %v492
                  %v494 = vld [vmem:[%s372 + $0x1b8] sm:%s365]
                  %495 = vst [vmem:[%s373 + $0xf0] sm:%s365] %v494
                  %v496 = vld [vmem:[%s372 + $0x1bc] sm:%s365]
                  %497 = vst [vmem:[%s373 + $0xf4] sm:%s365] %v496
                  %v498 = vld [vmem:[%s372 + $0x1c0] sm:%s365]
                  %499 = vst [vmem:[%s373 + $0xf8] sm:%s365] %v498
                  %v500 = vld [vmem:[%s372 + $0x1c4] sm:%s365]
                  %501 = vst [vmem:[%s373 + $0xfc] sm:%s365] %v500
                  %v502 = vld [vmem:[%s372 + $0x1c8] sm:%s365]
                  %503 = vst [vmem:[%s373 + $0x100] sm:%s365] %v502
                  %v504 = vld [vmem:[%s372 + $0x1cc] sm:%s365]
                  %505 = vst [vmem:[%s373 + $0x104] sm:%s365] %v504
                  %v506 = vld [vmem:[%s372 + $0x1d0] sm:%s365]
                  %507 = vst [vmem:[%s373 + $0x108] sm:%s365] %v506
                  %v508 = vld [vmem:[%s372 + $0x1d4] sm:%s365]
                  %509 = vst [vmem:[%s373 + $0x10c] sm:%s365] %v508
                  %v510 = vld [vmem:[%s372 + $0x1d8] sm:%s365]
                  %511 = vst [vmem:[%s373 + $0x110] sm:%s365] %v510
                  %v512 = vld [vmem:[%s372 + $0x1dc] sm:%s365]
                  %513 = vst [vmem:[%s373 + $0x114] sm:%s365] %v512
                  %v514 = vld [vmem:[%s372 + $0x1e0] sm:%s365]
                  %515 = vst [vmem:[%s373 + $0x118] sm:%s365] %v514
                  %v516 = vld [vmem:[%s372 + $0x1e4] sm:%s365]
                  %517 = vst [vmem:[%s373 + $0x11c] sm:%s365] %v516
                  %v518 = vld [vmem:[%s372 + $0x1e8] sm:%s365]
                  %519 = vst [vmem:[%s373 + $0x120] sm:%s365] %v518
                  %v520 = vld [vmem:[%s372 + $0x1ec] sm:%s365]
                  %521 = vst [vmem:[%s373 + $0x124] sm:%s365] %v520
                  %v522 = vld [vmem:[%s372 + $0x1f0] sm:%s365]
                  %523 = vst [vmem:[%s373 + $0x128] sm:%s365] %v522
                  %v524 = vld [vmem:[%s372 + $0x258] sm:%s365]
                  %525 = vst [vmem:[%s373 + $0x12c] sm:%s365] %v524
                  %v526 = vld [vmem:[%s372 + $0x25c] sm:%s365]
                  %527 = vst [vmem:[%s373 + $0x130] sm:%s365] %v526
                  %v528 = vld [vmem:[%s372 + $0x260] sm:%s365]
                  %529 = vst [vmem:[%s373 + $0x134] sm:%s365] %v528
                  %v530 = vld [vmem:[%s372 + $0x264] sm:%s365]
                  %531 = vst [vmem:[%s373 + $0x138] sm:%s365] %v530
                  %v532 = vld [vmem:[%s372 + $0x268] sm:%s365]
                  %533 = vst [vmem:[%s373 + $0x13c] sm:%s365] %v532
                  %v534 = vld [vmem:[%s372 + $0x26c] sm:%s365]
                  %535 = vst [vmem:[%s373 + $0x140] sm:%s365] %v534
                  %v536 = vld [vmem:[%s372 + $0x270] sm:%s365]
                  %537 = vst [vmem:[%s373 + $0x144] sm:%s365] %v536
                  %v538 = vld [vmem:[%s372 + $0x274] sm:%s365]
                  %539 = vst [vmem:[%s373 + $0x148] sm:%s365] %v538
                  %v540 = vld [vmem:[%s372 + $0x278] sm:%s365]
                  %541 = vst [vmem:[%s373 + $0x14c] sm:%s365] %v540
                  %v542 = vld [vmem:[%s372 + $0x27c] sm:%s365]
                  %543 = vst [vmem:[%s373 + $0x150] sm:%s365] %v542
                  %v544 = vld [vmem:[%s372 + $0x280] sm:%s365]
                  %545 = vst [vmem:[%s373 + $0x154] sm:%s365] %v544
                  %v546 = vld [vmem:[%s372 + $0x284] sm:%s365]
                  %547 = vst [vmem:[%s373 + $0x158] sm:%s365] %v546
                  %v548 = vld [vmem:[%s372 + $0x288] sm:%s365]
                  %549 = vst [vmem:[%s373 + $0x15c] sm:%s365] %v548
                  %v550 = vld [vmem:[%s372 + $0x28c] sm:%s365]
                  %551 = vst [vmem:[%s373 + $0x160] sm:%s365] %v550
                  %v552 = vld [vmem:[%s372 + $0x290] sm:%s365]
                  %553 = vst [vmem:[%s373 + $0x164] sm:%s365] %v552
                  %v554 = vld [vmem:[%s372 + $0x294] sm:%s365]
                  %555 = vst [vmem:[%s373 + $0x168] sm:%s365] %v554
                  %v556 = vld [vmem:[%s372 + $0x298] sm:%s365]
                  %557 = vst [vmem:[%s373 + $0x16c] sm:%s365] %v556
                  %v558 = vld [vmem:[%s372 + $0x29c] sm:%s365]
                  %559 = vst [vmem:[%s373 + $0x170] sm:%s365] %v558
                  %v560 = vld [vmem:[%s372 + $0x2a0] sm:%s365]
                  %561 = vst [vmem:[%s373 + $0x174] sm:%s365] %v560
                  %v562 = vld [vmem:[%s372 + $0x2a4] sm:%s365]
                  %563 = vst [vmem:[%s373 + $0x178] sm:%s365] %v562
                  %v564 = vld [vmem:[%s372 + $0x2a8] sm:%s365]
                  %565 = vst [vmem:[%s373 + $0x17c] sm:%s365] %v564
                  %v566 = vld [vmem:[%s372 + $0x2ac] sm:%s365]
                  %567 = vst [vmem:[%s373 + $0x180] sm:%s365] %v566
                  %v568 = vld [vmem:[%s372 + $0x2b0] sm:%s365]
                  %569 = vst [vmem:[%s373 + $0x184] sm:%s365] %v568
                  %v570 = vld [vmem:[%s372 + $0x2b4] sm:%s365]
                  %571 = vst [vmem:[%s373 + $0x188] sm:%s365] %v570
                  %v572 = vld [vmem:[%s372 + $0x2b8] sm:%s365]
                  %573 = vst [vmem:[%s373 + $0x18c] sm:%s365] %v572
                $region63: #{lenet_pallas.3} parent=50 // loop_footer
                  %s371 = sadd.s32 1, %s367
                $region64: #{lenet_pallas.3} parent=50 // loop_footer_branch
                  %366 = sbr.rel target = $region60
                $region65: #{lenet_pallas.3} parent=50 // loop_exit
                  _
              $region51: #{lenet_pallas.3} parent=35 // pred_fallthru
                _
            $region36: #{lenet_pallas.3} parent=31 // pred_fallthru
              _
            // Predicated region
            $region37: #{lenet_pallas.3} parent=31 // pred_check
              _
            $region38: #{lenet_pallas.3} parent=31 // pred_check_branch
              %143 = sbr.rel (0) target = $region40
            $region39: #{lenet_pallas.3} parent=31 // pred_region
              %s145 = ssub.s32 16, 1
              loop: start=0, step=1, limit=1
              $region41: #{lenet_pallas.3} parent=39 // loop_pre_header
                _
              $region42: #{lenet_pallas.3} parent=39 // loop_header
                %s147 = sphi 0, %s151
                %p148 = scmp.ge.s32.totalorder %s147, 1
                %s152 = sphi %s137, %s137
                %s153 = sphi %s134, %s134
              $region43: #{lenet_pallas.3} parent=39 // loop_header_branch
                %150 = sbr.rel (%p148) target = $region47
              $region44: #{lenet_pallas.3} parent=39 // loop_body
                %v154 = vld [vmem:[%s152] sm:%s145]
                %155 = vst [vmem:[%s153] sm:%s145] %v154
                %v156 = vld [vmem:[%s152 + $0x4] sm:%s145]
                %157 = vst [vmem:[%s153 + $0x4] sm:%s145] %v156
                %v158 = vld [vmem:[%s152 + $0x8] sm:%s145]
                %159 = vst [vmem:[%s153 + $0x8] sm:%s145] %v158
                %v160 = vld [vmem:[%s152 + $0xc] sm:%s145]
                %161 = vst [vmem:[%s153 + $0xc] sm:%s145] %v160
                %v162 = vld [vmem:[%s152 + $0x10] sm:%s145]
                %163 = vst [vmem:[%s153 + $0x10] sm:%s145] %v162
                %v164 = vld [vmem:[%s152 + $0x14] sm:%s145]
                %165 = vst [vmem:[%s153 + $0x14] sm:%s145] %v164
                %v166 = vld [vmem:[%s152 + $0x18] sm:%s145]
                %167 = vst [vmem:[%s153 + $0x18] sm:%s145] %v166
                %v168 = vld [vmem:[%s152 + $0x1c] sm:%s145]
                %169 = vst [vmem:[%s153 + $0x1c] sm:%s145] %v168
                %v170 = vld [vmem:[%s152 + $0x20] sm:%s145]
                %171 = vst [vmem:[%s153 + $0x20] sm:%s145] %v170
                %v172 = vld [vmem:[%s152 + $0x24] sm:%s145]
                %173 = vst [vmem:[%s153 + $0x24] sm:%s145] %v172
                %v174 = vld [vmem:[%s152 + $0x28] sm:%s145]
                %175 = vst [vmem:[%s153 + $0x28] sm:%s145] %v174
                %v176 = vld [vmem:[%s152 + $0x2c] sm:%s145]
                %177 = vst [vmem:[%s153 + $0x2c] sm:%s145] %v176
                %v178 = vld [vmem:[%s152 + $0x30] sm:%s145]
                %179 = vst [vmem:[%s153 + $0x30] sm:%s145] %v178
                %v180 = vld [vmem:[%s152 + $0x34] sm:%s145]
                %181 = vst [vmem:[%s153 + $0x34] sm:%s145] %v180
                %v182 = vld [vmem:[%s152 + $0x38] sm:%s145]
                %183 = vst [vmem:[%s153 + $0x38] sm:%s145] %v182
                %v184 = vld [vmem:[%s152 + $0x3c] sm:%s145]
                %185 = vst [vmem:[%s153 + $0x3c] sm:%s145] %v184
                %v186 = vld [vmem:[%s152 + $0x40] sm:%s145]
                %187 = vst [vmem:[%s153 + $0x40] sm:%s145] %v186
                %v188 = vld [vmem:[%s152 + $0x44] sm:%s145]
                %189 = vst [vmem:[%s153 + $0x44] sm:%s145] %v188
                %v190 = vld [vmem:[%s152 + $0x48] sm:%s145]
                %191 = vst [vmem:[%s153 + $0x48] sm:%s145] %v190
                %v192 = vld [vmem:[%s152 + $0x4c] sm:%s145]
                %193 = vst [vmem:[%s153 + $0x4c] sm:%s145] %v192
                %v194 = vld [vmem:[%s152 + $0x50] sm:%s145]
                %195 = vst [vmem:[%s153 + $0x50] sm:%s145] %v194
                %v196 = vld [vmem:[%s152 + $0x54] sm:%s145]
                %197 = vst [vmem:[%s153 + $0x54] sm:%s145] %v196
                %v198 = vld [vmem:[%s152 + $0x58] sm:%s145]
                %199 = vst [vmem:[%s153 + $0x58] sm:%s145] %v198
                %v200 = vld [vmem:[%s152 + $0x5c] sm:%s145]
                %201 = vst [vmem:[%s153 + $0x5c] sm:%s145] %v200
                %v202 = vld [vmem:[%s152 + $0x60] sm:%s145]
                %203 = vst [vmem:[%s153 + $0x60] sm:%s145] %v202
                %v204 = vld [vmem:[%s152 + $0xc8] sm:%s145]
                %205 = vst [vmem:[%s153 + $0x64] sm:%s145] %v204
                %v206 = vld [vmem:[%s152 + $0xcc] sm:%s145]
                %207 = vst [vmem:[%s153 + $0x68] sm:%s145] %v206
                %v208 = vld [vmem:[%s152 + $0xd0] sm:%s145]
                %209 = vst [vmem:[%s153 + $0x6c] sm:%s145] %v208
                %v210 = vld [vmem:[%s152 + $0xd4] sm:%s145]
                %211 = vst [vmem:[%s153 + $0x70] sm:%s145] %v210
                %v212 = vld [vmem:[%s152 + $0xd8] sm:%s145]
                %213 = vst [vmem:[%s153 + $0x74] sm:%s145] %v212
                %v214 = vld [vmem:[%s152 + $0xdc] sm:%s145]
                %215 = vst [vmem:[%s153 + $0x78] sm:%s145] %v214
                %v216 = vld [vmem:[%s152 + $0xe0] sm:%s145]
                %217 = vst [vmem:[%s153 + $0x7c] sm:%s145] %v216
                %v218 = vld [vmem:[%s152 + $0xe4] sm:%s145]
                %219 = vst [vmem:[%s153 + $0x80] sm:%s145] %v218
                %v220 = vld [vmem:[%s152 + $0xe8] sm:%s145]
                %221 = vst [vmem:[%s153 + $0x84] sm:%s145] %v220
                %v222 = vld [vmem:[%s152 + $0xec] sm:%s145]
                %223 = vst [vmem:[%s153 + $0x88] sm:%s145] %v222
                %v224 = vld [vmem:[%s152 + $0xf0] sm:%s145]
                %225 = vst [vmem:[%s153 + $0x8c] sm:%s145] %v224
                %v226 = vld [vmem:[%s152 + $0xf4] sm:%s145]
                %227 = vst [vmem:[%s153 + $0x90] sm:%s145] %v226
                %v228 = vld [vmem:[%s152 + $0xf8] sm:%s145]
                %229 = vst [vmem:[%s153 + $0x94] sm:%s145] %v228
                %v230 = vld [vmem:[%s152 + $0xfc] sm:%s145]
                %231 = vst [vmem:[%s153 + $0x98] sm:%s145] %v230
                %v232 = vld [vmem:[%s152 + $0x100] sm:%s145]
                %233 = vst [vmem:[%s153 + $0x9c] sm:%s145] %v232
                %v234 = vld [vmem:[%s152 + $0x104] sm:%s145]
                %235 = vst [vmem:[%s153 + $0xa0] sm:%s145] %v234
                %v236 = vld [vmem:[%s152 + $0x108] sm:%s145]
                %237 = vst [vmem:[%s153 + $0xa4] sm:%s145] %v236
                %v238 = vld [vmem:[%s152 + $0x10c] sm:%s145]
                %239 = vst [vmem:[%s153 + $0xa8] sm:%s145] %v238
                %v240 = vld [vmem:[%s152 + $0x110] sm:%s145]
                %241 = vst [vmem:[%s153 + $0xac] sm:%s145] %v240
                %v242 = vld [vmem:[%s152 + $0x114] sm:%s145]
                %243 = vst [vmem:[%s153 + $0xb0] sm:%s145] %v242
                %v244 = vld [vmem:[%s152 + $0x118] sm:%s145]
                %245 = vst [vmem:[%s153 + $0xb4] sm:%s145] %v244
                %v246 = vld [vmem:[%s152 + $0x11c] sm:%s145]
                %247 = vst [vmem:[%s153 + $0xb8] sm:%s145] %v246
                %v248 = vld [vmem:[%s152 + $0x120] sm:%s145]
                %249 = vst [vmem:[%s153 + $0xbc] sm:%s145] %v248
                %v250 = vld [vmem:[%s152 + $0x124] sm:%s145]
                %251 = vst [vmem:[%s153 + $0xc0] sm:%s145] %v250
                %v252 = vld [vmem:[%s152 + $0x128] sm:%s145]
                %253 = vst [vmem:[%s153 + $0xc4] sm:%s145] %v252
                %v254 = vld [vmem:[%s152 + $0x190] sm:%s145]
                %255 = vst [vmem:[%s153 + $0xc8] sm:%s145] %v254
                %v256 = vld [vmem:[%s152 + $0x194] sm:%s145]
                %257 = vst [vmem:[%s153 + $0xcc] sm:%s145] %v256
                %v258 = vld [vmem:[%s152 + $0x198] sm:%s145]
                %259 = vst [vmem:[%s153 + $0xd0] sm:%s145] %v258
                %v260 = vld [vmem:[%s152 + $0x19c] sm:%s145]
                %261 = vst [vmem:[%s153 + $0xd4] sm:%s145] %v260
                %v262 = vld [vmem:[%s152 + $0x1a0] sm:%s145]
                %263 = vst [vmem:[%s153 + $0xd8] sm:%s145] %v262
                %v264 = vld [vmem:[%s152 + $0x1a4] sm:%s145]
                %265 = vst [vmem:[%s153 + $0xdc] sm:%s145] %v264
                %v266 = vld [vmem:[%s152 + $0x1a8] sm:%s145]
                %267 = vst [vmem:[%s153 + $0xe0] sm:%s145] %v266
                %v268 = vld [vmem:[%s152 + $0x1ac] sm:%s145]
                %269 = vst [vmem:[%s153 + $0xe4] sm:%s145] %v268
                %v270 = vld [vmem:[%s152 + $0x1b0] sm:%s145]
                %271 = vst [vmem:[%s153 + $0xe8] sm:%s145] %v270
                %v272 = vld [vmem:[%s152 + $0x1b4] sm:%s145]
                %273 = vst [vmem:[%s153 + $0xec] sm:%s145] %v272
                %v274 = vld [vmem:[%s152 + $0x1b8] sm:%s145]
                %275 = vst [vmem:[%s153 + $0xf0] sm:%s145] %v274
                %v276 = vld [vmem:[%s152 + $0x1bc] sm:%s145]
                %277 = vst [vmem:[%s153 + $0xf4] sm:%s145] %v276
                %v278 = vld [vmem:[%s152 + $0x1c0] sm:%s145]
                %279 = vst [vmem:[%s153 + $0xf8] sm:%s145] %v278
                %v280 = vld [vmem:[%s152 + $0x1c4] sm:%s145]
                %281 = vst [vmem:[%s153 + $0xfc] sm:%s145] %v280
                %v282 = vld [vmem:[%s152 + $0x1c8] sm:%s145]
                %283 = vst [vmem:[%s153 + $0x100] sm:%s145] %v282
                %v284 = vld [vmem:[%s152 + $0x1cc] sm:%s145]
                %285 = vst [vmem:[%s153 + $0x104] sm:%s145] %v284
                %v286 = vld [vmem:[%s152 + $0x1d0] sm:%s145]
                %287 = vst [vmem:[%s153 + $0x108] sm:%s145] %v286
                %v288 = vld [vmem:[%s152 + $0x1d4] sm:%s145]
                %289 = vst [vmem:[%s153 + $0x10c] sm:%s145] %v288
                %v290 = vld [vmem:[%s152 + $0x1d8] sm:%s145]
                %291 = vst [vmem:[%s153 + $0x110] sm:%s145] %v290
                %v292 = vld [vmem:[%s152 + $0x1dc] sm:%s145]
                %293 = vst [vmem:[%s153 + $0x114] sm:%s145] %v292
                %v294 = vld [vmem:[%s152 + $0x1e0] sm:%s145]
                %295 = vst [vmem:[%s153 + $0x118] sm:%s145] %v294
                %v296 = vld [vmem:[%s152 + $0x1e4] sm:%s145]
                %297 = vst [vmem:[%s153 + $0x11c] sm:%s145] %v296
                %v298 = vld [vmem:[%s152 + $0x1e8] sm:%s145]
                %299 = vst [vmem:[%s153 + $0x120] sm:%s145] %v298
                %v300 = vld [vmem:[%s152 + $0x1ec] sm:%s145]
                %301 = vst [vmem:[%s153 + $0x124] sm:%s145] %v300
                %v302 = vld [vmem:[%s152 + $0x1f0] sm:%s145]
                %303 = vst [vmem:[%s153 + $0x128] sm:%s145] %v302
                %v304 = vld [vmem:[%s152 + $0x258] sm:%s145]
                %305 = vst [vmem:[%s153 + $0x12c] sm:%s145] %v304
                %v306 = vld [vmem:[%s152 + $0x25c] sm:%s145]
                %307 = vst [vmem:[%s153 + $0x130] sm:%s145] %v306
                %v308 = vld [vmem:[%s152 + $0x260] sm:%s145]
                %309 = vst [vmem:[%s153 + $0x134] sm:%s145] %v308
                %v310 = vld [vmem:[%s152 + $0x264] sm:%s145]
                %311 = vst [vmem:[%s153 + $0x138] sm:%s145] %v310
                %v312 = vld [vmem:[%s152 + $0x268] sm:%s145]
                %313 = vst [vmem:[%s153 + $0x13c] sm:%s145] %v312
                %v314 = vld [vmem:[%s152 + $0x26c] sm:%s145]
                %315 = vst [vmem:[%s153 + $0x140] sm:%s145] %v314
                %v316 = vld [vmem:[%s152 + $0x270] sm:%s145]
                %317 = vst [vmem:[%s153 + $0x144] sm:%s145] %v316
                %v318 = vld [vmem:[%s152 + $0x274] sm:%s145]
                %319 = vst [vmem:[%s153 + $0x148] sm:%s145] %v318
                %v320 = vld [vmem:[%s152 + $0x278] sm:%s145]
                %321 = vst [vmem:[%s153 + $0x14c] sm:%s145] %v320
                %v322 = vld [vmem:[%s152 + $0x27c] sm:%s145]
                %323 = vst [vmem:[%s153 + $0x150] sm:%s145] %v322
                %v324 = vld [vmem:[%s152 + $0x280] sm:%s145]
                %325 = vst [vmem:[%s153 + $0x154] sm:%s145] %v324
                %v326 = vld [vmem:[%s152 + $0x284] sm:%s145]
                %327 = vst [vmem:[%s153 + $0x158] sm:%s145] %v326
                %v328 = vld [vmem:[%s152 + $0x288] sm:%s145]
                %329 = vst [vmem:[%s153 + $0x15c] sm:%s145] %v328
                %v330 = vld [vmem:[%s152 + $0x28c] sm:%s145]
                %331 = vst [vmem:[%s153 + $0x160] sm:%s145] %v330
                %v332 = vld [vmem:[%s152 + $0x290] sm:%s145]
                %333 = vst [vmem:[%s153 + $0x164] sm:%s145] %v332
                %v334 = vld [vmem:[%s152 + $0x294] sm:%s145]
                %335 = vst [vmem:[%s153 + $0x168] sm:%s145] %v334
                %v336 = vld [vmem:[%s152 + $0x298] sm:%s145]
                %337 = vst [vmem:[%s153 + $0x16c] sm:%s145] %v336
                %v338 = vld [vmem:[%s152 + $0x29c] sm:%s145]
                %339 = vst [vmem:[%s153 + $0x170] sm:%s145] %v338
                %v340 = vld [vmem:[%s152 + $0x2a0] sm:%s145]
                %341 = vst [vmem:[%s153 + $0x174] sm:%s145] %v340
                %v342 = vld [vmem:[%s152 + $0x2a4] sm:%s145]
                %343 = vst [vmem:[%s153 + $0x178] sm:%s145] %v342
                %v344 = vld [vmem:[%s152 + $0x2a8] sm:%s145]
                %345 = vst [vmem:[%s153 + $0x17c] sm:%s145] %v344
                %v346 = vld [vmem:[%s152 + $0x2ac] sm:%s145]
                %347 = vst [vmem:[%s153 + $0x180] sm:%s145] %v346
                %v348 = vld [vmem:[%s152 + $0x2b0] sm:%s145]
                %349 = vst [vmem:[%s153 + $0x184] sm:%s145] %v348
                %v350 = vld [vmem:[%s152 + $0x2b4] sm:%s145]
                %351 = vst [vmem:[%s153 + $0x188] sm:%s145] %v350
                %v352 = vld [vmem:[%s152 + $0x2b8] sm:%s145]
                %353 = vst [vmem:[%s153 + $0x18c] sm:%s145] %v352
              $region45: #{lenet_pallas.3} parent=39 // loop_footer
                %s151 = sadd.s32 1, %s147
              $region46: #{lenet_pallas.3} parent=39 // loop_footer_branch
                %146 = sbr.rel target = $region42
              $region47: #{lenet_pallas.3} parent=39 // loop_exit
                _
            $region40: #{lenet_pallas.3} parent=31 // pred_fallthru
              _
          $region32: #{lenet_pallas.3} parent=27 // pred_fallthru
            _
          %574 = vnop
        $region28: #{lenet_pallas.3} parent=23 // pred_fallthru
          _
      $region24: #{lenet_pallas.3} parent=5 // pred_fallthru
        _
      %p575 = scmp.le.s32.totalorder 1, %s9
      %p576 = scmp.lt.s32.totalorder %s9, 3
      %p577 = pnand %p575, %p576
      %p578 = pneg %p577
      // Predicated region
      $region66: #{lenet_pallas.3} parent=5 // pred_check
        _
      $region67: #{lenet_pallas.3} parent=5 // pred_check_branch
        %580 = sbr.rel (%p577) target = $region69
      $region68: #{lenet_pallas.3} parent=5 // pred_region
        %s581 = ssub.s32 %s9, 1
        %s582 = sand.u32 %s22, 1
        %s583 = sand.u32 %s22, 1
        %s584 = smul.addr %s583, 400
        %s585 = scalar_lea.vmem [#allocation2], %s584
        // Predicated region
        $region70: #{lenet_pallas.3} parent=68 // pred_check
          %p586 = pneg %p35
        $region71: #{lenet_pallas.3} parent=68 // pred_check_branch
          %588 = sbr.rel (%p586) target = $region73
        $region72: #{lenet_pallas.3} parent=68 // pred_region
          _
        $region73: #{lenet_pallas.3} parent=68 // pred_fallthru
          _
        %s589 = sand.u32 %s22, 1
        %s590 = sand.u32 %s22, 1
        %s591 = smul.addr %s590, 400
        %s592 = scalar_lea.vmem [#allocation2], %s591
        %p593 = pneg %p35
        %p594 = pneg %p32
        %p595 = pneg %p56
        %p596 = pneg %p53
        %p597 = pneg %p77
        %p598 = pneg %p74
        %p599 = pneg %p103
        %p600 = pneg %p100
        %s601 = smul.u32 25, %s14
        %p602 = scmp.lt.s32.totalorder %s601, 49
        %s603 = scalar_select %p602, %s601, 49
        %s604 = smul.addr %s603, 8
        %s605 = scalar_lea.vmem %s3, %s604
        %s606 = smul.u32 25, %s14
        %s607 = smul.u32 25, %s14
        %p608 = scmp.lt.s32.totalorder %s607, 49
        %s609 = scalar_select %p608, %s607, 49
        %s610 = smul.addr %s609, 8
        %s611 = scalar_lea.vmem %s3, %s610
        %s612 = smul.u32 25, %s14
        %v614 = vld [vmem:[%s2] sm:$0x1]
        %v615 = vld [vmem:[%s585] sm:$0xf]
        %v616 = vld [vmem:[%s585 + $0x4] sm:$0xf]
        %v617 = vld [vmem:[%s585 + $0x8] sm:$0xf]
        %v618 = vld [vmem:[%s585 + $0xc] sm:$0xf]
        %v619 = vld [vmem:[%s585 + $0x10] sm:$0xf]
        %v620 = vld [vmem:[%s585 + $0x14] sm:$0xf]
        %v621 = vld [vmem:[%s585 + $0x18] sm:$0xf]
        %v622 = vld [vmem:[%s585 + $0x1c] sm:$0xf]
        %v623 = vld [vmem:[%s585 + $0x20] sm:$0xf]
        %v624 = vld [vmem:[%s585 + $0x24] sm:$0xf]
        %v625 = vld [vmem:[%s585 + $0x28] sm:$0xf]
        %v626 = vld [vmem:[%s585 + $0x2c] sm:$0xf]
        %v627 = vld [vmem:[%s585 + $0x30] sm:$0xf]
        %v628 = vld [vmem:[%s585 + $0x34] sm:$0xf]
        %v629 = vld [vmem:[%s585 + $0x38] sm:$0xf]
        %v630 = vld [vmem:[%s585 + $0x3c] sm:$0xf]
        %v631 = vld [vmem:[%s585 + $0x40] sm:$0xf]
        %v632 = vld [vmem:[%s585 + $0x44] sm:$0xf]
        %v633 = vld [vmem:[%s585 + $0x48] sm:$0xf]
        %v634 = vld [vmem:[%s585 + $0x4c] sm:$0xf]
        %v635 = vld [vmem:[%s585 + $0x50] sm:$0xf]
        %v636 = vld [vmem:[%s585 + $0x54] sm:$0xf]
        %v637 = vld [vmem:[%s585 + $0x58] sm:$0xf]
        %v638 = vld [vmem:[%s585 + $0x5c] sm:$0xf]
        %v639 = vld [vmem:[%s585 + $0x60] sm:$0xf]
        %v640 = vld [vmem:[%s1] sm:$0xf]
        %v641 = vld [vmem:[%s1 + $0x4] sm:$0xf]
        %v642 = vld [vmem:[%s1 + $0x8] sm:$0xf]
        %v643 = vld [vmem:[%s1 + $0xc] sm:$0xf]
        %v644 = vld [vmem:[%s1 + $0x10] sm:$0xf]
        %v645 = vld [vmem:[%s1 + $0x14] sm:$0xf]
        %v646 = vld [vmem:[%s1 + $0x18] sm:$0xf]
        %v647 = vld [vmem:[%s1 + $0x1c] sm:$0xf]
        %v648 = vld [vmem:[%s1 + $0x20] sm:$0xf]
        %v649 = vld [vmem:[%s1 + $0x24] sm:$0xf]
        %v650 = vld [vmem:[%s1 + $0x28] sm:$0xf]
        %v651 = vld [vmem:[%s1 + $0x2c] sm:$0xf]
        %v652 = vld [vmem:[%s1 + $0x30] sm:$0xf]
        %v653 = vld [vmem:[%s1 + $0x34] sm:$0xf]
        %v654 = vld [vmem:[%s1 + $0x38] sm:$0xf]
        %v655 = vld [vmem:[%s1 + $0x3c] sm:$0xf]
        %v657 = vlaneseq
        %v658 = vshrl.u32 %v657, 7
        %v659 = vsub.s32 0, %v658
        %v660 = vrot.slane %v614, %v659
        %v687 = vunpack.c.l.b16 %v615
        %v688 = vunpack.c.l.b16 %v616
        %v689 = vunpack.c.l.b16 %v617
        %v690 = vunpack.c.l.b16 %v618
        %v691 = vunpack.c.l.b16 %v619
        %v692 = vunpack.c.l.b16 %v620
        %v693 = vunpack.c.l.b16 %v621
        %v694 = vunpack.c.l.b16 %v622
        %v695 = vunpack.c.l.b16 %v623
        %v696 = vunpack.c.l.b16 %v624
        %v697 = vunpack.c.l.b16 %v625
        %v698 = vunpack.c.l.b16 %v626
        %v699 = vunpack.c.l.b16 %v627
        %v700 = vunpack.c.l.b16 %v628
        %v701 = vunpack.c.l.b16 %v629
        %v702 = vunpack.c.l.b16 %v630
        %v703 = vunpack.c.l.b16 %v631
        %v704 = vunpack.c.l.b16 %v632
        %v705 = vunpack.c.l.b16 %v633
        %v706 = vunpack.c.l.b16 %v634
        %v707 = vunpack.c.l.b16 %v635
        %v708 = vunpack.c.l.b16 %v636
        %v709 = vunpack.c.l.b16 %v637
        %v710 = vunpack.c.l.b16 %v638
        %v711 = vunpack.c.l.b16 %v639
        %v712 = vpack.c.b16 %v688, %v687
        %v713 = vpack.c.b16 %v690, %v689
        %v714 = vpack.c.b16 %v692, %v691
        %v715 = vpack.c.b16 %v694, %v693
        %v716 = vpack.c.b16 %v696, %v695
        %v717 = vpack.c.b16 %v698, %v697
        %v718 = vpack.c.b16 %v700, %v699
        %v719 = vpack.c.b16 %v702, %v701
        %v720 = vpack.c.b16 %v704, %v703
        %v721 = vpack.c.b16 %v706, %v705
        %v722 = vpack.c.b16 %v708, %v707
        %v723 = vpack.c.b16 %v710, %v709
        %v724 = vpack.c.b16 %v711, %v711
        %v754 = vunpack.c.l.b16 %v640
        %v755 = vunpack.c.l.b16 %v641
        %v756 = vunpack.c.l.b16 %v642
        %v757 = vunpack.c.l.b16 %v643
        %v758 = vunpack.c.l.b16 %v644
        %v759 = vunpack.c.l.b16 %v645
        %v760 = vunpack.c.l.b16 %v646
        %v761 = vunpack.c.l.b16 %v647
        %v762 = vunpack.c.l.b16 %v648
        %v763 = vunpack.c.l.b16 %v649
        %v764 = vunpack.c.l.b16 %v650
        %v765 = vunpack.c.l.b16 %v651
        %v766 = vunpack.c.l.b16 %v652
        %v767 = vunpack.c.l.b16 %v653
        %v768 = vunpack.c.l.b16 %v654
        %v769 = vunpack.c.l.b16 %v655
        %v770 = vpack.c.b16 %v755, %v754
        %v771 = vpack.c.b16 %v757, %v756
        %v772 = vpack.c.b16 %v759, %v758
        %v773 = vpack.c.b16 %v761, %v760
        %v774 = vpack.c.b16 %v763, %v762
        %v775 = vpack.c.b16 %v765, %v764
        %v776 = vpack.c.b16 %v767, %v766
        %v777 = vpack.c.b16 %v769, %v768
        %786 = vmatprep.subr.bf16.mxu0 0
        %787 = vmatpush1.bf16.msra.mxu0 %v777
        %788 = vmatprep.subr.bf16.mxu0 0
        %789 = vmatpush1.bf16.msra.mxu0 %v776
        %790 = vmatprep.subr.bf16.mxu0 0
        %791 = vmatpush1.bf16.msra.mxu0 %v775
        %792 = vmatprep.subr.bf16.mxu0 0
        %793 = vmatpush1.bf16.msra.mxu0 %v774
        %794 = vmatprep.subr.bf16.mxu0 0
        %795 = vmatpush1.bf16.msra.mxu0 %v773
        %796 = vmatprep.subr.bf16.mxu0 0
        %797 = vmatpush1.bf16.msra.mxu0 %v772
        %798 = vmatprep.subr.bf16.mxu0 0
        %799 = vmatpush1.bf16.msra.mxu0 %v771
        %800 = vmatprep.subr.bf16.mxu0 0
        %801 = vmatpush1.bf16.msra.mxu0 %v770
        %802 = vmatprep.subr.bf16.mxu0 0
        %803 = vmatpush2.bf16.msra.mxu0 0
        %804 = vmatprep.subr.bf16.mxu0 0
        %805 = vmatpush2.bf16.msra.mxu0 0
        %806 = vmatprep.subr.bf16.mxu0 0
        %807 = vmatpush2.bf16.msra.mxu0 0
        %808 = vmatprep.subr.bf16.mxu0 0
        %809 = vmatpush2.bf16.msra.mxu0 0
        %810 = vmatprep.subr.bf16.mxu0 0
        %811 = vmatpush2.bf16.msra.mxu0 0
        %812 = vmatprep.subr.bf16.mxu0 0
        %813 = vmatpush2.bf16.msra.mxu0 0
        %814 = vmatprep.subr.bf16.mxu0 0
        %815 = vmatpush2.bf16.msra.mxu0 0
        %816 = vmatprep.subr.bf16.mxu0 0
        %817 = vmatpush2.bf16.msra.mxu0 0
        %818 = vmatprep.mubr.bf16.mxu0 0
        %819 = vmatmul.mubr.bf16.gmra.mxu0 %v712
        %v820 = vpop.f32.mrf.mxu0
        %v821 = vadd.f32 %v660, %v820
        %v822 = vpop.f32.mrf.mxu0
        %v823 = vpop.f32.mrf.mxu0
        %v824 = vadd.f32 %v660, %v823
        %v825 = vpop.f32.mrf.mxu0
        %826 = vmatprep.mubr.bf16.mxu0 0
        %827 = vmatmul.mubr.bf16.gmra.mxu0 %v713
        %v828 = vpop.f32.mrf.mxu0
        %v829 = vadd.f32 %v660, %v828
        %v830 = vpop.f32.mrf.mxu0
        %v831 = vpop.f32.mrf.mxu0
        %v832 = vadd.f32 %v660, %v831
        %v833 = vpop.f32.mrf.mxu0
        %834 = vmatprep.mubr.bf16.mxu0 0
        %835 = vmatmul.mubr.bf16.gmra.mxu0 %v714
        %v836 = vpop.f32.mrf.mxu0
        %v837 = vadd.f32 %v660, %v836
        %v838 = vpop.f32.mrf.mxu0
        %v839 = vpop.f32.mrf.mxu0
        %v840 = vadd.f32 %v660, %v839
        %v841 = vpop.f32.mrf.mxu0
        %842 = vmatprep.mubr.bf16.mxu0 0
        %843 = vmatmul.mubr.bf16.gmra.mxu0 %v715
        %v844 = vpop.f32.mrf.mxu0
        %v845 = vadd.f32 %v660, %v844
        %v846 = vpop.f32.mrf.mxu0
        %v847 = vpop.f32.mrf.mxu0
        %v848 = vadd.f32 %v660, %v847
        %v849 = vpop.f32.mrf.mxu0
        %850 = vmatprep.mubr.bf16.mxu0 0
        %851 = vmatmul.mubr.bf16.gmra.mxu0 %v716
        %v852 = vpop.f32.mrf.mxu0
        %v853 = vadd.f32 %v660, %v852
        %v854 = vpop.f32.mrf.mxu0
        %v855 = vpop.f32.mrf.mxu0
        %v856 = vadd.f32 %v660, %v855
        %v857 = vpop.f32.mrf.mxu0
        %858 = vmatprep.mubr.bf16.mxu0 0
        %859 = vmatmul.mubr.bf16.gmra.mxu0 %v717
        %v860 = vpop.f32.mrf.mxu0
        %v861 = vadd.f32 %v660, %v860
        %v862 = vpop.f32.mrf.mxu0
        %v863 = vpop.f32.mrf.mxu0
        %v864 = vadd.f32 %v660, %v863
        %v865 = vpop.f32.mrf.mxu0
        %866 = vmatprep.mubr.bf16.mxu0 0
        %867 = vmatmul.mubr.bf16.gmra.mxu0 %v718
        %v868 = vpop.f32.mrf.mxu0
        %v869 = vadd.f32 %v660, %v868
        %v870 = vpop.f32.mrf.mxu0
        %v871 = vpop.f32.mrf.mxu0
        %v872 = vadd.f32 %v660, %v871
        %v873 = vpop.f32.mrf.mxu0
        %874 = vmatprep.mubr.bf16.mxu0 0
        %875 = vmatmul.mubr.bf16.gmra.mxu0 %v719
        %v876 = vpop.f32.mrf.mxu0
        %v877 = vadd.f32 %v660, %v876
        %v878 = vpop.f32.mrf.mxu0
        %v879 = vpop.f32.mrf.mxu0
        %v880 = vadd.f32 %v660, %v879
        %v881 = vpop.f32.mrf.mxu0
        %882 = vmatprep.mubr.bf16.mxu0 0
        %883 = vmatmul.mubr.bf16.gmra.mxu0 %v720
        %v884 = vpop.f32.mrf.mxu0
        %v885 = vadd.f32 %v660, %v884
        %v886 = vpop.f32.mrf.mxu0
        %v887 = vpop.f32.mrf.mxu0
        %v888 = vadd.f32 %v660, %v887
        %v889 = vpop.f32.mrf.mxu0
        %890 = vmatprep.mubr.bf16.mxu0 0
        %891 = vmatmul.mubr.bf16.gmra.mxu0 %v721
        %v892 = vpop.f32.mrf.mxu0
        %v893 = vadd.f32 %v660, %v892
        %v894 = vpop.f32.mrf.mxu0
        %v895 = vpop.f32.mrf.mxu0
        %v896 = vadd.f32 %v660, %v895
        %v897 = vpop.f32.mrf.mxu0
        %898 = vmatprep.mubr.bf16.mxu0 0
        %899 = vmatmul.mubr.bf16.gmra.mxu0 %v722
        %v900 = vpop.f32.mrf.mxu0
        %v901 = vadd.f32 %v660, %v900
        %v902 = vpop.f32.mrf.mxu0
        %v903 = vpop.f32.mrf.mxu0
        %v904 = vadd.f32 %v660, %v903
        %v905 = vpop.f32.mrf.mxu0
        %906 = vmatprep.mubr.bf16.mxu0 0
        %907 = vmatmul.mubr.bf16.gmra.mxu0 %v723
        %v908 = vpop.f32.mrf.mxu0
        %v909 = vadd.f32 %v660, %v908
        %v910 = vpop.f32.mrf.mxu0
        %v911 = vpop.f32.mrf.mxu0
        %v912 = vadd.f32 %v660, %v911
        %v913 = vpop.f32.mrf.mxu0
        %914 = vmatprep.mubr.bf16.mxu0 0
        %915 = vmatmul.mubr.bf16.gmra.mxu0 %v724
        %v916 = vpop.f32.mrf.mxu0
        %v917 = vadd.f32 %v660, %v916
        %v918 = vpop.f32.mrf.mxu0
        %v919 = vpop.f32.mrf.mxu0
        %v920 = vpop.f32.mrf.mxu0
        %921 = vdwg.mxu0
        %v922 = vmax.f32 %v821, 0.0
        %v923 = vmax.f32 %v824, 0.0
        %v924 = vmax.f32 %v829, 0.0
        %v925 = vmax.f32 %v832, 0.0
        %v926 = vmax.f32 %v837, 0.0
        %v927 = vmax.f32 %v840, 0.0
        %v928 = vmax.f32 %v845, 0.0
        %v929 = vmax.f32 %v848, 0.0
        %v930 = vmax.f32 %v853, 0.0
        %v931 = vmax.f32 %v856, 0.0
        %v932 = vmax.f32 %v861, 0.0
        %v933 = vmax.f32 %v864, 0.0
        %v934 = vmax.f32 %v869, 0.0
        %v935 = vmax.f32 %v872, 0.0
        %v936 = vmax.f32 %v877, 0.0
        %v937 = vmax.f32 %v880, 0.0
        %v938 = vmax.f32 %v885, 0.0
        %v939 = vmax.f32 %v888, 0.0
        %v940 = vmax.f32 %v893, 0.0
        %v941 = vmax.f32 %v896, 0.0
        %v942 = vmax.f32 %v901, 0.0
        %v943 = vmax.f32 %v904, 0.0
        %v944 = vmax.f32 %v909, 0.0
        %v945 = vmax.f32 %v912, 0.0
        %v946 = vmax.f32 %v917, 0.0
        %s947 = scalar_lea.vmem %s585, 100 [#allocation2]
        %v948 = vld [vmem:[%s947] sm:$0xf]
        %v949 = vld [vmem:[%s947 + $0x4] sm:$0xf]
        %v950 = vld [vmem:[%s947 + $0x8] sm:$0xf]
        %v951 = vld [vmem:[%s947 + $0xc] sm:$0xf]
        %v952 = vld [vmem:[%s947 + $0x10] sm:$0xf]
        %v953 = vld [vmem:[%s947 + $0x14] sm:$0xf]
        %v954 = vld [vmem:[%s947 + $0x18] sm:$0xf]
        %v955 = vld [vmem:[%s947 + $0x1c] sm:$0xf]
        %v956 = vld [vmem:[%s947 + $0x20] sm:$0xf]
        %v957 = vld [vmem:[%s947 + $0x24] sm:$0xf]
        %v958 = vld [vmem:[%s947 + $0x28] sm:$0xf]
        %v959 = vld [vmem:[%s947 + $0x2c] sm:$0xf]
        %v960 = vld [vmem:[%s947 + $0x30] sm:$0xf]
        %v961 = vld [vmem:[%s947 + $0x34] sm:$0xf]
        %v962 = vld [vmem:[%s947 + $0x38] sm:$0xf]
        %v963 = vld [vmem:[%s947 + $0x3c] sm:$0xf]
        %v964 = vld [vmem:[%s947 + $0x40] sm:$0xf]
        %v965 = vld [vmem:[%s947 + $0x44] sm:$0xf]
        %v966 = vld [vmem:[%s947 + $0x48] sm:$0xf]
        %v967 = vld [vmem:[%s947 + $0x4c] sm:$0xf]
        %v968 = vld [vmem:[%s947 + $0x50] sm:$0xf]
        %v969 = vld [vmem:[%s947 + $0x54] sm:$0xf]
        %v970 = vld [vmem:[%s947 + $0x58] sm:$0xf]
        %v971 = vld [vmem:[%s947 + $0x5c] sm:$0xf]
        %v972 = vld [vmem:[%s947 + $0x60] sm:$0xf]
        %v998 = vunpack.c.l.b16 %v948
        %v999 = vunpack.c.l.b16 %v949
        %v1000 = vunpack.c.l.b16 %v950
        %v1001 = vunpack.c.l.b16 %v951
        %v1002 = vunpack.c.l.b16 %v952
        %v1003 = vunpack.c.l.b16 %v953
        %v1004 = vunpack.c.l.b16 %v954
        %v1005 = vunpack.c.l.b16 %v955
        %v1006 = vunpack.c.l.b16 %v956
        %v1007 = vunpack.c.l.b16 %v957
        %v1008 = vunpack.c.l.b16 %v958
        %v1009 = vunpack.c.l.b16 %v959
        %v1010 = vunpack.c.l.b16 %v960
        %v1011 = vunpack.c.l.b16 %v961
        %v1012 = vunpack.c.l.b16 %v962
        %v1013 = vunpack.c.l.b16 %v963
        %v1014 = vunpack.c.l.b16 %v964
        %v1015 = vunpack.c.l.b16 %v965
        %v1016 = vunpack.c.l.b16 %v966
        %v1017 = vunpack.c.l.b16 %v967
        %v1018 = vunpack.c.l.b16 %v968
        %v1019 = vunpack.c.l.b16 %v969
        %v1020 = vunpack.c.l.b16 %v970
        %v1021 = vunpack.c.l.b16 %v971
        %v1022 = vunpack.c.l.b16 %v972
        %v1023 = vpack.c.b16 %v999, %v998
        %v1024 = vpack.c.b16 %v1001, %v1000
        %v1025 = vpack.c.b16 %v1003, %v1002
        %v1026 = vpack.c.b16 %v1005, %v1004
        %v1027 = vpack.c.b16 %v1007, %v1006
        %v1028 = vpack.c.b16 %v1009, %v1008
        %v1029 = vpack.c.b16 %v1011, %v1010
        %v1030 = vpack.c.b16 %v1013, %v1012
        %v1031 = vpack.c.b16 %v1015, %v1014
        %v1032 = vpack.c.b16 %v1017, %v1016
        %v1033 = vpack.c.b16 %v1019, %v1018
        %v1034 = vpack.c.b16 %v1021, %v1020
        %v1035 = vpack.c.b16 %v1022, %v1022
        %1049 = vmatprep.subr.bf16.mxu0 0
        %1050 = vmatpush1.bf16.msra.mxu0 %v777
        %1051 = vmatprep.subr.bf16.mxu0 0
        %1052 = vmatpush1.bf16.msra.mxu0 %v776
        %1053 = vmatprep.subr.bf16.mxu0 0
        %1054 = vmatpush1.bf16.msra.mxu0 %v775
        %1055 = vmatprep.subr.bf16.mxu0 0
        %1056 = vmatpush1.bf16.msra.mxu0 %v774
        %1057 = vmatprep.subr.bf16.mxu0 0
        %1058 = vmatpush1.bf16.msra.mxu0 %v773
        %1059 = vmatprep.subr.bf16.mxu0 0
        %1060 = vmatpush1.bf16.msra.mxu0 %v772
        %1061 = vmatprep.subr.bf16.mxu0 0
        %1062 = vmatpush1.bf16.msra.mxu0 %v771
        %1063 = vmatprep.subr.bf16.mxu0 0
        %1064 = vmatpush1.bf16.msra.mxu0 %v770
        %1065 = vmatprep.subr.bf16.mxu0 0
        %1066 = vmatpush2.bf16.msra.mxu0 0
        %1067 = vmatprep.subr.bf16.mxu0 0
        %1068 = vmatpush2.bf16.msra.mxu0 0
        %1069 = vmatprep.subr.bf16.mxu0 0
        %1070 = vmatpush2.bf16.msra.mxu0 0
        %1071 = vmatprep.subr.bf16.mxu0 0
        %1072 = vmatpush2.bf16.msra.mxu0 0
        %1073 = vmatprep.subr.bf16.mxu0 0
        %1074 = vmatpush2.bf16.msra.mxu0 0
        %1075 = vmatprep.subr.bf16.mxu0 0
        %1076 = vmatpush2.bf16.msra.mxu0 0
        %1077 = vmatprep.subr.bf16.mxu0 0
        %1078 = vmatpush2.bf16.msra.mxu0 0
        %1079 = vmatprep.subr.bf16.mxu0 0
        %1080 = vmatpush2.bf16.msra.mxu0 0
        %1081 = vmatprep.mubr.bf16.mxu0 0
        %1082 = vmatmul.mubr.bf16.gmra.mxu0 %v1023
        %v1083 = vpop.f32.mrf.mxu0
        %v1084 = vadd.f32 %v660, %v1083
        %v1085 = vpop.f32.mrf.mxu0
        %v1086 = vpop.f32.mrf.mxu0
        %v1087 = vadd.f32 %v660, %v1086
        %v1088 = vpop.f32.mrf.mxu0
        %1089 = vmatprep.mubr.bf16.mxu0 0
        %1090 = vmatmul.mubr.bf16.gmra.mxu0 %v1024
        %v1091 = vpop.f32.mrf.mxu0
        %v1092 = vadd.f32 %v660, %v1091
        %v1093 = vpop.f32.mrf.mxu0
        %v1094 = vpop.f32.mrf.mxu0
        %v1095 = vadd.f32 %v660, %v1094
        %v1096 = vpop.f32.mrf.mxu0
        %1097 = vmatprep.mubr.bf16.mxu0 0
        %1098 = vmatmul.mubr.bf16.gmra.mxu0 %v1025
        %v1099 = vpop.f32.mrf.mxu0
        %v1100 = vadd.f32 %v660, %v1099
        %v1101 = vpop.f32.mrf.mxu0
        %v1102 = vpop.f32.mrf.mxu0
        %v1103 = vadd.f32 %v660, %v1102
        %v1104 = vpop.f32.mrf.mxu0
        %1105 = vmatprep.mubr.bf16.mxu0 0
        %1106 = vmatmul.mubr.bf16.gmra.mxu0 %v1026
        %v1107 = vpop.f32.mrf.mxu0
        %v1108 = vadd.f32 %v660, %v1107
        %v1109 = vpop.f32.mrf.mxu0
        %v1110 = vpop.f32.mrf.mxu0
        %v1111 = vadd.f32 %v660, %v1110
        %v1112 = vpop.f32.mrf.mxu0
        %1113 = vmatprep.mubr.bf16.mxu0 0
        %1114 = vmatmul.mubr.bf16.gmra.mxu0 %v1027
        %v1115 = vpop.f32.mrf.mxu0
        %v1116 = vadd.f32 %v660, %v1115
        %v1117 = vpop.f32.mrf.mxu0
        %v1118 = vpop.f32.mrf.mxu0
        %v1119 = vadd.f32 %v660, %v1118
        %v1120 = vpop.f32.mrf.mxu0
        %1121 = vmatprep.mubr.bf16.mxu0 0
        %1122 = vmatmul.mubr.bf16.gmra.mxu0 %v1028
        %v1123 = vpop.f32.mrf.mxu0
        %v1124 = vadd.f32 %v660, %v1123
        %v1125 = vpop.f32.mrf.mxu0
        %v1126 = vpop.f32.mrf.mxu0
        %v1127 = vadd.f32 %v660, %v1126
        %v1128 = vpop.f32.mrf.mxu0
        %1129 = vmatprep.mubr.bf16.mxu0 0
        %1130 = vmatmul.mubr.bf16.gmra.mxu0 %v1029
        %v1131 = vpop.f32.mrf.mxu0
        %v1132 = vadd.f32 %v660, %v1131
        %v1133 = vpop.f32.mrf.mxu0
        %v1134 = vpop.f32.mrf.mxu0
        %v1135 = vadd.f32 %v660, %v1134
        %v1136 = vpop.f32.mrf.mxu0
        %1137 = vmatprep.mubr.bf16.mxu0 0
        %1138 = vmatmul.mubr.bf16.gmra.mxu0 %v1030
        %v1139 = vpop.f32.mrf.mxu0
        %v1140 = vadd.f32 %v660, %v1139
        %v1141 = vpop.f32.mrf.mxu0
        %v1142 = vpop.f32.mrf.mxu0
        %v1143 = vadd.f32 %v660, %v1142
        %v1144 = vpop.f32.mrf.mxu0
        %1145 = vmatprep.mubr.bf16.mxu0 0
        %1146 = vmatmul.mubr.bf16.gmra.mxu0 %v1031
        %v1147 = vpop.f32.mrf.mxu0
        %v1148 = vadd.f32 %v660, %v1147
        %v1149 = vpop.f32.mrf.mxu0
        %v1150 = vpop.f32.mrf.mxu0
        %v1151 = vadd.f32 %v660, %v1150
        %v1152 = vpop.f32.mrf.mxu0
        %1153 = vmatprep.mubr.bf16.mxu0 0
        %1154 = vmatmul.mubr.bf16.gmra.mxu0 %v1032
        %v1155 = vpop.f32.mrf.mxu0
        %v1156 = vadd.f32 %v660, %v1155
        %v1157 = vpop.f32.mrf.mxu0
        %v1158 = vpop.f32.mrf.mxu0
        %v1159 = vadd.f32 %v660, %v1158
        %v1160 = vpop.f32.mrf.mxu0
        %1161 = vmatprep.mubr.bf16.mxu0 0
        %1162 = vmatmul.mubr.bf16.gmra.mxu0 %v1033
        %v1163 = vpop.f32.mrf.mxu0
        %v1164 = vadd.f32 %v660, %v1163
        %v1165 = vpop.f32.mrf.mxu0
        %v1166 = vpop.f32.mrf.mxu0
        %v1167 = vadd.f32 %v660, %v1166
        %v1168 = vpop.f32.mrf.mxu0
        %1169 = vmatprep.mubr.bf16.mxu0 0
        %1170 = vmatmul.mubr.bf16.gmra.mxu0 %v1034
        %v1171 = vpop.f32.mrf.mxu0
        %v1172 = vadd.f32 %v660, %v1171
        %v1173 = vpop.f32.mrf.mxu0
        %v1174 = vpop.f32.mrf.mxu0
        %v1175 = vadd.f32 %v660, %v1174
        %v1176 = vpop.f32.mrf.mxu0
        %1177 = vmatprep.mubr.bf16.mxu0 0
        %1178 = vmatmul.mubr.bf16.gmra.mxu0 %v1035
        %v1179 = vpop.f32.mrf.mxu0
        %v1180 = vadd.f32 %v660, %v1179
        %v1181 = vpop.f32.mrf.mxu0
        %v1182 = vpop.f32.mrf.mxu0
        %v1183 = vpop.f32.mrf.mxu0
        %1184 = vdwg.mxu0
        %v1185 = vmax.f32 %v1084, 0.0
        %v1186 = vmax.f32 %v1087, 0.0
        %v1187 = vmax.f32 %v1092, 0.0
        %v1188 = vmax.f32 %v1095, 0.0
        %v1189 = vmax.f32 %v1100, 0.0
        %v1190 = vmax.f32 %v1103, 0.0
        %v1191 = vmax.f32 %v1108, 0.0
        %v1192 = vmax.f32 %v1111, 0.0
        %v1193 = vmax.f32 %v1116, 0.0
        %v1194 = vmax.f32 %v1119, 0.0
        %v1195 = vmax.f32 %v1124, 0.0
        %v1196 = vmax.f32 %v1127, 0.0
        %v1197 = vmax.f32 %v1132, 0.0
        %v1198 = vmax.f32 %v1135, 0.0
        %v1199 = vmax.f32 %v1140, 0.0
        %v1200 = vmax.f32 %v1143, 0.0
        %v1201 = vmax.f32 %v1148, 0.0
        %v1202 = vmax.f32 %v1151, 0.0
        %v1203 = vmax.f32 %v1156, 0.0
        %v1204 = vmax.f32 %v1159, 0.0
        %v1205 = vmax.f32 %v1164, 0.0
        %v1206 = vmax.f32 %v1167, 0.0
        %v1207 = vmax.f32 %v1172, 0.0
        %v1208 = vmax.f32 %v1175, 0.0
        %v1209 = vmax.f32 %v1180, 0.0
        %v1210 = vadd.f32 %v922, %v1185
        %v1211 = vadd.f32 %v923, %v1186
        %v1212 = vadd.f32 %v924, %v1187
        %v1213 = vadd.f32 %v925, %v1188
        %v1214 = vadd.f32 %v926, %v1189
        %v1215 = vadd.f32 %v927, %v1190
        %v1216 = vadd.f32 %v928, %v1191
        %v1217 = vadd.f32 %v929, %v1192
        %v1218 = vadd.f32 %v930, %v1193
        %v1219 = vadd.f32 %v931, %v1194
        %v1220 = vadd.f32 %v932, %v1195
        %v1221 = vadd.f32 %v933, %v1196
        %v1222 = vadd.f32 %v934, %v1197
        %v1223 = vadd.f32 %v935, %v1198
        %v1224 = vadd.f32 %v936, %v1199
        %v1225 = vadd.f32 %v937, %v1200
        %v1226 = vadd.f32 %v938, %v1201
        %v1227 = vadd.f32 %v939, %v1202
        %v1228 = vadd.f32 %v940, %v1203
        %v1229 = vadd.f32 %v941, %v1204
        %v1230 = vadd.f32 %v942, %v1205
        %v1231 = vadd.f32 %v943, %v1206
        %v1232 = vadd.f32 %v944, %v1207
        %v1233 = vadd.f32 %v945, %v1208
        %v1234 = vadd.f32 %v946, %v1209
        %s1235 = scalar_lea.vmem %s585, 200 [#allocation2]
        %v1236 = vld [vmem:[%s1235] sm:$0xf]
        %v1237 = vld [vmem:[%s1235 + $0x4] sm:$0xf]
        %v1238 = vld [vmem:[%s1235 + $0x8] sm:$0xf]
        %v1239 = vld [vmem:[%s1235 + $0xc] sm:$0xf]
        %v1240 = vld [vmem:[%s1235 + $0x10] sm:$0xf]
        %v1241 = vld [vmem:[%s1235 + $0x14] sm:$0xf]
        %v1242 = vld [vmem:[%s1235 + $0x18] sm:$0xf]
        %v1243 = vld [vmem:[%s1235 + $0x1c] sm:$0xf]
        %v1244 = vld [vmem:[%s1235 + $0x20] sm:$0xf]
        %v1245 = vld [vmem:[%s1235 + $0x24] sm:$0xf]
        %v1246 = vld [vmem:[%s1235 + $0x28] sm:$0xf]
        %v1247 = vld [vmem:[%s1235 + $0x2c] sm:$0xf]
        %v1248 = vld [vmem:[%s1235 + $0x30] sm:$0xf]
        %v1249 = vld [vmem:[%s1235 + $0x34] sm:$0xf]
        %v1250 = vld [vmem:[%s1235 + $0x38] sm:$0xf]
        %v1251 = vld [vmem:[%s1235 + $0x3c] sm:$0xf]
        %v1252 = vld [vmem:[%s1235 + $0x40] sm:$0xf]
        %v1253 = vld [vmem:[%s1235 + $0x44] sm:$0xf]
        %v1254 = vld [vmem:[%s1235 + $0x48] sm:$0xf]
        %v1255 = vld [vmem:[%s1235 + $0x4c] sm:$0xf]
        %v1256 = vld [vmem:[%s1235 + $0x50] sm:$0xf]
        %v1257 = vld [vmem:[%s1235 + $0x54] sm:$0xf]
        %v1258 = vld [vmem:[%s1235 + $0x58] sm:$0xf]
        %v1259 = vld [vmem:[%s1235 + $0x5c] sm:$0xf]
        %v1260 = vld [vmem:[%s1235 + $0x60] sm:$0xf]
        %v1286 = vunpack.c.l.b16 %v1236
        %v1287 = vunpack.c.l.b16 %v1237
        %v1288 = vunpack.c.l.b16 %v1238
        %v1289 = vunpack.c.l.b16 %v1239
        %v1290 = vunpack.c.l.b16 %v1240
        %v1291 = vunpack.c.l.b16 %v1241
        %v1292 = vunpack.c.l.b16 %v1242
        %v1293 = vunpack.c.l.b16 %v1243
        %v1294 = vunpack.c.l.b16 %v1244
        %v1295 = vunpack.c.l.b16 %v1245
        %v1296 = vunpack.c.l.b16 %v1246
        %v1297 = vunpack.c.l.b16 %v1247
        %v1298 = vunpack.c.l.b16 %v1248
        %v1299 = vunpack.c.l.b16 %v1249
        %v1300 = vunpack.c.l.b16 %v1250
        %v1301 = vunpack.c.l.b16 %v1251
        %v1302 = vunpack.c.l.b16 %v1252
        %v1303 = vunpack.c.l.b16 %v1253
        %v1304 = vunpack.c.l.b16 %v1254
        %v1305 = vunpack.c.l.b16 %v1255
        %v1306 = vunpack.c.l.b16 %v1256
        %v1307 = vunpack.c.l.b16 %v1257
        %v1308 = vunpack.c.l.b16 %v1258
        %v1309 = vunpack.c.l.b16 %v1259
        %v1310 = vunpack.c.l.b16 %v1260
        %v1311 = vpack.c.b16 %v1287, %v1286
        %v1312 = vpack.c.b16 %v1289, %v1288
        %v1313 = vpack.c.b16 %v1291, %v1290
        %v1314 = vpack.c.b16 %v1293, %v1292
        %v1315 = vpack.c.b16 %v1295, %v1294
        %v1316 = vpack.c.b16 %v1297, %v1296
        %v1317 = vpack.c.b16 %v1299, %v1298
        %v1318 = vpack.c.b16 %v1301, %v1300
        %v1319 = vpack.c.b16 %v1303, %v1302
        %v1320 = vpack.c.b16 %v1305, %v1304
        %v1321 = vpack.c.b16 %v1307, %v1306
        %v1322 = vpack.c.b16 %v1309, %v1308
        %v1323 = vpack.c.b16 %v1310, %v1310
        %1337 = vmatprep.subr.bf16.mxu0 0
        %1338 = vmatpush1.bf16.msra.mxu0 %v777
        %1339 = vmatprep.subr.bf16.mxu0 0
        %1340 = vmatpush1.bf16.msra.mxu0 %v776
        %1341 = vmatprep.subr.bf16.mxu0 0
        %1342 = vmatpush1.bf16.msra.mxu0 %v775
        %1343 = vmatprep.subr.bf16.mxu0 0
        %1344 = vmatpush1.bf16.msra.mxu0 %v774
        %1345 = vmatprep.subr.bf16.mxu0 0
        %1346 = vmatpush1.bf16.msra.mxu0 %v773
        %1347 = vmatprep.subr.bf16.mxu0 0
        %1348 = vmatpush1.bf16.msra.mxu0 %v772
        %1349 = vmatprep.subr.bf16.mxu0 0
        %1350 = vmatpush1.bf16.msra.mxu0 %v771
        %1351 = vmatprep.subr.bf16.mxu0 0
        %1352 = vmatpush1.bf16.msra.mxu0 %v770
        %1353 = vmatprep.subr.bf16.mxu0 0
        %1354 = vmatpush2.bf16.msra.mxu0 0
        %1355 = vmatprep.subr.bf16.mxu0 0
        %1356 = vmatpush2.bf16.msra.mxu0 0
        %1357 = vmatprep.subr.bf16.mxu0 0
        %1358 = vmatpush2.bf16.msra.mxu0 0
        %1359 = vmatprep.subr.bf16.mxu0 0
        %1360 = vmatpush2.bf16.msra.mxu0 0
        %1361 = vmatprep.subr.bf16.mxu0 0
        %1362 = vmatpush2.bf16.msra.mxu0 0
        %1363 = vmatprep.subr.bf16.mxu0 0
        %1364 = vmatpush2.bf16.msra.mxu0 0
        %1365 = vmatprep.subr.bf16.mxu0 0
        %1366 = vmatpush2.bf16.msra.mxu0 0
        %1367 = vmatprep.subr.bf16.mxu0 0
        %1368 = vmatpush2.bf16.msra.mxu0 0
        %1369 = vmatprep.mubr.bf16.mxu0 0
        %1370 = vmatmul.mubr.bf16.gmra.mxu0 %v1311
        %v1371 = vpop.f32.mrf.mxu0
        %v1372 = vadd.f32 %v660, %v1371
        %v1373 = vpop.f32.mrf.mxu0
        %v1374 = vpop.f32.mrf.mxu0
        %v1375 = vadd.f32 %v660, %v1374
        %v1376 = vpop.f32.mrf.mxu0
        %1377 = vmatprep.mubr.bf16.mxu0 0
        %1378 = vmatmul.mubr.bf16.gmra.mxu0 %v1312
        %v1379 = vpop.f32.mrf.mxu0
        %v1380 = vadd.f32 %v660, %v1379
        %v1381 = vpop.f32.mrf.mxu0
        %v1382 = vpop.f32.mrf.mxu0
        %v1383 = vadd.f32 %v660, %v1382
        %v1384 = vpop.f32.mrf.mxu0
        %1385 = vmatprep.mubr.bf16.mxu0 0
        %1386 = vmatmul.mubr.bf16.gmra.mxu0 %v1313
        %v1387 = vpop.f32.mrf.mxu0
        %v1388 = vadd.f32 %v660, %v1387
        %v1389 = vpop.f32.mrf.mxu0
        %v1390 = vpop.f32.mrf.mxu0
        %v1391 = vadd.f32 %v660, %v1390
        %v1392 = vpop.f32.mrf.mxu0
        %1393 = vmatprep.mubr.bf16.mxu0 0
        %1394 = vmatmul.mubr.bf16.gmra.mxu0 %v1314
        %v1395 = vpop.f32.mrf.mxu0
        %v1396 = vadd.f32 %v660, %v1395
        %v1397 = vpop.f32.mrf.mxu0
        %v1398 = vpop.f32.mrf.mxu0
        %v1399 = vadd.f32 %v660, %v1398
        %v1400 = vpop.f32.mrf.mxu0
        %1401 = vmatprep.mubr.bf16.mxu0 0
        %1402 = vmatmul.mubr.bf16.gmra.mxu0 %v1315
        %v1403 = vpop.f32.mrf.mxu0
        %v1404 = vadd.f32 %v660, %v1403
        %v1405 = vpop.f32.mrf.mxu0
        %v1406 = vpop.f32.mrf.mxu0
        %v1407 = vadd.f32 %v660, %v1406
        %v1408 = vpop.f32.mrf.mxu0
        %1409 = vmatprep.mubr.bf16.mxu0 0
        %1410 = vmatmul.mubr.bf16.gmra.mxu0 %v1316
        %v1411 = vpop.f32.mrf.mxu0
        %v1412 = vadd.f32 %v660, %v1411
        %v1413 = vpop.f32.mrf.mxu0
        %v1414 = vpop.f32.mrf.mxu0
        %v1415 = vadd.f32 %v660, %v1414
        %v1416 = vpop.f32.mrf.mxu0
        %1417 = vmatprep.mubr.bf16.mxu0 0
        %1418 = vmatmul.mubr.bf16.gmra.mxu0 %v1317
        %v1419 = vpop.f32.mrf.mxu0
        %v1420 = vadd.f32 %v660, %v1419
        %v1421 = vpop.f32.mrf.mxu0
        %v1422 = vpop.f32.mrf.mxu0
        %v1423 = vadd.f32 %v660, %v1422
        %v1424 = vpop.f32.mrf.mxu0
        %1425 = vmatprep.mubr.bf16.mxu0 0
        %1426 = vmatmul.mubr.bf16.gmra.mxu0 %v1318
        %v1427 = vpop.f32.mrf.mxu0
        %v1428 = vadd.f32 %v660, %v1427
        %v1429 = vpop.f32.mrf.mxu0
        %v1430 = vpop.f32.mrf.mxu0
        %v1431 = vadd.f32 %v660, %v1430
        %v1432 = vpop.f32.mrf.mxu0
        %1433 = vmatprep.mubr.bf16.mxu0 0
        %1434 = vmatmul.mubr.bf16.gmra.mxu0 %v1319
        %v1435 = vpop.f32.mrf.mxu0
        %v1436 = vadd.f32 %v660, %v1435
        %v1437 = vpop.f32.mrf.mxu0
        %v1438 = vpop.f32.mrf.mxu0
        %v1439 = vadd.f32 %v660, %v1438
        %v1440 = vpop.f32.mrf.mxu0
        %1441 = vmatprep.mubr.bf16.mxu0 0
        %1442 = vmatmul.mubr.bf16.gmra.mxu0 %v1320
        %v1443 = vpop.f32.mrf.mxu0
        %v1444 = vadd.f32 %v660, %v1443
        %v1445 = vpop.f32.mrf.mxu0
        %v1446 = vpop.f32.mrf.mxu0
        %v1447 = vadd.f32 %v660, %v1446
        %v1448 = vpop.f32.mrf.mxu0
        %1449 = vmatprep.mubr.bf16.mxu0 0
        %1450 = vmatmul.mubr.bf16.gmra.mxu0 %v1321
        %v1451 = vpop.f32.mrf.mxu0
        %v1452 = vadd.f32 %v660, %v1451
        %v1453 = vpop.f32.mrf.mxu0
        %v1454 = vpop.f32.mrf.mxu0
        %v1455 = vadd.f32 %v660, %v1454
        %v1456 = vpop.f32.mrf.mxu0
        %1457 = vmatprep.mubr.bf16.mxu0 0
        %1458 = vmatmul.mubr.bf16.gmra.mxu0 %v1322
        %v1459 = vpop.f32.mrf.mxu0
        %v1460 = vadd.f32 %v660, %v1459
        %v1461 = vpop.f32.mrf.mxu0
        %v1462 = vpop.f32.mrf.mxu0
        %v1463 = vadd.f32 %v660, %v1462
        %v1464 = vpop.f32.mrf.mxu0
        %1465 = vmatprep.mubr.bf16.mxu0 0
        %1466 = vmatmul.mubr.bf16.gmra.mxu0 %v1323
        %v1467 = vpop.f32.mrf.mxu0
        %v1468 = vadd.f32 %v660, %v1467
        %v1469 = vpop.f32.mrf.mxu0
        %v1470 = vpop.f32.mrf.mxu0
        %v1471 = vpop.f32.mrf.mxu0
        %1472 = vdwg.mxu0
        %v1473 = vmax.f32 %v1372, 0.0
        %v1474 = vmax.f32 %v1375, 0.0
        %v1475 = vmax.f32 %v1380, 0.0
        %v1476 = vmax.f32 %v1383, 0.0
        %v1477 = vmax.f32 %v1388, 0.0
        %v1478 = vmax.f32 %v1391, 0.0
        %v1479 = vmax.f32 %v1396, 0.0
        %v1480 = vmax.f32 %v1399, 0.0
        %v1481 = vmax.f32 %v1404, 0.0
        %v1482 = vmax.f32 %v1407, 0.0
        %v1483 = vmax.f32 %v1412, 0.0
        %v1484 = vmax.f32 %v1415, 0.0
        %v1485 = vmax.f32 %v1420, 0.0
        %v1486 = vmax.f32 %v1423, 0.0
        %v1487 = vmax.f32 %v1428, 0.0
        %v1488 = vmax.f32 %v1431, 0.0
        %v1489 = vmax.f32 %v1436, 0.0
        %v1490 = vmax.f32 %v1439, 0.0
        %v1491 = vmax.f32 %v1444, 0.0
        %v1492 = vmax.f32 %v1447, 0.0
        %v1493 = vmax.f32 %v1452, 0.0
        %v1494 = vmax.f32 %v1455, 0.0
        %v1495 = vmax.f32 %v1460, 0.0
        %v1496 = vmax.f32 %v1463, 0.0
        %v1497 = vmax.f32 %v1468, 0.0
        %v1498 = vadd.f32 %v1210, %v1473
        %v1499 = vadd.f32 %v1211, %v1474
        %v1500 = vadd.f32 %v1212, %v1475
        %v1501 = vadd.f32 %v1213, %v1476
        %v1502 = vadd.f32 %v1214, %v1477
        %v1503 = vadd.f32 %v1215, %v1478
        %v1504 = vadd.f32 %v1216, %v1479
        %v1505 = vadd.f32 %v1217, %v1480
        %v1506 = vadd.f32 %v1218, %v1481
        %v1507 = vadd.f32 %v1219, %v1482
        %v1508 = vadd.f32 %v1220, %v1483
        %v1509 = vadd.f32 %v1221, %v1484
        %v1510 = vadd.f32 %v1222, %v1485
        %v1511 = vadd.f32 %v1223, %v1486
        %v1512 = vadd.f32 %v1224, %v1487
        %v1513 = vadd.f32 %v1225, %v1488
        %v1514 = vadd.f32 %v1226, %v1489
        %v1515 = vadd.f32 %v1227, %v1490
        %v1516 = vadd.f32 %v1228, %v1491
        %v1517 = vadd.f32 %v1229, %v1492
        %v1518 = vadd.f32 %v1230, %v1493
        %v1519 = vadd.f32 %v1231, %v1494
        %v1520 = vadd.f32 %v1232, %v1495
        %v1521 = vadd.f32 %v1233, %v1496
        %v1522 = vadd.f32 %v1234, %v1497
        %s1523 = scalar_lea.vmem %s585, 300 [#allocation2]
        %v1524 = vld [vmem:[%s1523] sm:$0xf]
        %v1525 = vld [vmem:[%s1523 + $0x4] sm:$0xf]
        %v1526 = vld [vmem:[%s1523 + $0x8] sm:$0xf]
        %v1527 = vld [vmem:[%s1523 + $0xc] sm:$0xf]
        %v1528 = vld [vmem:[%s1523 + $0x10] sm:$0xf]
        %v1529 = vld [vmem:[%s1523 + $0x14] sm:$0xf]
        %v1530 = vld [vmem:[%s1523 + $0x18] sm:$0xf]
        %v1531 = vld [vmem:[%s1523 + $0x1c] sm:$0xf]
        %v1532 = vld [vmem:[%s1523 + $0x20] sm:$0xf]
        %v1533 = vld [vmem:[%s1523 + $0x24] sm:$0xf]
        %v1534 = vld [vmem:[%s1523 + $0x28] sm:$0xf]
        %v1535 = vld [vmem:[%s1523 + $0x2c] sm:$0xf]
        %v1536 = vld [vmem:[%s1523 + $0x30] sm:$0xf]
        %v1537 = vld [vmem:[%s1523 + $0x34] sm:$0xf]
        %v1538 = vld [vmem:[%s1523 + $0x38] sm:$0xf]
        %v1539 = vld [vmem:[%s1523 + $0x3c] sm:$0xf]
        %v1540 = vld [vmem:[%s1523 + $0x40] sm:$0xf]
        %v1541 = vld [vmem:[%s1523 + $0x44] sm:$0xf]
        %v1542 = vld [vmem:[%s1523 + $0x48] sm:$0xf]
        %v1543 = vld [vmem:[%s1523 + $0x4c] sm:$0xf]
        %v1544 = vld [vmem:[%s1523 + $0x50] sm:$0xf]
        %v1545 = vld [vmem:[%s1523 + $0x54] sm:$0xf]
        %v1546 = vld [vmem:[%s1523 + $0x58] sm:$0xf]
        %v1547 = vld [vmem:[%s1523 + $0x5c] sm:$0xf]
        %v1548 = vld [vmem:[%s1523 + $0x60] sm:$0xf]
        %v1574 = vunpack.c.l.b16 %v1524
        %v1575 = vunpack.c.l.b16 %v1525
        %v1576 = vunpack.c.l.b16 %v1526
        %v1577 = vunpack.c.l.b16 %v1527
        %v1578 = vunpack.c.l.b16 %v1528
        %v1579 = vunpack.c.l.b16 %v1529
        %v1580 = vunpack.c.l.b16 %v1530
        %v1581 = vunpack.c.l.b16 %v1531
        %v1582 = vunpack.c.l.b16 %v1532
        %v1583 = vunpack.c.l.b16 %v1533
        %v1584 = vunpack.c.l.b16 %v1534
        %v1585 = vunpack.c.l.b16 %v1535
        %v1586 = vunpack.c.l.b16 %v1536
        %v1587 = vunpack.c.l.b16 %v1537
        %v1588 = vunpack.c.l.b16 %v1538
        %v1589 = vunpack.c.l.b16 %v1539
        %v1590 = vunpack.c.l.b16 %v1540
        %v1591 = vunpack.c.l.b16 %v1541
        %v1592 = vunpack.c.l.b16 %v1542
        %v1593 = vunpack.c.l.b16 %v1543
        %v1594 = vunpack.c.l.b16 %v1544
        %v1595 = vunpack.c.l.b16 %v1545
        %v1596 = vunpack.c.l.b16 %v1546
        %v1597 = vunpack.c.l.b16 %v1547
        %v1598 = vunpack.c.l.b16 %v1548
        %v1599 = vpack.c.b16 %v1575, %v1574
        %v1600 = vpack.c.b16 %v1577, %v1576
        %v1601 = vpack.c.b16 %v1579, %v1578
        %v1602 = vpack.c.b16 %v1581, %v1580
        %v1603 = vpack.c.b16 %v1583, %v1582
        %v1604 = vpack.c.b16 %v1585, %v1584
        %v1605 = vpack.c.b16 %v1587, %v1586
        %v1606 = vpack.c.b16 %v1589, %v1588
        %v1607 = vpack.c.b16 %v1591, %v1590
        %v1608 = vpack.c.b16 %v1593, %v1592
        %v1609 = vpack.c.b16 %v1595, %v1594
        %v1610 = vpack.c.b16 %v1597, %v1596
        %v1611 = vpack.c.b16 %v1598, %v1598
        %1625 = vmatprep.subr.bf16.mxu0 0
        %1626 = vmatpush1.bf16.msra.mxu0 %v777
        %1627 = vmatprep.subr.bf16.mxu0 0
        %1628 = vmatpush1.bf16.msra.mxu0 %v776
        %1629 = vmatprep.subr.bf16.mxu0 0
        %1630 = vmatpush1.bf16.msra.mxu0 %v775
        %1631 = vmatprep.subr.bf16.mxu0 0
        %1632 = vmatpush1.bf16.msra.mxu0 %v774
        %1633 = vmatprep.subr.bf16.mxu0 0
        %1634 = vmatpush1.bf16.msra.mxu0 %v773
        %1635 = vmatprep.subr.bf16.mxu0 0
        %1636 = vmatpush1.bf16.msra.mxu0 %v772
        %1637 = vmatprep.subr.bf16.mxu0 0
        %1638 = vmatpush1.bf16.msra.mxu0 %v771
        %1639 = vmatprep.subr.bf16.mxu0 0
        %1640 = vmatpush1.bf16.msra.mxu0 %v770
        %1641 = vmatprep.subr.bf16.mxu0 0
        %1642 = vmatpush2.bf16.msra.mxu0 0
        %1643 = vmatprep.subr.bf16.mxu0 0
        %1644 = vmatpush2.bf16.msra.mxu0 0
        %1645 = vmatprep.subr.bf16.mxu0 0
        %1646 = vmatpush2.bf16.msra.mxu0 0
        %1647 = vmatprep.subr.bf16.mxu0 0
        %1648 = vmatpush2.bf16.msra.mxu0 0
        %1649 = vmatprep.subr.bf16.mxu0 0
        %1650 = vmatpush2.bf16.msra.mxu0 0
        %1651 = vmatprep.subr.bf16.mxu0 0
        %1652 = vmatpush2.bf16.msra.mxu0 0
        %1653 = vmatprep.subr.bf16.mxu0 0
        %1654 = vmatpush2.bf16.msra.mxu0 0
        %1655 = vmatprep.subr.bf16.mxu0 0
        %1656 = vmatpush2.bf16.msra.mxu0 0
        %1657 = vmatprep.mubr.bf16.mxu0 0
        %1658 = vmatmul.mubr.bf16.gmra.mxu0 %v1599
        %v1659 = vpop.f32.mrf.mxu0
        %v1660 = vadd.f32 %v660, %v1659
        %v1661 = vpop.f32.mrf.mxu0
        %v1662 = vpop.f32.mrf.mxu0
        %v1663 = vadd.f32 %v660, %v1662
        %v1664 = vpop.f32.mrf.mxu0
        %1665 = vmatprep.mubr.bf16.mxu0 0
        %1666 = vmatmul.mubr.bf16.gmra.mxu0 %v1600
        %v1667 = vpop.f32.mrf.mxu0
        %v1668 = vadd.f32 %v660, %v1667
        %v1669 = vpop.f32.mrf.mxu0
        %v1670 = vpop.f32.mrf.mxu0
        %v1671 = vadd.f32 %v660, %v1670
        %v1672 = vpop.f32.mrf.mxu0
        %1673 = vmatprep.mubr.bf16.mxu0 0
        %1674 = vmatmul.mubr.bf16.gmra.mxu0 %v1601
        %v1675 = vpop.f32.mrf.mxu0
        %v1676 = vadd.f32 %v660, %v1675
        %v1677 = vpop.f32.mrf.mxu0
        %v1678 = vpop.f32.mrf.mxu0
        %v1679 = vadd.f32 %v660, %v1678
        %v1680 = vpop.f32.mrf.mxu0
        %1681 = vmatprep.mubr.bf16.mxu0 0
        %1682 = vmatmul.mubr.bf16.gmra.mxu0 %v1602
        %v1683 = vpop.f32.mrf.mxu0
        %v1684 = vadd.f32 %v660, %v1683
        %v1685 = vpop.f32.mrf.mxu0
        %v1686 = vpop.f32.mrf.mxu0
        %v1687 = vadd.f32 %v660, %v1686
        %v1688 = vpop.f32.mrf.mxu0
        %1689 = vmatprep.mubr.bf16.mxu0 0
        %1690 = vmatmul.mubr.bf16.gmra.mxu0 %v1603
        %v1691 = vpop.f32.mrf.mxu0
        %v1692 = vadd.f32 %v660, %v1691
        %v1693 = vpop.f32.mrf.mxu0
        %v1694 = vpop.f32.mrf.mxu0
        %v1695 = vadd.f32 %v660, %v1694
        %v1696 = vpop.f32.mrf.mxu0
        %1697 = vmatprep.mubr.bf16.mxu0 0
        %1698 = vmatmul.mubr.bf16.gmra.mxu0 %v1604
        %v1699 = vpop.f32.mrf.mxu0
        %v1700 = vadd.f32 %v660, %v1699
        %v1701 = vpop.f32.mrf.mxu0
        %v1702 = vpop.f32.mrf.mxu0
        %v1703 = vadd.f32 %v660, %v1702
        %v1704 = vpop.f32.mrf.mxu0
        %1705 = vmatprep.mubr.bf16.mxu0 0
        %1706 = vmatmul.mubr.bf16.gmra.mxu0 %v1605
        %v1707 = vpop.f32.mrf.mxu0
        %v1708 = vadd.f32 %v660, %v1707
        %v1709 = vpop.f32.mrf.mxu0
        %v1710 = vpop.f32.mrf.mxu0
        %v1711 = vadd.f32 %v660, %v1710
        %v1712 = vpop.f32.mrf.mxu0
        %1713 = vmatprep.mubr.bf16.mxu0 0
        %1714 = vmatmul.mubr.bf16.gmra.mxu0 %v1606
        %v1715 = vpop.f32.mrf.mxu0
        %v1716 = vadd.f32 %v660, %v1715
        %v1717 = vpop.f32.mrf.mxu0
        %v1718 = vpop.f32.mrf.mxu0
        %v1719 = vadd.f32 %v660, %v1718
        %v1720 = vpop.f32.mrf.mxu0
        %1721 = vmatprep.mubr.bf16.mxu0 0
        %1722 = vmatmul.mubr.bf16.gmra.mxu0 %v1607
        %v1723 = vpop.f32.mrf.mxu0
        %v1724 = vadd.f32 %v660, %v1723
        %v1725 = vpop.f32.mrf.mxu0
        %v1726 = vpop.f32.mrf.mxu0
        %v1727 = vadd.f32 %v660, %v1726
        %v1728 = vpop.f32.mrf.mxu0
        %1729 = vmatprep.mubr.bf16.mxu0 0
        %1730 = vmatmul.mubr.bf16.gmra.mxu0 %v1608
        %v1731 = vpop.f32.mrf.mxu0
        %v1732 = vadd.f32 %v660, %v1731
        %v1733 = vpop.f32.mrf.mxu0
        %v1734 = vpop.f32.mrf.mxu0
        %v1735 = vadd.f32 %v660, %v1734
        %v1736 = vpop.f32.mrf.mxu0
        %1737 = vmatprep.mubr.bf16.mxu0 0
        %1738 = vmatmul.mubr.bf16.gmra.mxu0 %v1609
        %v1739 = vpop.f32.mrf.mxu0
        %v1740 = vadd.f32 %v660, %v1739
        %v1741 = vpop.f32.mrf.mxu0
        %v1742 = vpop.f32.mrf.mxu0
        %v1743 = vadd.f32 %v660, %v1742
        %v1744 = vpop.f32.mrf.mxu0
        %1745 = vmatprep.mubr.bf16.mxu0 0
        %1746 = vmatmul.mubr.bf16.gmra.mxu0 %v1610
        %v1747 = vpop.f32.mrf.mxu0
        %v1748 = vadd.f32 %v660, %v1747
        %v1749 = vpop.f32.mrf.mxu0
        %v1750 = vpop.f32.mrf.mxu0
        %v1751 = vadd.f32 %v660, %v1750
        %v1752 = vpop.f32.mrf.mxu0
        %1753 = vmatprep.mubr.bf16.mxu0 0
        %1754 = vmatmul.mubr.bf16.gmra.mxu0 %v1611
        %v1755 = vpop.f32.mrf.mxu0
        %v1756 = vadd.f32 %v660, %v1755
        %v1757 = vpop.f32.mrf.mxu0
        %v1758 = vpop.f32.mrf.mxu0
        %v1759 = vpop.f32.mrf.mxu0
        %1760 = vdwg.mxu0
        %v1761 = vmax.f32 %v1660, 0.0
        %v1762 = vmax.f32 %v1663, 0.0
        %v1763 = vmax.f32 %v1668, 0.0
        %v1764 = vmax.f32 %v1671, 0.0
        %v1765 = vmax.f32 %v1676, 0.0
        %v1766 = vmax.f32 %v1679, 0.0
        %v1767 = vmax.f32 %v1684, 0.0
        %v1768 = vmax.f32 %v1687, 0.0
        %v1769 = vmax.f32 %v1692, 0.0
        %v1770 = vmax.f32 %v1695, 0.0
        %v1771 = vmax.f32 %v1700, 0.0
        %v1772 = vmax.f32 %v1703, 0.0
        %v1773 = vmax.f32 %v1708, 0.0
        %v1774 = vmax.f32 %v1711, 0.0
        %v1775 = vmax.f32 %v1716, 0.0
        %v1776 = vmax.f32 %v1719, 0.0
        %v1777 = vmax.f32 %v1724, 0.0
        %v1778 = vmax.f32 %v1727, 0.0
        %v1779 = vmax.f32 %v1732, 0.0
        %v1780 = vmax.f32 %v1735, 0.0
        %v1781 = vmax.f32 %v1740, 0.0
        %v1782 = vmax.f32 %v1743, 0.0
        %v1783 = vmax.f32 %v1748, 0.0
        %v1784 = vmax.f32 %v1751, 0.0
        %v1785 = vmax.f32 %v1756, 0.0
        %v1786 = vadd.f32 %v1498, %v1761
        %v1787 = vadd.f32 %v1499, %v1762
        %v1788 = vadd.f32 %v1500, %v1763
        %v1789 = vadd.f32 %v1501, %v1764
        %v1790 = vadd.f32 %v1502, %v1765
        %v1791 = vadd.f32 %v1503, %v1766
        %v1792 = vadd.f32 %v1504, %v1767
        %v1793 = vadd.f32 %v1505, %v1768
        %v1794 = vadd.f32 %v1506, %v1769
        %v1795 = vadd.f32 %v1507, %v1770
        %v1796 = vadd.f32 %v1508, %v1771
        %v1797 = vadd.f32 %v1509, %v1772
        %v1798 = vadd.f32 %v1510, %v1773
        %v1799 = vadd.f32 %v1511, %v1774
        %v1800 = vadd.f32 %v1512, %v1775
        %v1801 = vadd.f32 %v1513, %v1776
        %v1802 = vadd.f32 %v1514, %v1777
        %v1803 = vadd.f32 %v1515, %v1778
        %v1804 = vadd.f32 %v1516, %v1779
        %v1805 = vadd.f32 %v1517, %v1780
        %v1806 = vadd.f32 %v1518, %v1781
        %v1807 = vadd.f32 %v1519, %v1782
        %v1808 = vadd.f32 %v1520, %v1783
        %v1809 = vadd.f32 %v1521, %v1784
        %v1810 = vadd.f32 %v1522, %v1785
        %v1811 = vmul.f32 %v1786, 0.25
        %v1812 = vmul.f32 %v1787, 0.25
        %v1813 = vmul.f32 %v1788, 0.25
        %v1814 = vmul.f32 %v1789, 0.25
        %v1815 = vmul.f32 %v1790, 0.25
        %v1816 = vmul.f32 %v1791, 0.25
        %v1817 = vmul.f32 %v1792, 0.25
        %v1818 = vmul.f32 %v1793, 0.25
        %v1819 = vmul.f32 %v1794, 0.25
        %v1820 = vmul.f32 %v1795, 0.25
        %v1821 = vmul.f32 %v1796, 0.25
        %v1822 = vmul.f32 %v1797, 0.25
        %v1823 = vmul.f32 %v1798, 0.25
        %v1824 = vmul.f32 %v1799, 0.25
        %v1825 = vmul.f32 %v1800, 0.25
        %v1826 = vmul.f32 %v1801, 0.25
        %v1827 = vmul.f32 %v1802, 0.25
        %v1828 = vmul.f32 %v1803, 0.25
        %v1829 = vmul.f32 %v1804, 0.25
        %v1830 = vmul.f32 %v1805, 0.25
        %v1831 = vmul.f32 %v1806, 0.25
        %v1832 = vmul.f32 %v1807, 0.25
        %v1833 = vmul.f32 %v1808, 0.25
        %v1834 = vmul.f32 %v1809, 0.25
        %v1835 = vmul.f32 %v1810, 0.25
        %1836 = vst [vmem:[%s611] sm:$0xff] %v1811
        %1837 = vst [vmem:[%s611 + $0x8] sm:$0xff] %v1812
        %1838 = vst [vmem:[%s611 + $0x10] sm:$0xff] %v1813
        %1839 = vst [vmem:[%s611 + $0x18] sm:$0xff] %v1814
        %1840 = vst [vmem:[%s611 + $0x20] sm:$0xff] %v1815
        %1841 = vst [vmem:[%s611 + $0x28] sm:$0xff] %v1816
        %1842 = vst [vmem:[%s611 + $0x30] sm:$0xff] %v1817
        %1843 = vst [vmem:[%s611 + $0x38] sm:$0xff] %v1818
        %1844 = vst [vmem:[%s611 + $0x40] sm:$0xff] %v1819
        %1845 = vst [vmem:[%s611 + $0x48] sm:$0xff] %v1820
        %1846 = vst [vmem:[%s611 + $0x50] sm:$0xff] %v1821
        %1847 = vst [vmem:[%s611 + $0x58] sm:$0xff] %v1822
        %1848 = vst [vmem:[%s611 + $0x60] sm:$0xff] %v1823
        %1849 = vst [vmem:[%s611 + $0x68] sm:$0xff] %v1824
        %1850 = vst [vmem:[%s611 + $0x70] sm:$0xff] %v1825
        %1851 = vst [vmem:[%s611 + $0x78] sm:$0xff] %v1826
        %1852 = vst [vmem:[%s611 + $0x80] sm:$0xff] %v1827
        %1853 = vst [vmem:[%s611 + $0x88] sm:$0xff] %v1828
        %1854 = vst [vmem:[%s611 + $0x90] sm:$0xff] %v1829
        %1855 = vst [vmem:[%s611 + $0x98] sm:$0xff] %v1830
        %1856 = vst [vmem:[%s611 + $0xa0] sm:$0xff] %v1831
        %1857 = vst [vmem:[%s611 + $0xa8] sm:$0xff] %v1832
        %1858 = vst [vmem:[%s611 + $0xb0] sm:$0xff] %v1833
        %1859 = vst [vmem:[%s611 + $0xb8] sm:$0xff] %v1834
        %1860 = vst [vmem:[%s611 + $0xc0] sm:$0xff] %v1835
        %s1861 = smul.u32 25, %s14
        %p1862 = scmp.lt.s32.totalorder %s1861, 49
        %s1863 = scalar_select %p1862, %s1861, 49
        %s1864 = smul.addr %s1863, 8
        %s1865 = scalar_lea.vmem %s3, %s1864
        // Predicated region
        $region74: #{lenet_pallas.3} parent=68 // pred_check
          %p1866 = pneg %p100
        $region75: #{lenet_pallas.3} parent=68 // pred_check_branch
          %1868 = sbr.rel (%p1866) target = $region77
        $region76: #{lenet_pallas.3} parent=68 // pred_region
          %s1869 = smul.u32 25, %s14
        $region77: #{lenet_pallas.3} parent=68 // pred_fallthru
          _
      $region69: #{lenet_pallas.3} parent=5 // pred_fallthru
        _
      %p1870 = scmp.le.s32.totalorder 2, %s9
      // Predicated region
      $region78: #{lenet_pallas.3} parent=5 // pred_check
        %p1871 = pneg %p1870
      $region79: #{lenet_pallas.3} parent=5 // pred_check_branch
        %1873 = sbr.rel (%p1871) target = $region81
      $region80: #{lenet_pallas.3} parent=5 // pred_region
        %s1874 = ssub.s32 %s9, 2
        // Predicated region
        $region82: #{lenet_pallas.3} parent=80 // pred_check
          %p1875 = pneg %p106
        $region83: #{lenet_pallas.3} parent=80 // pred_check_branch
          %1877 = sbr.rel (%p1875) target = $region85
        $region84: #{lenet_pallas.3} parent=80 // pred_region
          %s1878 = smul.u32 25, %s15
          %p1879 = scmp.lt.s32.totalorder %s1878, 49
          %s1880 = scalar_select %p1879, %s1878, 49
          %s1881 = smul.addr %s1880, 8
          %s1882 = scalar_lea.vmem %s3, %s1881
        $region85: #{lenet_pallas.3} parent=80 // pred_fallthru
          _
      $region81: #{lenet_pallas.3} parent=5 // pred_fallthru
        _
    $region6: #{lenet_pallas.3} parent=1 // loop_footer
      %s13 = sadd.s32 1, %s9
    $region7: #{lenet_pallas.3} parent=1 // loop_footer_branch
      %8 = sbr.rel target = $region3
    $region8: #{lenet_pallas.3} parent=1 // loop_exit
      _

// kernel: lenet_pallas.4
$region0: #{lenet_pallas.4}
  #allocation0 [shape = 'u32[]', space=smem, size = 0x4, offset = 0x4, fixed_abs, tag = 'smem constant byte address 0x4 - core index']
  #allocation1 [shape = 'u32[144,128]{1,0:T(1,128)}', space=vmem, size = 0x12000, scoped, tag = 'internal scratch']
  %s0 = inlined_call_operand.vmem [shape: bf16[4,64,256], index: 0, kind: input, shape index: {}]
  %s1 = inlined_call_operand.vmem [shape: bf16[256,128], index: 1, kind: input, shape index: {}]
  %s2 = inlined_call_operand.vmem [shape: f32[1,128], index: 2, kind: input, shape index: {}]
  %s3 = inlined_call_operand.vmem [shape: f32[64,128], index: 3, kind: output, shape index: {}]
  %s4 = sld [smem:[#allocation0]]
  $region83: #{lenet_pallas.4} parent=0
    _
  %s6 = ssub.s32 1, %s4
  %s7 = scalar_select 0, %s6, %s4
  $region1: #{lenet_pallas.4} parent=0
    #allocation2 [shape = 'u8[131072]{0}', space=vmem, size = 0x20000, scoped, tag = 'input window, operand 0']
    loop: start=0, step=1, limit=4
    $region2: #{lenet_pallas.4} parent=1 // loop_pre_header
      _
    $region3: #{lenet_pallas.4} parent=1 // loop_header
      %s9 = sphi 0, %s13
      %p10 = scmp.ge.s32.totalorder %s9, 4
      %s19 = sphi 0, %s21
      %s22 = sphi 0, %s19
      %s23 = sphi 0, %s22
      %s39 = sphi 0, %s23
      %s43 = sphi 0, %s43
      %s45 = sphi 0, %s43
      %s46 = sphi 0, %s45
      %s60 = sphi 0, %s46
      %s64 = sphi 0, %s64
      %s66 = sphi 0, %s64
      %s67 = sphi 0, %s66
      %s81 = sphi 0, %s67
      %s87 = sphi 0, %s89
      %s90 = sphi 0, %s87
      %s91 = sphi 0, %s90
      %s107 = sphi 0, %s91
    $region4: #{lenet_pallas.4} parent=1 // loop_header_branch
      %12 = sbr.rel (%p10) target = $region8
    $region5: #{lenet_pallas.4} parent=1 // loop_body
      %s14 = ssub.s32 %s9, 1
      %s15 = ssub.s32 %s9, 2
      %s16 = sadd.s32 %s9, 1
      %s17 = ssub.s32 %s9, %s16
      %p18 = scmp.eq.s32.totalorder %s17, 0
      %s20 = sadd.s32 %s19, 1
      %s21 = scalar_select %p18, %s19, %s20
      %p24 = pneg %p18
      %p25 = scmp.eq.s32.totalorder %s9, 1
      %p26 = por %p24, %p25
      %p27 = scmp.ne.s32.totalorder %s19, %s22
      %p28 = scmp.eq.s32.totalorder %s9, 0
      %p29 = por %p27, %p28
      %p30 = scmp.ne.s32.totalorder %s19, %s22
      %p31 = scmp.eq.s32.totalorder %s14, 1
      %p32 = por %p30, %p31
      %p33 = scmp.ne.s32.totalorder %s22, %s23
      %p34 = scmp.eq.s32.totalorder %s14, 0
      %p35 = por %p33, %p34
      %p36 = scmp.ne.s32.totalorder %s22, %s23
      %p37 = scmp.eq.s32.totalorder %s15, 1
      %p38 = por %p36, %p37
      %p40 = scmp.ne.s32.totalorder %s23, %s39
      %p41 = scmp.eq.s32.totalorder %s15, 0
      %p42 = por %p40, %p41
      %s44 = sadd.s32 %s43, 1
      %p47 = scmp.eq.s32.totalorder %s9, 1
      %p48 = scmp.ne.s32.totalorder %s43, %s45
      %p49 = scmp.eq.s32.totalorder %s9, 0
      %p50 = por %p48, %p49
      %p51 = scmp.ne.s32.totalorder %s43, %s45
      %p52 = scmp.eq.s32.totalorder %s14, 1
      %p53 = por %p51, %p52
      %p54 = scmp.ne.s32.totalorder %s45, %s46
      %p55 = scmp.eq.s32.totalorder %s14, 0
      %p56 = por %p54, %p55
      %p57 = scmp.ne.s32.totalorder %s45, %s46
      %p58 = scmp.eq.s32.totalorder %s15, 1
      %p59 = por %p57, %p58
      %p61 = scmp.ne.s32.totalorder %s46, %s60
      %p62 = scmp.eq.s32.totalorder %s15, 0
      %p63 = por %p61, %p62
      %s65 = sadd.s32 %s64, 1
      %p68 = scmp.eq.s32.totalorder %s9, 1
      %p69 = scmp.ne.s32.totalorder %s64, %s66
      %p70 = scmp.eq.s32.totalorder %s9, 0
      %p71 = por %p69, %p70
      %p72 = scmp.ne.s32.totalorder %s64, %s66
      %p73 = scmp.eq.s32.totalorder %s14, 1
      %p74 = por %p72, %p73
      %p75 = scmp.ne.s32.totalorder %s66, %s67
      %p76 = scmp.eq.s32.totalorder %s14, 0
      %p77 = por %p75, %p76
      %p78 = scmp.ne.s32.totalorder %s66, %s67
      %p79 = scmp.eq.s32.totalorder %s15, 1
      %p80 = por %p78, %p79
      %p82 = scmp.ne.s32.totalorder %s67, %s81
      %p83 = scmp.eq.s32.totalorder %s15, 0
      %p84 = por %p82, %p83
      %s85 = ssub.s32 %s9, %s16
      %p86 = scmp.eq.s32.totalorder %s85, 0
      %s88 = sadd.s32 %s87, 1
      %s89 = scalar_select %p86, %s87, %s88
      %p92 = pneg %p86
      %p93 = scmp.eq.s32.totalorder %s9, 1
      %p94 = por %p92, %p93
      %p95 = scmp.ne.s32.totalorder %s87, %s90
      %p96 = scmp.eq.s32.totalorder %s9, 0
      %p97 = por %p95, %p96
      %p98 = scmp.ne.s32.totalorder %s87, %s90
      %p99 = scmp.eq.s32.totalorder %s14, 1
      %p100 = por %p98, %p99
      %p101 = scmp.ne.s32.totalorder %s90, %s91
      %p102 = scmp.eq.s32.totalorder %s14, 0
      %p103 = por %p101, %p102
      %p104 = scmp.ne.s32.totalorder %s90, %s91
      %p105 = scmp.eq.s32.totalorder %s15, 1
      %p106 = por %p104, %p105
      %p108 = scmp.ne.s32.totalorder %s91, %s107
      %p109 = scmp.eq.s32.totalorder %s15, 0
      %p110 = por %p108, %p109
      %p111 = scmp.le.s32.totalorder 1, %s9
      %p112 = scmp.lt.s32.totalorder %s9, 3
      %p113 = pnand %p111, %p112
      %p114 = pneg %p113
      // Predicated region
      $region9: #{lenet_pallas.4} parent=5 // pred_check
        _
      $region10: #{lenet_pallas.4} parent=5 // pred_check_branch
        %116 = sbr.rel (%p113) target = $region12
      $region11: #{lenet_pallas.4} parent=5 // pred_region
        %s117 = ssub.s32 %s9, 1
        // Predicated region
        $region13: #{lenet_pallas.4} parent=11 // pred_check
          %p118 = pneg %p56
        $region14: #{lenet_pallas.4} parent=11 // pred_check_branch
          %120 = sbr.rel (%p118) target = $region16
        $region15: #{lenet_pallas.4} parent=11 // pred_region
          _
        $region16: #{lenet_pallas.4} parent=11 // pred_fallthru
          _
        // Predicated region
        $region17: #{lenet_pallas.4} parent=11 // pred_check
          %p121 = pneg %p77
        $region18: #{lenet_pallas.4} parent=11 // pred_check_branch
          %123 = sbr.rel (%p121) target = $region20
        $region19: #{lenet_pallas.4} parent=11 // pred_region
          _
        $region20: #{lenet_pallas.4} parent=11 // pred_fallthru
          _
      $region12: #{lenet_pallas.4} parent=5 // pred_fallthru
        _
      %p124 = scmp.lt.s32.totalorder %s9, 2
      // Predicated region
      $region21: #{lenet_pallas.4} parent=5 // pred_check
        %p125 = pneg %p124
      $region22: #{lenet_pallas.4} parent=5 // pred_check_branch
        %127 = sbr.rel (%p125) target = $region24
      $region23: #{lenet_pallas.4} parent=5 // pred_region
        // Predicated region
        $region25: #{lenet_pallas.4} parent=23 // pred_check
          %p128 = pneg %p29
        $region26: #{lenet_pallas.4} parent=23 // pred_check_branch
          %130 = sbr.rel (%p128) target = $region28
        $region27: #{lenet_pallas.4} parent=23 // pred_region
          %s131 = sand.u32 %s19, 1
          %s132 = sand.u32 %s19, 1
          %s133 = smul.addr %s132, 128
          %s134 = scalar_lea.vmem [#allocation2], %s133
          %s135 = smul.u32 4, %s9
          %s136 = smul.addr %s135, 2
          %s137 = smul.addr %s136, 4
          %s138 = scalar_lea.vmem %s0, %s137
          // Predicated region
          $region29: #{lenet_pallas.4} parent=27 // pred_check
            _
          $region30: #{lenet_pallas.4} parent=27 // pred_check_branch
            %140 = sbr.rel (0) target = $region32
          $region31: #{lenet_pallas.4} parent=27 // pred_region
            // Predicated region
            $region33: #{lenet_pallas.4} parent=31 // pred_check
              _
            $region34: #{lenet_pallas.4} parent=31 // pred_check_branch
              %142 = sbr.rel (0) target = $region36
            $region35: #{lenet_pallas.4} parent=31 // pred_region
              // Predicated region
              $region48: #{lenet_pallas.4} parent=35 // pred_check
                _
              $region49: #{lenet_pallas.4} parent=35 // pred_check_branch
                %188 = sbr.rel (0) target = $region51
              $region50: #{lenet_pallas.4} parent=35 // pred_region
                loop: start=0, step=1, limit=1
                $region52: #{lenet_pallas.4} parent=50 // loop_pre_header
                  _
                $region53: #{lenet_pallas.4} parent=50 // loop_header
                  %s190 = sphi 0, %s194
                  %p191 = scmp.ge.s32.totalorder %s190, 1
                  %s195 = sphi %s138, %s138
                  %s196 = sphi %s134, %s134
                $region54: #{lenet_pallas.4} parent=50 // loop_header_branch
                  %193 = sbr.rel (%p191) target = $region58
                $region55: #{lenet_pallas.4} parent=50 // loop_body
                  %v197 = vld [vmem:[%s195] sm:$0xff]
                  %198 = vst [vmem:[%s196] sm:$0xff] %v197
                  %v199 = vld [vmem:[%s195 + $0x8] sm:$0xff]
                  %200 = vst [vmem:[%s196 + $0x8] sm:$0xff] %v199
                  %v201 = vld [vmem:[%s195 + $0x10] sm:$0xff]
                  %202 = vst [vmem:[%s196 + $0x10] sm:$0xff] %v201
                  %v203 = vld [vmem:[%s195 + $0x18] sm:$0xff]
                  %204 = vst [vmem:[%s196 + $0x18] sm:$0xff] %v203
                  %v205 = vld [vmem:[%s195 + $0x40] sm:$0xff]
                  %206 = vst [vmem:[%s196 + $0x20] sm:$0xff] %v205
                  %v207 = vld [vmem:[%s195 + $0x48] sm:$0xff]
                  %208 = vst [vmem:[%s196 + $0x28] sm:$0xff] %v207
                  %v209 = vld [vmem:[%s195 + $0x50] sm:$0xff]
                  %210 = vst [vmem:[%s196 + $0x30] sm:$0xff] %v209
                  %v211 = vld [vmem:[%s195 + $0x58] sm:$0xff]
                  %212 = vst [vmem:[%s196 + $0x38] sm:$0xff] %v211
                  %v213 = vld [vmem:[%s195 + $0x80] sm:$0xff]
                  %214 = vst [vmem:[%s196 + $0x40] sm:$0xff] %v213
                  %v215 = vld [vmem:[%s195 + $0x88] sm:$0xff]
                  %216 = vst [vmem:[%s196 + $0x48] sm:$0xff] %v215
                  %v217 = vld [vmem:[%s195 + $0x90] sm:$0xff]
                  %218 = vst [vmem:[%s196 + $0x50] sm:$0xff] %v217
                  %v219 = vld [vmem:[%s195 + $0x98] sm:$0xff]
                  %220 = vst [vmem:[%s196 + $0x58] sm:$0xff] %v219
                  %v221 = vld [vmem:[%s195 + $0xc0] sm:$0xff]
                  %222 = vst [vmem:[%s196 + $0x60] sm:$0xff] %v221
                  %v223 = vld [vmem:[%s195 + $0xc8] sm:$0xff]
                  %224 = vst [vmem:[%s196 + $0x68] sm:$0xff] %v223
                  %v225 = vld [vmem:[%s195 + $0xd0] sm:$0xff]
                  %226 = vst [vmem:[%s196 + $0x70] sm:$0xff] %v225
                  %v227 = vld [vmem:[%s195 + $0xd8] sm:$0xff]
                  %228 = vst [vmem:[%s196 + $0x78] sm:$0xff] %v227
                $region56: #{lenet_pallas.4} parent=50 // loop_footer
                  %s194 = sadd.s32 1, %s190
                $region57: #{lenet_pallas.4} parent=50 // loop_footer_branch
                  %189 = sbr.rel target = $region53
                $region58: #{lenet_pallas.4} parent=50 // loop_exit
                  _
              $region51: #{lenet_pallas.4} parent=35 // pred_fallthru
                _
              // Predicated region
              $region59: #{lenet_pallas.4} parent=35 // pred_check
                _
              $region60: #{lenet_pallas.4} parent=35 // pred_check_branch
                %230 = sbr.rel target = $region62
              $region61: #{lenet_pallas.4} parent=35 // pred_region
                _
              $region62: #{lenet_pallas.4} parent=35 // pred_fallthru
                _
            $region36: #{lenet_pallas.4} parent=31 // pred_fallthru
              _
            // Predicated region
            $region37: #{lenet_pallas.4} parent=31 // pred_check
              _
            $region38: #{lenet_pallas.4} parent=31 // pred_check_branch
              %144 = sbr.rel target = $region40
            $region39: #{lenet_pallas.4} parent=31 // pred_region
              %s146 = ssub.s32 256, 1
              loop: start=0, step=1, limit=1
              $region41: #{lenet_pallas.4} parent=39 // loop_pre_header
                _
              $region42: #{lenet_pallas.4} parent=39 // loop_header
                %s148 = sphi 0, %s152
                %p149 = scmp.ge.s32.totalorder %s148, 1
                %s153 = sphi %s138, %s138
                %s154 = sphi %s134, %s134
              $region43: #{lenet_pallas.4} parent=39 // loop_header_branch
                %151 = sbr.rel (%p149) target = $region47
              $region44: #{lenet_pallas.4} parent=39 // loop_body
                %v155 = vld [vmem:[%s153] sm:%s146]
                %156 = vst [vmem:[%s154] sm:%s146] %v155
                %v157 = vld [vmem:[%s153 + $0x8] sm:%s146]
                %158 = vst [vmem:[%s154 + $0x8] sm:%s146] %v157
                %v159 = vld [vmem:[%s153 + $0x10] sm:%s146]
                %160 = vst [vmem:[%s154 + $0x10] sm:%s146] %v159
                %v161 = vld [vmem:[%s153 + $0x18] sm:%s146]
                %162 = vst [vmem:[%s154 + $0x18] sm:%s146] %v161
                %v163 = vld [vmem:[%s153 + $0x40] sm:%s146]
                %164 = vst [vmem:[%s154 + $0x20] sm:%s146] %v163
                %v165 = vld [vmem:[%s153 + $0x48] sm:%s146]
                %166 = vst [vmem:[%s154 + $0x28] sm:%s146] %v165
                %v167 = vld [vmem:[%s153 + $0x50] sm:%s146]
                %168 = vst [vmem:[%s154 + $0x30] sm:%s146] %v167
                %v169 = vld [vmem:[%s153 + $0x58] sm:%s146]
                %170 = vst [vmem:[%s154 + $0x38] sm:%s146] %v169
                %v171 = vld [vmem:[%s153 + $0x80] sm:%s146]
                %172 = vst [vmem:[%s154 + $0x40] sm:%s146] %v171
                %v173 = vld [vmem:[%s153 + $0x88] sm:%s146]
                %174 = vst [vmem:[%s154 + $0x48] sm:%s146] %v173
                %v175 = vld [vmem:[%s153 + $0x90] sm:%s146]
                %176 = vst [vmem:[%s154 + $0x50] sm:%s146] %v175
                %v177 = vld [vmem:[%s153 + $0x98] sm:%s146]
                %178 = vst [vmem:[%s154 + $0x58] sm:%s146] %v177
                %v179 = vld [vmem:[%s153 + $0xc0] sm:%s146]
                %180 = vst [vmem:[%s154 + $0x60] sm:%s146] %v179
                %v181 = vld [vmem:[%s153 + $0xc8] sm:%s146]
                %182 = vst [vmem:[%s154 + $0x68] sm:%s146] %v181
                %v183 = vld [vmem:[%s153 + $0xd0] sm:%s146]
                %184 = vst [vmem:[%s154 + $0x70] sm:%s146] %v183
                %v185 = vld [vmem:[%s153 + $0xd8] sm:%s146]
                %186 = vst [vmem:[%s154 + $0x78] sm:%s146] %v185
              $region45: #{lenet_pallas.4} parent=39 // loop_footer
                %s152 = sadd.s32 1, %s148
              $region46: #{lenet_pallas.4} parent=39 // loop_footer_branch
                %147 = sbr.rel target = $region42
              $region47: #{lenet_pallas.4} parent=39 // loop_exit
                _
            $region40: #{lenet_pallas.4} parent=31 // pred_fallthru
              _
          $region32: #{lenet_pallas.4} parent=27 // pred_fallthru
            _
          %231 = vnop
        $region28: #{lenet_pallas.4} parent=23 // pred_fallthru
          _
      $region24: #{lenet_pallas.4} parent=5 // pred_fallthru
        _
      %p232 = scmp.le.s32.totalorder 1, %s9
      %p233 = scmp.lt.s32.totalorder %s9, 3
      %p234 = pnand %p232, %p233
      %p235 = pneg %p234
      // Predicated region
      $region63: #{lenet_pallas.4} parent=5 // pred_check
        _
      $region64: #{lenet_pallas.4} parent=5 // pred_check_branch
        %237 = sbr.rel (%p234) target = $region66
      $region65: #{lenet_pallas.4} parent=5 // pred_region
        %s238 = ssub.s32 %s9, 1
        %s239 = sand.u32 %s22, 1
        %s240 = sand.u32 %s22, 1
        %s241 = smul.addr %s240, 128
        %s242 = scalar_lea.vmem [#allocation2], %s241
        // Predicated region
        $region67: #{lenet_pallas.4} parent=65 // pred_check
          %p243 = pneg %p35
        $region68: #{lenet_pallas.4} parent=65 // pred_check_branch
          %245 = sbr.rel (%p243) target = $region70
        $region69: #{lenet_pallas.4} parent=65 // pred_region
          _
        $region70: #{lenet_pallas.4} parent=65 // pred_fallthru
          _
        %s246 = sand.u32 %s22, 1
        %s247 = sand.u32 %s22, 1
        %s248 = smul.addr %s247, 128
        %s249 = scalar_lea.vmem [#allocation2], %s248
        %p250 = pneg %p35
        %p251 = pneg %p32
        %p252 = pneg %p56
        %p253 = pneg %p53
        %p254 = pneg %p77
        %p255 = pneg %p74
        %p256 = pneg %p103
        %p257 = pneg %p100
        %s258 = smul.u32 4, %s14
        %p259 = scmp.lt.s32.totalorder %s258, 7
        %s260 = scalar_select %p259, %s258, 7
        %s261 = smul.addr %s260, 8
        %s262 = scalar_lea.vmem %s3, %s261
        %s263 = smul.u32 4, %s14
        %s264 = smul.u32 4, %s14
        %p265 = scmp.lt.s32.totalorder %s264, 7
        %s266 = scalar_select %p265, %s264, 7
        %s267 = smul.addr %s266, 8
        %s268 = scalar_lea.vmem %s3, %s267
        %s269 = smul.u32 4, %s14
        %v271 = vld [vmem:[%s2] sm:$0x1]
        %v272 = vld [vmem:[%s242] sm:$0xff]
        %v273 = vld [vmem:[%s242 + $0x8] sm:$0xff]
        %v274 = vld [vmem:[%s242 + $0x10] sm:$0xff]
        %v275 = vld [vmem:[%s242 + $0x18] sm:$0xff]
        %v276 = vld [vmem:[%s1] sm:$0xf]
        %v277 = vld [vmem:[%s1 + $0x4] sm:$0xf]
        %v278 = vld [vmem:[%s1 + $0x8] sm:$0xf]
        %v279 = vld [vmem:[%s1 + $0xc] sm:$0xf]
        %v280 = vld [vmem:[%s1 + $0x10] sm:$0xf]
        %v281 = vld [vmem:[%s1 + $0x14] sm:$0xf]
        %v282 = vld [vmem:[%s1 + $0x18] sm:$0xf]
        %v283 = vld [vmem:[%s1 + $0x1c] sm:$0xf]
        %v284 = vld [vmem:[%s1 + $0x20] sm:$0xf]
        %v285 = vld [vmem:[%s1 + $0x24] sm:$0xf]
        %v286 = vld [vmem:[%s1 + $0x28] sm:$0xf]
        %v287 = vld [vmem:[%s1 + $0x2c] sm:$0xf]
        %v288 = vld [vmem:[%s1 + $0x30] sm:$0xf]
        %v289 = vld [vmem:[%s1 + $0x34] sm:$0xf]
        %v290 = vld [vmem:[%s1 + $0x38] sm:$0xf]
        %v291 = vld [vmem:[%s1 + $0x3c] sm:$0xf]
        %v292 = vld [vmem:[%s1 + $0x40] sm:$0xf]
        %v293 = vld [vmem:[%s1 + $0x44] sm:$0xf]
        %v294 = vld [vmem:[%s1 + $0x48] sm:$0xf]
        %v295 = vld [vmem:[%s1 + $0x4c] sm:$0xf]
        %v296 = vld [vmem:[%s1 + $0x50] sm:$0xf]
        %v297 = vld [vmem:[%s1 + $0x54] sm:$0xf]
        %v298 = vld [vmem:[%s1 + $0x58] sm:$0xf]
        %v299 = vld [vmem:[%s1 + $0x5c] sm:$0xf]
        %v300 = vld [vmem:[%s1 + $0x60] sm:$0xf]
        %v301 = vld [vmem:[%s1 + $0x64] sm:$0xf]
        %v302 = vld [vmem:[%s1 + $0x68] sm:$0xf]
        %v303 = vld [vmem:[%s1 + $0x6c] sm:$0xf]
        %v304 = vld [vmem:[%s1 + $0x70] sm:$0xf]
        %v305 = vld [vmem:[%s1 + $0x74] sm:$0xf]
        %v306 = vld [vmem:[%s1 + $0x78] sm:$0xf]
        %v307 = vld [vmem:[%s1 + $0x7c] sm:$0xf]
        %v309 = vlaneseq
        %v310 = vshrl.u32 %v309, 7
        %v311 = vsub.s32 0, %v310
        %v312 = vrot.slane %v271, %v311
        %v318 = vunpack.c.l.b16 %v272
        %v319 = vunpack.c.h.b16 %v272
        %v320 = vunpack.c.l.b16 %v273
        %v321 = vunpack.c.h.b16 %v273
        %v322 = vunpack.c.l.b16 %v274
        %v323 = vunpack.c.h.b16 %v274
        %v324 = vunpack.c.l.b16 %v275
        %v325 = vunpack.c.h.b16 %v275
        %v326 = vpack.c.b16 %v320, %v318
        %v327 = vpack.c.b16 %v321, %v319
        %v328 = vpack.c.b16 %v324, %v322
        %v329 = vpack.c.b16 %v325, %v323
        %v366 = vunpack.c.l.b16 %v276
        %v367 = vunpack.c.l.b16 %v277
        %v368 = vunpack.c.l.b16 %v278
        %v369 = vunpack.c.l.b16 %v279
        %v370 = vunpack.c.l.b16 %v280
        %v371 = vunpack.c.l.b16 %v281
        %v372 = vunpack.c.l.b16 %v282
        %v373 = vunpack.c.l.b16 %v283
        %v374 = vunpack.c.l.b16 %v284
        %v375 = vunpack.c.l.b16 %v285
        %v376 = vunpack.c.l.b16 %v286
        %v377 = vunpack.c.l.b16 %v287
        %v378 = vunpack.c.l.b16 %v288
        %v379 = vunpack.c.l.b16 %v289
        %v380 = vunpack.c.l.b16 %v290
        %v381 = vunpack.c.l.b16 %v291
        %v382 = vunpack.c.l.b16 %v292
        %v383 = vunpack.c.l.b16 %v293
        %v384 = vunpack.c.l.b16 %v294
        %v385 = vunpack.c.l.b16 %v295
        %v386 = vunpack.c.l.b16 %v296
        %v387 = vunpack.c.l.b16 %v297
        %v388 = vunpack.c.l.b16 %v298
        %v389 = vunpack.c.l.b16 %v299
        %v390 = vunpack.c.l.b16 %v300
        %v391 = vunpack.c.l.b16 %v301
        %v392 = vunpack.c.l.b16 %v302
        %v393 = vunpack.c.l.b16 %v303
        %v394 = vunpack.c.l.b16 %v304
        %v395 = vunpack.c.l.b16 %v305
        %v396 = vunpack.c.l.b16 %v306
        %v397 = vunpack.c.l.b16 %v307
        %v398 = vpack.c.b16 %v367, %v366
        %v399 = vpack.c.b16 %v369, %v368
        %v400 = vpack.c.b16 %v371, %v370
        %v401 = vpack.c.b16 %v373, %v372
        %v402 = vpack.c.b16 %v375, %v374
        %v403 = vpack.c.b16 %v377, %v376
        %v404 = vpack.c.b16 %v379, %v378
        %v405 = vpack.c.b16 %v381, %v380
        %v406 = vpack.c.b16 %v383, %v382
        %v407 = vpack.c.b16 %v385, %v384
        %v408 = vpack.c.b16 %v387, %v386
        %v409 = vpack.c.b16 %v389, %v388
        %v410 = vpack.c.b16 %v391, %v390
        %v411 = vpack.c.b16 %v393, %v392
        %v412 = vpack.c.b16 %v395, %v394
        %v413 = vpack.c.b16 %v397, %v396
        %430 = vmatprep.subr.bf16.mxu0 0
        %431 = vmatpush1.bf16.msra.mxu0 %v405
        %432 = vmatprep.subr.bf16.mxu0 0
        %433 = vmatpush1.bf16.msra.mxu0 %v404
        %434 = vmatprep.subr.bf16.mxu0 0
        %435 = vmatpush1.bf16.msra.mxu0 %v403
        %436 = vmatprep.subr.bf16.mxu0 0
        %437 = vmatpush1.bf16.msra.mxu0 %v402
        %438 = vmatprep.subr.bf16.mxu0 0
        %439 = vmatpush1.bf16.msra.mxu0 %v401
        %440 = vmatprep.subr.bf16.mxu0 0
        %441 = vmatpush1.bf16.msra.mxu0 %v400
        %442 = vmatprep.subr.bf16.mxu0 0
        %443 = vmatpush1.bf16.msra.mxu0 %v399
        %444 = vmatprep.subr.bf16.mxu0 0
        %445 = vmatpush1.bf16.msra.mxu0 %v398
        %446 = vmatprep.subr.bf16.mxu0 0
        %447 = vmatpush2.bf16.msra.mxu0 %v413
        %448 = vmatprep.subr.bf16.mxu0 0
        %449 = vmatpush2.bf16.msra.mxu0 %v412
        %450 = vmatprep.subr.bf16.mxu0 0
        %451 = vmatpush2.bf16.msra.mxu0 %v411
        %452 = vmatprep.subr.bf16.mxu0 0
        %453 = vmatpush2.bf16.msra.mxu0 %v410
        %454 = vmatprep.subr.bf16.mxu0 0
        %455 = vmatpush2.bf16.msra.mxu0 %v409
        %456 = vmatprep.subr.bf16.mxu0 0
        %457 = vmatpush2.bf16.msra.mxu0 %v408
        %458 = vmatprep.subr.bf16.mxu0 0
        %459 = vmatpush2.bf16.msra.mxu0 %v407
        %460 = vmatprep.subr.bf16.mxu0 0
        %461 = vmatpush2.bf16.msra.mxu0 %v406
        %462 = vmatprep.mubr.bf16.mxu0 %v327
        %463 = vmatmul.mubr.bf16.gmra.mxu0 %v326
        %v464 = vpop.f32.mrf.mxu0
        %v465 = vadd.f32 %v312, %v464
        %v466 = vpop.f32.mrf.mxu0
        %v467 = vpop.f32.mrf.mxu0
        %v468 = vadd.f32 %v312, %v467
        %v469 = vpop.f32.mrf.mxu0
        %470 = vmatprep.mubr.bf16.mxu0 %v329
        %471 = vmatmul.mubr.bf16.gmra.mxu0 %v328
        %v472 = vpop.f32.mrf.mxu0
        %v473 = vadd.f32 %v312, %v472
        %v474 = vpop.f32.mrf.mxu0
        %v475 = vpop.f32.mrf.mxu0
        %v476 = vadd.f32 %v312, %v475
        %v477 = vpop.f32.mrf.mxu0
        %478 = vdwg.mxu0
        %v479 = vmax.f32 %v465, 0.0
        %v480 = vmax.f32 %v468, 0.0
        %v481 = vmax.f32 %v473, 0.0
        %v482 = vmax.f32 %v476, 0.0
        %s483 = scalar_lea.vmem %s242, 32 [#allocation2]
        %v484 = vld [vmem:[%s483] sm:$0xff]
        %v485 = vld [vmem:[%s483 + $0x8] sm:$0xff]
        %v486 = vld [vmem:[%s483 + $0x10] sm:$0xff]
        %v487 = vld [vmem:[%s483 + $0x18] sm:$0xff]
        %v492 = vunpack.c.l.b16 %v484
        %v493 = vunpack.c.h.b16 %v484
        %v494 = vunpack.c.l.b16 %v485
        %v495 = vunpack.c.h.b16 %v485
        %v496 = vunpack.c.l.b16 %v486
        %v497 = vunpack.c.h.b16 %v486
        %v498 = vunpack.c.l.b16 %v487
        %v499 = vunpack.c.h.b16 %v487
        %v500 = vpack.c.b16 %v494, %v492
        %v501 = vpack.c.b16 %v495, %v493
        %v502 = vpack.c.b16 %v498, %v496
        %v503 = vpack.c.b16 %v499, %v497
        %508 = vmatprep.subr.bf16.mxu0 0
        %509 = vmatpush1.bf16.msra.mxu0 %v405
        %510 = vmatprep.subr.bf16.mxu0 0
        %511 = vmatpush1.bf16.msra.mxu0 %v404
        %512 = vmatprep.subr.bf16.mxu0 0
        %513 = vmatpush1.bf16.msra.mxu0 %v403
        %514 = vmatprep.subr.bf16.mxu0 0
        %515 = vmatpush1.bf16.msra.mxu0 %v402
        %516 = vmatprep.subr.bf16.mxu0 0
        %517 = vmatpush1.bf16.msra.mxu0 %v401
        %518 = vmatprep.subr.bf16.mxu0 0
        %519 = vmatpush1.bf16.msra.mxu0 %v400
        %520 = vmatprep.subr.bf16.mxu0 0
        %521 = vmatpush1.bf16.msra.mxu0 %v399
        %522 = vmatprep.subr.bf16.mxu0 0
        %523 = vmatpush1.bf16.msra.mxu0 %v398
        %524 = vmatprep.subr.bf16.mxu0 0
        %525 = vmatpush2.bf16.msra.mxu0 %v413
        %526 = vmatprep.subr.bf16.mxu0 0
        %527 = vmatpush2.bf16.msra.mxu0 %v412
        %528 = vmatprep.subr.bf16.mxu0 0
        %529 = vmatpush2.bf16.msra.mxu0 %v411
        %530 = vmatprep.subr.bf16.mxu0 0
        %531 = vmatpush2.bf16.msra.mxu0 %v410
        %532 = vmatprep.subr.bf16.mxu0 0
        %533 = vmatpush2.bf16.msra.mxu0 %v409
        %534 = vmatprep.subr.bf16.mxu0 0
        %535 = vmatpush2.bf16.msra.mxu0 %v408
        %536 = vmatprep.subr.bf16.mxu0 0
        %537 = vmatpush2.bf16.msra.mxu0 %v407
        %538 = vmatprep.subr.bf16.mxu0 0
        %539 = vmatpush2.bf16.msra.mxu0 %v406
        %540 = vmatprep.mubr.bf16.mxu0 %v501
        %541 = vmatmul.mubr.bf16.gmra.mxu0 %v500
        %v542 = vpop.f32.mrf.mxu0
        %v543 = vadd.f32 %v312, %v542
        %v544 = vpop.f32.mrf.mxu0
        %v545 = vpop.f32.mrf.mxu0
        %v546 = vadd.f32 %v312, %v545
        %v547 = vpop.f32.mrf.mxu0
        %548 = vmatprep.mubr.bf16.mxu0 %v503
        %549 = vmatmul.mubr.bf16.gmra.mxu0 %v502
        %v550 = vpop.f32.mrf.mxu0
        %v551 = vadd.f32 %v312, %v550
        %v552 = vpop.f32.mrf.mxu0
        %v553 = vpop.f32.mrf.mxu0
        %v554 = vadd.f32 %v312, %v553
        %v555 = vpop.f32.mrf.mxu0
        %556 = vdwg.mxu0
        %v557 = vmax.f32 %v543, 0.0
        %v558 = vmax.f32 %v546, 0.0
        %v559 = vmax.f32 %v551, 0.0
        %v560 = vmax.f32 %v554, 0.0
        %v561 = vadd.f32 %v479, %v557
        %v562 = vadd.f32 %v480, %v558
        %v563 = vadd.f32 %v481, %v559
        %v564 = vadd.f32 %v482, %v560
        %s565 = scalar_lea.vmem %s242, 64 [#allocation2]
        %v566 = vld [vmem:[%s565] sm:$0xff]
        %v567 = vld [vmem:[%s565 + $0x8] sm:$0xff]
        %v568 = vld [vmem:[%s565 + $0x10] sm:$0xff]
        %v569 = vld [vmem:[%s565 + $0x18] sm:$0xff]
        %v574 = vunpack.c.l.b16 %v566
        %v575 = vunpack.c.h.b16 %v566
        %v576 = vunpack.c.l.b16 %v567
        %v577 = vunpack.c.h.b16 %v567
        %v578 = vunpack.c.l.b16 %v568
        %v579 = vunpack.c.h.b16 %v568
        %v580 = vunpack.c.l.b16 %v569
        %v581 = vunpack.c.h.b16 %v569
        %v582 = vpack.c.b16 %v576, %v574
        %v583 = vpack.c.b16 %v577, %v575
        %v584 = vpack.c.b16 %v580, %v578
        %v585 = vpack.c.b16 %v581, %v579
        %590 = vmatprep.subr.bf16.mxu0 0
        %591 = vmatpush1.bf16.msra.mxu0 %v405
        %592 = vmatprep.subr.bf16.mxu0 0
        %593 = vmatpush1.bf16.msra.mxu0 %v404
        %594 = vmatprep.subr.bf16.mxu0 0
        %595 = vmatpush1.bf16.msra.mxu0 %v403
        %596 = vmatprep.subr.bf16.mxu0 0
        %597 = vmatpush1.bf16.msra.mxu0 %v402
        %598 = vmatprep.subr.bf16.mxu0 0
        %599 = vmatpush1.bf16.msra.mxu0 %v401
        %600 = vmatprep.subr.bf16.mxu0 0
        %601 = vmatpush1.bf16.msra.mxu0 %v400
        %602 = vmatprep.subr.bf16.mxu0 0
        %603 = vmatpush1.bf16.msra.mxu0 %v399
        %604 = vmatprep.subr.bf16.mxu0 0
        %605 = vmatpush1.bf16.msra.mxu0 %v398
        %606 = vmatprep.subr.bf16.mxu0 0
        %607 = vmatpush2.bf16.msra.mxu0 %v413
        %608 = vmatprep.subr.bf16.mxu0 0
        %609 = vmatpush2.bf16.msra.mxu0 %v412
        %610 = vmatprep.subr.bf16.mxu0 0
        %611 = vmatpush2.bf16.msra.mxu0 %v411
        %612 = vmatprep.subr.bf16.mxu0 0
        %613 = vmatpush2.bf16.msra.mxu0 %v410
        %614 = vmatprep.subr.bf16.mxu0 0
        %615 = vmatpush2.bf16.msra.mxu0 %v409
        %616 = vmatprep.subr.bf16.mxu0 0
        %617 = vmatpush2.bf16.msra.mxu0 %v408
        %618 = vmatprep.subr.bf16.mxu0 0
        %619 = vmatpush2.bf16.msra.mxu0 %v407
        %620 = vmatprep.subr.bf16.mxu0 0
        %621 = vmatpush2.bf16.msra.mxu0 %v406
        %622 = vmatprep.mubr.bf16.mxu0 %v583
        %623 = vmatmul.mubr.bf16.gmra.mxu0 %v582
        %v624 = vpop.f32.mrf.mxu0
        %v625 = vadd.f32 %v312, %v624
        %v626 = vpop.f32.mrf.mxu0
        %v627 = vpop.f32.mrf.mxu0
        %v628 = vadd.f32 %v312, %v627
        %v629 = vpop.f32.mrf.mxu0
        %630 = vmatprep.mubr.bf16.mxu0 %v585
        %631 = vmatmul.mubr.bf16.gmra.mxu0 %v584
        %v632 = vpop.f32.mrf.mxu0
        %v633 = vadd.f32 %v312, %v632
        %v634 = vpop.f32.mrf.mxu0
        %v635 = vpop.f32.mrf.mxu0
        %v636 = vadd.f32 %v312, %v635
        %v637 = vpop.f32.mrf.mxu0
        %638 = vdwg.mxu0
        %v639 = vmax.f32 %v625, 0.0
        %v640 = vmax.f32 %v628, 0.0
        %v641 = vmax.f32 %v633, 0.0
        %v642 = vmax.f32 %v636, 0.0
        %v643 = vadd.f32 %v561, %v639
        %v644 = vadd.f32 %v562, %v640
        %v645 = vadd.f32 %v563, %v641
        %v646 = vadd.f32 %v564, %v642
        %s647 = scalar_lea.vmem %s242, 96 [#allocation2]
        %v648 = vld [vmem:[%s647] sm:$0xff]
        %v649 = vld [vmem:[%s647 + $0x8] sm:$0xff]
        %v650 = vld [vmem:[%s647 + $0x10] sm:$0xff]
        %v651 = vld [vmem:[%s647 + $0x18] sm:$0xff]
        %v656 = vunpack.c.l.b16 %v648
        %v657 = vunpack.c.h.b16 %v648
        %v658 = vunpack.c.l.b16 %v649
        %v659 = vunpack.c.h.b16 %v649
        %v660 = vunpack.c.l.b16 %v650
        %v661 = vunpack.c.h.b16 %v650
        %v662 = vunpack.c.l.b16 %v651
        %v663 = vunpack.c.h.b16 %v651
        %v664 = vpack.c.b16 %v658, %v656
        %v665 = vpack.c.b16 %v659, %v657
        %v666 = vpack.c.b16 %v662, %v660
        %v667 = vpack.c.b16 %v663, %v661
        %672 = vmatprep.subr.bf16.mxu0 0
        %673 = vmatpush1.bf16.msra.mxu0 %v405
        %674 = vmatprep.subr.bf16.mxu0 0
        %675 = vmatpush1.bf16.msra.mxu0 %v404
        %676 = vmatprep.subr.bf16.mxu0 0
        %677 = vmatpush1.bf16.msra.mxu0 %v403
        %678 = vmatprep.subr.bf16.mxu0 0
        %679 = vmatpush1.bf16.msra.mxu0 %v402
        %680 = vmatprep.subr.bf16.mxu0 0
        %681 = vmatpush1.bf16.msra.mxu0 %v401
        %682 = vmatprep.subr.bf16.mxu0 0
        %683 = vmatpush1.bf16.msra.mxu0 %v400
        %684 = vmatprep.subr.bf16.mxu0 0
        %685 = vmatpush1.bf16.msra.mxu0 %v399
        %686 = vmatprep.subr.bf16.mxu0 0
        %687 = vmatpush1.bf16.msra.mxu0 %v398
        %688 = vmatprep.subr.bf16.mxu0 0
        %689 = vmatpush2.bf16.msra.mxu0 %v413
        %690 = vmatprep.subr.bf16.mxu0 0
        %691 = vmatpush2.bf16.msra.mxu0 %v412
        %692 = vmatprep.subr.bf16.mxu0 0
        %693 = vmatpush2.bf16.msra.mxu0 %v411
        %694 = vmatprep.subr.bf16.mxu0 0
        %695 = vmatpush2.bf16.msra.mxu0 %v410
        %696 = vmatprep.subr.bf16.mxu0 0
        %697 = vmatpush2.bf16.msra.mxu0 %v409
        %698 = vmatprep.subr.bf16.mxu0 0
        %699 = vmatpush2.bf16.msra.mxu0 %v408
        %700 = vmatprep.subr.bf16.mxu0 0
        %701 = vmatpush2.bf16.msra.mxu0 %v407
        %702 = vmatprep.subr.bf16.mxu0 0
        %703 = vmatpush2.bf16.msra.mxu0 %v406
        %704 = vmatprep.mubr.bf16.mxu0 %v665
        %705 = vmatmul.mubr.bf16.gmra.mxu0 %v664
        %v706 = vpop.f32.mrf.mxu0
        %v707 = vadd.f32 %v312, %v706
        %v708 = vpop.f32.mrf.mxu0
        %v709 = vpop.f32.mrf.mxu0
        %v710 = vadd.f32 %v312, %v709
        %v711 = vpop.f32.mrf.mxu0
        %712 = vmatprep.mubr.bf16.mxu0 %v667
        %713 = vmatmul.mubr.bf16.gmra.mxu0 %v666
        %v714 = vpop.f32.mrf.mxu0
        %v715 = vadd.f32 %v312, %v714
        %v716 = vpop.f32.mrf.mxu0
        %v717 = vpop.f32.mrf.mxu0
        %v718 = vadd.f32 %v312, %v717
        %v719 = vpop.f32.mrf.mxu0
        %720 = vdwg.mxu0
        %v721 = vmax.f32 %v707, 0.0
        %v722 = vmax.f32 %v710, 0.0
        %v723 = vmax.f32 %v715, 0.0
        %v724 = vmax.f32 %v718, 0.0
        %v725 = vadd.f32 %v643, %v721
        %v726 = vadd.f32 %v644, %v722
        %v727 = vadd.f32 %v645, %v723
        %v728 = vadd.f32 %v646, %v724
        %v729 = vmul.f32 %v725, 0.25
        %v730 = vmul.f32 %v726, 0.25
        %v731 = vmul.f32 %v727, 0.25
        %v732 = vmul.f32 %v728, 0.25
        %733 = vst [vmem:[%s268] sm:$0xff] %v729
        %734 = vst [vmem:[%s268 + $0x8] sm:$0xff] %v730
        %735 = vst [vmem:[%s268 + $0x10] sm:$0xff] %v731
        %736 = vst [vmem:[%s268 + $0x18] sm:$0xff] %v732
        %s737 = smul.u32 4, %s14
        %p738 = scmp.lt.s32.totalorder %s737, 7
        %s739 = scalar_select %p738, %s737, 7
        %s740 = smul.addr %s739, 8
        %s741 = scalar_lea.vmem %s3, %s740
        // Predicated region
        $region71: #{lenet_pallas.4} parent=65 // pred_check
          %p742 = pneg %p100
        $region72: #{lenet_pallas.4} parent=65 // pred_check_branch
          %744 = sbr.rel (%p742) target = $region74
        $region73: #{lenet_pallas.4} parent=65 // pred_region
          %s745 = smul.u32 4, %s14
        $region74: #{lenet_pallas.4} parent=65 // pred_fallthru
          _
      $region66: #{lenet_pallas.4} parent=5 // pred_fallthru
        _
      %p746 = scmp.le.s32.totalorder 2, %s9
      // Predicated region
      $region75: #{lenet_pallas.4} parent=5 // pred_check
        %p747 = pneg %p746
      $region76: #{lenet_pallas.4} parent=5 // pred_check_branch
        %749 = sbr.rel (%p747) target = $region78
      $region77: #{lenet_pallas.4} parent=5 // pred_region
        %s750 = ssub.s32 %s9, 2
        // Predicated region
        $region79: #{lenet_pallas.4} parent=77 // pred_check
          %p751 = pneg %p106
        $region80: #{lenet_pallas.4} parent=77 // pred_check_branch
          %753 = sbr.rel (%p751) target = $region82
        $region81: #{lenet_pallas.4} parent=77 // pred_region
          %s754 = smul.u32 4, %s15
          %p755 = scmp.lt.s32.totalorder %s754, 7
          %s756 = scalar_select %p755, %s754, 7
          %s757 = smul.addr %s756, 8
          %s758 = scalar_lea.vmem %s3, %s757
        $region82: #{lenet_pallas.4} parent=77 // pred_fallthru
          _
      $region78: #{lenet_pallas.4} parent=5 // pred_fallthru
        _
    $region6: #{lenet_pallas.4} parent=1 // loop_footer
      %s13 = sadd.s32 1, %s9
    $region7: #{lenet_pallas.4} parent=1 // loop_footer_branch
      %8 = sbr.rel target = $region3
    $region8: #{lenet_pallas.4} parent=1 // loop_exit
      _

// kernel: lenet_pallas.5
$region0: #{lenet_pallas.5}
  #allocation0 [shape = 'u32[]', space=smem, size = 0x4, offset = 0x4, fixed_abs, tag = 'smem constant byte address 0x4 - core index']
  #allocation1 [shape = 'u32[144,128]{1,0:T(1,128)}', space=vmem, size = 0x12000, scoped, tag = 'internal scratch']
  %s0 = inlined_call_operand.vmem [shape: bf16[16,512], index: 0, kind: input, shape index: {}]
  %s1 = inlined_call_operand.vmem [shape: bf16[512,128], index: 1, kind: input, shape index: {}]
  %s2 = inlined_call_operand.vmem [shape: f32[1,128], index: 2, kind: input, shape index: {}]
  %s3 = inlined_call_operand.vmem [shape: bf16[128,128], index: 3, kind: input, shape index: {}]
  %s4 = inlined_call_operand.vmem [shape: f32[1,128], index: 4, kind: input, shape index: {}]
  %s5 = inlined_call_operand.vmem [shape: bf16[128,128], index: 5, kind: input, shape index: {}]
  %s6 = inlined_call_operand.vmem [shape: f32[1,128], index: 6, kind: input, shape index: {}]
  %s7 = inlined_call_operand.vmem [shape: f32[16,128], index: 7, kind: output, shape index: {}]
  %s8 = sld [smem:[#allocation0]]
  $region61: #{lenet_pallas.5} parent=0
    _
  %s10 = ssub.s32 1, %s8
  %s11 = scalar_select 0, %s10, %s8
  loop: start=0, step=1, limit=4
  $region2: #{lenet_pallas.5} parent=0 // loop_pre_header
    _
  $region3: #{lenet_pallas.5} parent=0 // loop_header
    %s13 = sphi 0, %s17
    %p14 = scmp.ge.s32.totalorder %s13, 4
    %s23 = sphi 0, %s25
    %s26 = sphi 0, %s23
    %s27 = sphi 0, %s26
    %s43 = sphi 0, %s27
    %s47 = sphi 0, %s47
    %s49 = sphi 0, %s47
    %s50 = sphi 0, %s49
    %s64 = sphi 0, %s50
    %s68 = sphi 0, %s68
    %s70 = sphi 0, %s68
    %s71 = sphi 0, %s70
    %s85 = sphi 0, %s71
    %s89 = sphi 0, %s89
    %s91 = sphi 0, %s89
    %s92 = sphi 0, %s91
    %s106 = sphi 0, %s92
    %s110 = sphi 0, %s110
    %s112 = sphi 0, %s110
    %s113 = sphi 0, %s112
    %s127 = sphi 0, %s113
    %s131 = sphi 0, %s131
    %s133 = sphi 0, %s131
    %s134 = sphi 0, %s133
    %s148 = sphi 0, %s134
    %s152 = sphi 0, %s152
    %s154 = sphi 0, %s152
    %s155 = sphi 0, %s154
    %s169 = sphi 0, %s155
    %s175 = sphi 0, %s177
    %s178 = sphi 0, %s175
    %s179 = sphi 0, %s178
    %s195 = sphi 0, %s179
  $region4: #{lenet_pallas.5} parent=0 // loop_header_branch
    %16 = sbr.rel (%p14) target = $region8
  $region5: #{lenet_pallas.5} parent=0 // loop_body
    %s18 = ssub.s32 %s13, 1
    %s19 = ssub.s32 %s13, 2
    %s20 = sadd.s32 %s13, 1
    %s21 = ssub.s32 %s13, %s20
    %p22 = scmp.eq.s32.totalorder %s21, 0
    %s24 = sadd.s32 %s23, 1
    %s25 = scalar_select %p22, %s23, %s24
    %p28 = pneg %p22
    %p29 = scmp.eq.s32.totalorder %s13, 1
    %p30 = por %p28, %p29
    %p31 = scmp.ne.s32.totalorder %s23, %s26
    %p32 = scmp.eq.s32.totalorder %s13, 0
    %p33 = por %p31, %p32
    %p34 = scmp.ne.s32.totalorder %s23, %s26
    %p35 = scmp.eq.s32.totalorder %s18, 1
    %p36 = por %p34, %p35
    %p37 = scmp.ne.s32.totalorder %s26, %s27
    %p38 = scmp.eq.s32.totalorder %s18, 0
    %p39 = por %p37, %p38
    %p40 = scmp.ne.s32.totalorder %s26, %s27
    %p41 = scmp.eq.s32.totalorder %s19, 1
    %p42 = por %p40, %p41
    %p44 = scmp.ne.s32.totalorder %s27, %s43
    %p45 = scmp.eq.s32.totalorder %s19, 0
    %p46 = por %p44, %p45
    %s48 = sadd.s32 %s47, 1
    %p51 = scmp.eq.s32.totalorder %s13, 1
    %p52 = scmp.ne.s32.totalorder %s47, %s49
    %p53 = scmp.eq.s32.totalorder %s13, 0
    %p54 = por %p52, %p53
    %p55 = scmp.ne.s32.totalorder %s47, %s49
    %p56 = scmp.eq.s32.totalorder %s18, 1
    %p57 = por %p55, %p56
    %p58 = scmp.ne.s32.totalorder %s49, %s50
    %p59 = scmp.eq.s32.totalorder %s18, 0
    %p60 = por %p58, %p59
    %p61 = scmp.ne.s32.totalorder %s49, %s50
    %p62 = scmp.eq.s32.totalorder %s19, 1
    %p63 = por %p61, %p62
    %p65 = scmp.ne.s32.totalorder %s50, %s64
    %p66 = scmp.eq.s32.totalorder %s19, 0
    %p67 = por %p65, %p66
    %s69 = sadd.s32 %s68, 1
    %p72 = scmp.eq.s32.totalorder %s13, 1
    %p73 = scmp.ne.s32.totalorder %s68, %s70
    %p74 = scmp.eq.s32.totalorder %s13, 0
    %p75 = por %p73, %p74
    %p76 = scmp.ne.s32.totalorder %s68, %s70
    %p77 = scmp.eq.s32.totalorder %s18, 1
    %p78 = por %p76, %p77
    %p79 = scmp.ne.s32.totalorder %s70, %s71
    %p80 = scmp.eq.s32.totalorder %s18, 0
    %p81 = por %p79, %p80
    %p82 = scmp.ne.s32.totalorder %s70, %s71
    %p83 = scmp.eq.s32.totalorder %s19, 1
    %p84 = por %p82, %p83
    %p86 = scmp.ne.s32.totalorder %s71, %s85
    %p87 = scmp.eq.s32.totalorder %s19, 0
    %p88 = por %p86, %p87
    %s90 = sadd.s32 %s89, 1
    %p93 = scmp.eq.s32.totalorder %s13, 1
    %p94 = scmp.ne.s32.totalorder %s89, %s91
    %p95 = scmp.eq.s32.totalorder %s13, 0
    %p96 = por %p94, %p95
    %p97 = scmp.ne.s32.totalorder %s89, %s91
    %p98 = scmp.eq.s32.totalorder %s18, 1
    %p99 = por %p97, %p98
    %p100 = scmp.ne.s32.totalorder %s91, %s92
    %p101 = scmp.eq.s32.totalorder %s18, 0
    %p102 = por %p100, %p101
    %p103 = scmp.ne.s32.totalorder %s91, %s92
    %p104 = scmp.eq.s32.totalorder %s19, 1
    %p105 = por %p103, %p104
    %p107 = scmp.ne.s32.totalorder %s92, %s106
    %p108 = scmp.eq.s32.totalorder %s19, 0
    %p109 = por %p107, %p108
    %s111 = sadd.s32 %s110, 1
    %p114 = scmp.eq.s32.totalorder %s13, 1
    %p115 = scmp.ne.s32.totalorder %s110, %s112
    %p116 = scmp.eq.s32.totalorder %s13, 0
    %p117 = por %p115, %p116
    %p118 = scmp.ne.s32.totalorder %s110, %s112
    %p119 = scmp.eq.s32.totalorder %s18, 1
    %p120 = por %p118, %p119
    %p121 = scmp.ne.s32.totalorder %s112, %s113
    %p122 = scmp.eq.s32.totalorder %s18, 0
    %p123 = por %p121, %p122
    %p124 = scmp.ne.s32.totalorder %s112, %s113
    %p125 = scmp.eq.s32.totalorder %s19, 1
    %p126 = por %p124, %p125
    %p128 = scmp.ne.s32.totalorder %s113, %s127
    %p129 = scmp.eq.s32.totalorder %s19, 0
    %p130 = por %p128, %p129
    %s132 = sadd.s32 %s131, 1
    %p135 = scmp.eq.s32.totalorder %s13, 1
    %p136 = scmp.ne.s32.totalorder %s131, %s133
    %p137 = scmp.eq.s32.totalorder %s13, 0
    %p138 = por %p136, %p137
    %p139 = scmp.ne.s32.totalorder %s131, %s133
    %p140 = scmp.eq.s32.totalorder %s18, 1
    %p141 = por %p139, %p140
    %p142 = scmp.ne.s32.totalorder %s133, %s134
    %p143 = scmp.eq.s32.totalorder %s18, 0
    %p144 = por %p142, %p143
    %p145 = scmp.ne.s32.totalorder %s133, %s134
    %p146 = scmp.eq.s32.totalorder %s19, 1
    %p147 = por %p145, %p146
    %p149 = scmp.ne.s32.totalorder %s134, %s148
    %p150 = scmp.eq.s32.totalorder %s19, 0
    %p151 = por %p149, %p150
    %s153 = sadd.s32 %s152, 1
    %p156 = scmp.eq.s32.totalorder %s13, 1
    %p157 = scmp.ne.s32.totalorder %s152, %s154
    %p158 = scmp.eq.s32.totalorder %s13, 0
    %p159 = por %p157, %p158
    %p160 = scmp.ne.s32.totalorder %s152, %s154
    %p161 = scmp.eq.s32.totalorder %s18, 1
    %p162 = por %p160, %p161
    %p163 = scmp.ne.s32.totalorder %s154, %s155
    %p164 = scmp.eq.s32.totalorder %s18, 0
    %p165 = por %p163, %p164
    %p166 = scmp.ne.s32.totalorder %s154, %s155
    %p167 = scmp.eq.s32.totalorder %s19, 1
    %p168 = por %p166, %p167
    %p170 = scmp.ne.s32.totalorder %s155, %s169
    %p171 = scmp.eq.s32.totalorder %s19, 0
    %p172 = por %p170, %p171
    %s173 = ssub.s32 %s13, %s20
    %p174 = scmp.eq.s32.totalorder %s173, 0
    %s176 = sadd.s32 %s175, 1
    %s177 = scalar_select %p174, %s175, %s176
    %p180 = pneg %p174
    %p181 = scmp.eq.s32.totalorder %s13, 1
    %p182 = por %p180, %p181
    %p183 = scmp.ne.s32.totalorder %s175, %s178
    %p184 = scmp.eq.s32.totalorder %s13, 0
    %p185 = por %p183, %p184
    %p186 = scmp.ne.s32.totalorder %s175, %s178
    %p187 = scmp.eq.s32.totalorder %s18, 1
    %p188 = por %p186, %p187
    %p189 = scmp.ne.s32.totalorder %s178, %s179
    %p190 = scmp.eq.s32.totalorder %s18, 0
    %p191 = por %p189, %p190
    %p192 = scmp.ne.s32.totalorder %s178, %s179
    %p193 = scmp.eq.s32.totalorder %s19, 1
    %p194 = por %p192, %p193
    %p196 = scmp.ne.s32.totalorder %s179, %s195
    %p197 = scmp.eq.s32.totalorder %s19, 0
    %p198 = por %p196, %p197
    %p199 = scmp.le.s32.totalorder 1, %s13
    %p200 = scmp.lt.s32.totalorder %s13, 3
    %p201 = pnand %p199, %p200
    %p202 = pneg %p201
    // Predicated region
    $region9: #{lenet_pallas.5} parent=5 // pred_check
      _
    $region10: #{lenet_pallas.5} parent=5 // pred_check_branch
      %204 = sbr.rel (%p201) target = $region12
    $region11: #{lenet_pallas.5} parent=5 // pred_region
      %s205 = ssub.s32 %s13, 1
      // Predicated region
      $region13: #{lenet_pallas.5} parent=11 // pred_check
        %p206 = pneg %p60
      $region14: #{lenet_pallas.5} parent=11 // pred_check_branch
        %208 = sbr.rel (%p206) target = $region16
      $region15: #{lenet_pallas.5} parent=11 // pred_region
        _
      $region16: #{lenet_pallas.5} parent=11 // pred_fallthru
        _
      // Predicated region
      $region17: #{lenet_pallas.5} parent=11 // pred_check
        %p209 = pneg %p81
      $region18: #{lenet_pallas.5} parent=11 // pred_check_branch
        %211 = sbr.rel (%p209) target = $region20
      $region19: #{lenet_pallas.5} parent=11 // pred_region
        _
      $region20: #{lenet_pallas.5} parent=11 // pred_fallthru
        _
      // Predicated region
      $region21: #{lenet_pallas.5} parent=11 // pred_check
        %p212 = pneg %p102
      $region22: #{lenet_pallas.5} parent=11 // pred_check_branch
        %214 = sbr.rel (%p212) target = $region24
      $region23: #{lenet_pallas.5} parent=11 // pred_region
        _
      $region24: #{lenet_pallas.5} parent=11 // pred_fallthru
        _
      // Predicated region
      $region25: #{lenet_pallas.5} parent=11 // pred_check
        %p215 = pneg %p123
      $region26: #{lenet_pallas.5} parent=11 // pred_check_branch
        %217 = sbr.rel (%p215) target = $region28
      $region27: #{lenet_pallas.5} parent=11 // pred_region
        _
      $region28: #{lenet_pallas.5} parent=11 // pred_fallthru
        _
      // Predicated region
      $region29: #{lenet_pallas.5} parent=11 // pred_check
        %p218 = pneg %p144
      $region30: #{lenet_pallas.5} parent=11 // pred_check_branch
        %220 = sbr.rel (%p218) target = $region32
      $region31: #{lenet_pallas.5} parent=11 // pred_region
        _
      $region32: #{lenet_pallas.5} parent=11 // pred_fallthru
        _
      // Predicated region
      $region33: #{lenet_pallas.5} parent=11 // pred_check
        %p221 = pneg %p165
      $region34: #{lenet_pallas.5} parent=11 // pred_check_branch
        %223 = sbr.rel (%p221) target = $region36
      $region35: #{lenet_pallas.5} parent=11 // pred_region
        _
      $region36: #{lenet_pallas.5} parent=11 // pred_fallthru
        _
    $region12: #{lenet_pallas.5} parent=5 // pred_fallthru
      _
    %p224 = scmp.lt.s32.totalorder %s13, 2
    // Predicated region
    $region37: #{lenet_pallas.5} parent=5 // pred_check
      %p225 = pneg %p224
    $region38: #{lenet_pallas.5} parent=5 // pred_check_branch
      %227 = sbr.rel (%p225) target = $region40
    $region39: #{lenet_pallas.5} parent=5 // pred_region
      // Predicated region
      $region41: #{lenet_pallas.5} parent=39 // pred_check
        %p228 = pneg %p33
      $region42: #{lenet_pallas.5} parent=39 // pred_check_branch
        %230 = sbr.rel (%p228) target = $region44
      $region43: #{lenet_pallas.5} parent=39 // pred_region
        %p231 = scmp.lt.s32.totalorder %s13, 1
        %s232 = scalar_select %p231, %s13, 1
        %s233 = smul.addr %s232, 4
        %s234 = smul.addr %s233, 4
        %s235 = scalar_lea.vmem %s0, %s234
      $region44: #{lenet_pallas.5} parent=39 // pred_fallthru
        _
    $region40: #{lenet_pallas.5} parent=5 // pred_fallthru
      _
    %p236 = scmp.le.s32.totalorder 1, %s13
    %p237 = scmp.lt.s32.totalorder %s13, 3
    %p238 = pnand %p236, %p237
    %p239 = pneg %p238
    // Predicated region
    $region45: #{lenet_pallas.5} parent=5 // pred_check
      _
    $region46: #{lenet_pallas.5} parent=5 // pred_check_branch
      %241 = sbr.rel (%p238) target = $region48
    $region47: #{lenet_pallas.5} parent=5 // pred_region
      %s242 = ssub.s32 %s13, 1
      %p243 = scmp.lt.s32.totalorder %s18, 1
      %s244 = scalar_select %p243, %s18, 1
      %s245 = smul.addr %s244, 4
      %s246 = smul.addr %s245, 4
      %s247 = scalar_lea.vmem %s0, %s246
      %p248 = pneg %p39
      %p249 = pneg %p36
      %p250 = pneg %p60
      %p251 = pneg %p57
      %p252 = pneg %p81
      %p253 = pneg %p78
      %p254 = pneg %p102
      %p255 = pneg %p99
      %p256 = pneg %p123
      %p257 = pneg %p120
      %p258 = pneg %p144
      %p259 = pneg %p141
      %p260 = pneg %p165
      %p261 = pneg %p162
      %p262 = pneg %p191
      %p263 = pneg %p188
      %p264 = scmp.lt.s32.totalorder %s18, 1
      %s265 = scalar_select %p264, %s18, 1
      %s266 = smul.addr %s265, 8
      %s267 = scalar_lea.vmem %s7, %s266
      %p268 = scmp.lt.s32.totalorder %s18, 1
      %s269 = scalar_select %p268, %s18, 1
      %s270 = smul.addr %s269, 4
      %s271 = smul.addr %s270, 4
      %s272 = scalar_lea.vmem %s0, %s271
      %p273 = scmp.lt.s32.totalorder %s18, 1
      %s274 = scalar_select %p273, %s18, 1
      %s275 = smul.addr %s274, 8
      %s276 = scalar_lea.vmem %s7, %s275
      %v278 = vld [vmem:[%s272] sm:$0xff]
      %v279 = vld [vmem:[%s272 + $0x8] sm:$0xff]
      %v280 = vld [vmem:[%s1] sm:$0xf]
      %v281 = vld [vmem:[%s1 + $0x4] sm:$0xf]
      %v282 = vld [vmem:[%s1 + $0x8] sm:$0xf]
      %v283 = vld [vmem:[%s1 + $0xc] sm:$0xf]
      %v284 = vld [vmem:[%s1 + $0x10] sm:$0xf]
      %v285 = vld [vmem:[%s1 + $0x14] sm:$0xf]
      %v286 = vld [vmem:[%s1 + $0x18] sm:$0xf]
      %v287 = vld [vmem:[%s1 + $0x1c] sm:$0xf]
      %v288 = vld [vmem:[%s1 + $0x20] sm:$0xf]
      %v289 = vld [vmem:[%s1 + $0x24] sm:$0xf]
      %v290 = vld [vmem:[%s1 + $0x28] sm:$0xf]
      %v291 = vld [vmem:[%s1 + $0x2c] sm:$0xf]
      %v292 = vld [vmem:[%s1 + $0x30] sm:$0xf]
      %v293 = vld [vmem:[%s1 + $0x34] sm:$0xf]
      %v294 = vld [vmem:[%s1 + $0x38] sm:$0xf]
      %v295 = vld [vmem:[%s1 + $0x3c] sm:$0xf]
      %v296 = vld [vmem:[%s1 + $0x40] sm:$0xf]
      %v297 = vld [vmem:[%s1 + $0x44] sm:$0xf]
      %v298 = vld [vmem:[%s1 + $0x48] sm:$0xf]
      %v299 = vld [vmem:[%s1 + $0x4c] sm:$0xf]
      %v300 = vld [vmem:[%s1 + $0x50] sm:$0xf]
      %v301 = vld [vmem:[%s1 + $0x54] sm:$0xf]
      %v302 = vld [vmem:[%s1 + $0x58] sm:$0xf]
      %v303 = vld [vmem:[%s1 + $0x5c] sm:$0xf]
      %v304 = vld [vmem:[%s1 + $0x60] sm:$0xf]
      %v305 = vld [vmem:[%s1 + $0x64] sm:$0xf]
      %v306 = vld [vmem:[%s1 + $0x68] sm:$0xf]
      %v307 = vld [vmem:[%s1 + $0x6c] sm:$0xf]
      %v308 = vld [vmem:[%s1 + $0x70] sm:$0xf]
      %v309 = vld [vmem:[%s1 + $0x74] sm:$0xf]
      %v310 = vld [vmem:[%s1 + $0x78] sm:$0xf]
      %v311 = vld [vmem:[%s1 + $0x7c] sm:$0xf]
      %v312 = vld [vmem:[%s1 + $0x80] sm:$0xf]
      %v313 = vld [vmem:[%s1 + $0x84] sm:$0xf]
      %v314 = vld [vmem:[%s1 + $0x88] sm:$0xf]
      %v315 = vld [vmem:[%s1 + $0x8c] sm:$0xf]
      %v316 = vld [vmem:[%s1 + $0x90] sm:$0xf]
      %v317 = vld [vmem:[%s1 + $0x94] sm:$0xf]
      %v318 = vld [vmem:[%s1 + $0x98] sm:$0xf]
      %v319 = vld [vmem:[%s1 + $0x9c] sm:$0xf]
      %v320 = vld [vmem:[%s1 + $0xa0] sm:$0xf]
      %v321 = vld [vmem:[%s1 + $0xa4] sm:$0xf]
      %v322 = vld [vmem:[%s1 + $0xa8] sm:$0xf]
      %v323 = vld [vmem:[%s1 + $0xac] sm:$0xf]
      %v324 = vld [vmem:[%s1 + $0xb0] sm:$0xf]
      %v325 = vld [vmem:[%s1 + $0xb4] sm:$0xf]
      %v326 = vld [vmem:[%s1 + $0xb8] sm:$0xf]
      %v327 = vld [vmem:[%s1 + $0xbc] sm:$0xf]
      %v328 = vld [vmem:[%s1 + $0xc0] sm:$0xf]
      %v329 = vld [vmem:[%s1 + $0xc4] sm:$0xf]
      %v330 = vld [vmem:[%s1 + $0xc8] sm:$0xf]
      %v331 = vld [vmem:[%s1 + $0xcc] sm:$0xf]
      %v332 = vld [vmem:[%s1 + $0xd0] sm:$0xf]
      %v333 = vld [vmem:[%s1 + $0xd4] sm:$0xf]
      %v334 = vld [vmem:[%s1 + $0xd8] sm:$0xf]
      %v335 = vld [vmem:[%s1 + $0xdc] sm:$0xf]
      %v336 = vld [vmem:[%s1 + $0xe0] sm:$0xf]
      %v337 = vld [vmem:[%s1 + $0xe4] sm:$0xf]
      %v338 = vld [vmem:[%s1 + $0xe8] sm:$0xf]
      %v339 = vld [vmem:[%s1 + $0xec] sm:$0xf]
      %v340 = vld [vmem:[%s1 + $0xf0] sm:$0xf]
      %v341 = vld [vmem:[%s1 + $0xf4] sm:$0xf]
      %v342 = vld [vmem:[%s1 + $0xf8] sm:$0xf]
      %v343 = vld [vmem:[%s1 + $0xfc] sm:$0xf]
      %v344 = vld [vmem:[%s2] sm:$0x1]
      %v346 = vlaneseq
      %v347 = vshrl.u32 %v346, 7
      %v348 = vsub.s32 0, %v347
      %v349 = vrot.slane %v344, %v348
      %v353 = vunpack.c.l.b16 %v278
      %v354 = vunpack.c.h.b16 %v278
      %v355 = vunpack.c.l.b16 %v279
      %v356 = vunpack.c.h.b16 %v279
      %v357 = vpack.c.b16 %v353, %v353
      %v358 = vpack.c.b16 %v354, %v354
      %v359 = vpack.c.b16 %v355, %v355
      %v360 = vpack.c.b16 %v356, %v356
      %v429 = vunpack.c.l.b16 %v280
      %v430 = vunpack.c.l.b16 %v281
      %v431 = vunpack.c.l.b16 %v282
      %v432 = vunpack.c.l.b16 %v283
      %v433 = vunpack.c.l.b16 %v284
      %v434 = vunpack.c.l.b16 %v285
      %v435 = vunpack.c.l.b16 %v286
      %v436 = vunpack.c.l.b16 %v287
      %v437 = vunpack.c.l.b16 %v288
      %v438 = vunpack.c.l.b16 %v289
      %v439 = vunpack.c.l.b16 %v290
      %v440 = vunpack.c.l.b16 %v291
      %v441 = vunpack.c.l.b16 %v292
      %v442 = vunpack.c.l.b16 %v293
      %v443 = vunpack.c.l.b16 %v294
      %v444 = vunpack.c.l.b16 %v295
      %v445 = vunpack.c.l.b16 %v296
      %v446 = vunpack.c.l.b16 %v297
      %v447 = vunpack.c.l.b16 %v298
      %v448 = vunpack.c.l.b16 %v299
      %v449 = vunpack.c.l.b16 %v300
      %v450 = vunpack.c.l.b16 %v301
      %v451 = vunpack.c.l.b16 %v302
      %v452 = vunpack.c.l.b16 %v303
      %v453 = vunpack.c.l.b16 %v304
      %v454 = vunpack.c.l.b16 %v305
      %v455 = vunpack.c.l.b16 %v306
      %v456 = vunpack.c.l.b16 %v307
      %v457 = vunpack.c.l.b16 %v308
      %v458 = vunpack.c.l.b16 %v309
      %v459 = vunpack.c.l.b16 %v310
      %v460 = vunpack.c.l.b16 %v311
      %v461 = vunpack.c.l.b16 %v312
      %v462 = vunpack.c.l.b16 %v313
      %v463 = vunpack.c.l.b16 %v314
      %v464 = vunpack.c.l.b16 %v315
      %v465 = vunpack.c.l.b16 %v316
      %v466 = vunpack.c.l.b16 %v317
      %v467 = vunpack.c.l.b16 %v318
      %v468 = vunpack.c.l.b16 %v319
      %v469 = vunpack.c.l.b16 %v320
      %v470 = vunpack.c.l.b16 %v321
      %v471 = vunpack.c.l.b16 %v322
      %v472 = vunpack.c.l.b16 %v323
      %v473 = vunpack.c.l.b16 %v324
      %v474 = vunpack.c.l.b16 %v325
      %v475 = vunpack.c.l.b16 %v326
      %v476 = vunpack.c.l.b16 %v327
      %v477 = vunpack.c.l.b16 %v328
      %v478 = vunpack.c.l.b16 %v329
      %v479 = vunpack.c.l.b16 %v330
      %v480 = vunpack.c.l.b16 %v331
      %v481 = vunpack.c.l.b16 %v332
      %v482 = vunpack.c.l.b16 %v333
      %v483 = vunpack.c.l.b16 %v334
      %v484 = vunpack.c.l.b16 %v335
      %v485 = vunpack.c.l.b16 %v336
      %v486 = vunpack.c.l.b16 %v337
      %v487 = vunpack.c.l.b16 %v338
      %v488 = vunpack.c.l.b16 %v339
      %v489 = vunpack.c.l.b16 %v340
      %v490 = vunpack.c.l.b16 %v341
      %v491 = vunpack.c.l.b16 %v342
      %v492 = vunpack.c.l.b16 %v343
      %v493 = vpack.c.b16 %v430, %v429
      %v494 = vpack.c.b16 %v432, %v431
      %v495 = vpack.c.b16 %v434, %v433
      %v496 = vpack.c.b16 %v436, %v435
      %v497 = vpack.c.b16 %v438, %v437
      %v498 = vpack.c.b16 %v440, %v439
      %v499 = vpack.c.b16 %v442, %v441
      %v500 = vpack.c.b16 %v444, %v443
      %v501 = vpack.c.b16 %v446, %v445
      %v502 = vpack.c.b16 %v448, %v447
      %v503 = vpack.c.b16 %v450, %v449
      %v504 = vpack.c.b16 %v452, %v451
      %v505 = vpack.c.b16 %v454, %v453
      %v506 = vpack.c.b16 %v456, %v455
      %v507 = vpack.c.b16 %v458, %v457
      %v508 = vpack.c.b16 %v460, %v459
      %v509 = vpack.c.b16 %v462, %v461
      %v510 = vpack.c.b16 %v464, %v463
      %v511 = vpack.c.b16 %v466, %v465
      %v512 = vpack.c.b16 %v468, %v467
      %v513 = vpack.c.b16 %v470, %v469
      %v514 = vpack.c.b16 %v472, %v471
      %v515 = vpack.c.b16 %v474, %v473
      %v516 = vpack.c.b16 %v476, %v475
      %v517 = vpack.c.b16 %v478, %v477
      %v518 = vpack.c.b16 %v480, %v479
      %v519 = vpack.c.b16 %v482, %v481
      %v520 = vpack.c.b16 %v484, %v483
      %v521 = vpack.c.b16 %v486, %v485
      %v522 = vpack.c.b16 %v488, %v487
      %v523 = vpack.c.b16 %v490, %v489
      %v524 = vpack.c.b16 %v492, %v491
      %557 = vmatprep.subr.bf16.mxu0 0
      %558 = vmatpush1.bf16.msra.mxu0 %v500
      %559 = vmatprep.subr.bf16.mxu0 0
      %560 = vmatpush1.bf16.msra.mxu0 %v499
      %561 = vmatprep.subr.bf16.mxu0 0
      %562 = vmatpush1.bf16.msra.mxu0 %v498
      %563 = vmatprep.subr.bf16.mxu0 0
      %564 = vmatpush1.bf16.msra.mxu0 %v497
      %565 = vmatprep.subr.bf16.mxu0 0
      %566 = vmatpush1.bf16.msra.mxu0 %v496
      %567 = vmatprep.subr.bf16.mxu0 0
      %568 = vmatpush1.bf16.msra.mxu0 %v495
      %569 = vmatprep.subr.bf16.mxu0 0
      %570 = vmatpush1.bf16.msra.mxu0 %v494
      %571 = vmatprep.subr.bf16.mxu0 0
      %572 = vmatpush1.bf16.msra.mxu0 %v493
      %573 = vmatprep.subr.bf16.mxu0 0
      %574 = vmatpush2.bf16.msra.mxu0 %v508
      %575 = vmatprep.subr.bf16.mxu0 0
      %576 = vmatpush2.bf16.msra.mxu0 %v507
      %577 = vmatprep.subr.bf16.mxu0 0
      %578 = vmatpush2.bf16.msra.mxu0 %v506
      %579 = vmatprep.subr.bf16.mxu0 0
      %580 = vmatpush2.bf16.msra.mxu0 %v505
      %581 = vmatprep.subr.bf16.mxu0 0
      %582 = vmatpush2.bf16.msra.mxu0 %v504
      %583 = vmatprep.subr.bf16.mxu0 0
      %584 = vmatpush2.bf16.msra.mxu0 %v503
      %585 = vmatprep.subr.bf16.mxu0 0
      %586 = vmatpush2.bf16.msra.mxu0 %v502
      %587 = vmatprep.subr.bf16.mxu0 0
      %588 = vmatpush2.bf16.msra.mxu0 %v501
      %589 = vmatprep.mubr.bf16.mxu0 %v358
      %590 = vmatmul.mubr.bf16.gmra.mxu0 %v357
      %v591 = vpop.f32.mrf.mxu0
      %v592 = vadd.f32 %v349, %v591
      %v593 = vpop.f32.mrf.mxu0
      %v594 = vpop.f32.mrf.mxu0
      %v595 = vpop.f32.mrf.mxu0
      %596 = vdwg.mxu0
      %597 = vmatprep.subr.bf16.mxu0 0
      %598 = vmatpush1.bf16.msra.mxu0 %v516
      %599 = vmatprep.subr.bf16.mxu0 0
      %600 = vmatpush1.bf16.msra.mxu0 %v515
      %601 = vmatprep.subr.bf16.mxu0 0
      %602 = vmatpush1.bf16.msra.mxu0 %v514
      %603 = vmatprep.subr.bf16.mxu0 0
      %604 = vmatpush1.bf16.msra.mxu0 %v513
      %605 = vmatprep.subr.bf16.mxu0 0
      %606 = vmatpush1.bf16.msra.mxu0 %v512
      %607 = vmatprep.subr.bf16.mxu0 0
      %608 = vmatpush1.bf16.msra.mxu0 %v511
      %609 = vmatprep.subr.bf16.mxu0 0
      %610 = vmatpush1.bf16.msra.mxu0 %v510
      %611 = vmatprep.subr.bf16.mxu0 0
      %612 = vmatpush1.bf16.msra.mxu0 %v509
      %613 = vmatprep.subr.bf16.mxu0 0
      %614 = vmatpush2.bf16.msra.mxu0 %v524
      %615 = vmatprep.subr.bf16.mxu0 0
      %616 = vmatpush2.bf16.msra.mxu0 %v523
      %617 = vmatprep.subr.bf16.mxu0 0
      %618 = vmatpush2.bf16.msra.mxu0 %v522
      %619 = vmatprep.subr.bf16.mxu0 0
      %620 = vmatpush2.bf16.msra.mxu0 %v521
      %621 = vmatprep.subr.bf16.mxu0 0
      %622 = vmatpush2.bf16.msra.mxu0 %v520
      %623 = vmatprep.subr.bf16.mxu0 0
      %624 = vmatpush2.bf16.msra.mxu0 %v519
      %625 = vmatprep.subr.bf16.mxu0 0
      %626 = vmatpush2.bf16.msra.mxu0 %v518
      %627 = vmatprep.subr.bf16.mxu0 0
      %628 = vmatpush2.bf16.msra.mxu0 %v517
      %629 = vmatprep.mubr.bf16.mxu0 %v360
      %630 = vmatmul.mubr.bf16.gmra.mxu0 %v359
      %v631 = vpop.f32.mrf.mxu0
      %v632 = vadd.f32 %v592, %v631
      %v633 = vpop.f32.mrf.mxu0
      %v634 = vpop.f32.mrf.mxu0
      %v635 = vpop.f32.mrf.mxu0
      %636 = vdwg.mxu0
      %v637 = vmax.f32 %v632, 0.0
      %v638 = vpack.c.bf16 %v637, %v637
      %v639 = vld [vmem:[%s3] sm:$0xf]
      %v640 = vld [vmem:[%s3 + $0x4] sm:$0xf]
      %v641 = vld [vmem:[%s3 + $0x8] sm:$0xf]
      %v642 = vld [vmem:[%s3 + $0xc] sm:$0xf]
      %v643 = vld [vmem:[%s3 + $0x10] sm:$0xf]
      %v644 = vld [vmem:[%s3 + $0x14] sm:$0xf]
      %v645 = vld [vmem:[%s3 + $0x18] sm:$0xf]
      %v646 = vld [vmem:[%s3 + $0x1c] sm:$0xf]
      %v647 = vld [vmem:[%s3 + $0x20] sm:$0xf]
      %v648 = vld [vmem:[%s3 + $0x24] sm:$0xf]
      %v649 = vld [vmem:[%s3 + $0x28] sm:$0xf]
      %v650 = vld [vmem:[%s3 + $0x2c] sm:$0xf]
      %v651 = vld [vmem:[%s3 + $0x30] sm:$0xf]
      %v652 = vld [vmem:[%s3 + $0x34] sm:$0xf]
      %v653 = vld [vmem:[%s3 + $0x38] sm:$0xf]
      %v654 = vld [vmem:[%s3 + $0x3c] sm:$0xf]
      %v655 = vld [vmem:[%s4] sm:$0x1]
      %v657 = vlaneseq
      %v658 = vshrl.u32 %v657, 7
      %v659 = vsub.s32 0, %v658
      %v660 = vrot.slane %v655, %v659
      %v678 = vunpack.c.l.b16 %v639
      %v679 = vunpack.c.l.b16 %v640
      %v680 = vunpack.c.l.b16 %v641
      %v681 = vunpack.c.l.b16 %v642
      %v682 = vunpack.c.l.b16 %v643
      %v683 = vunpack.c.l.b16 %v644
      %v684 = vunpack.c.l.b16 %v645
      %v685 = vunpack.c.l.b16 %v646
      %v686 = vunpack.c.l.b16 %v647
      %v687 = vunpack.c.l.b16 %v648
      %v688 = vunpack.c.l.b16 %v649
      %v689 = vunpack.c.l.b16 %v650
      %v690 = vunpack.c.l.b16 %v651
      %v691 = vunpack.c.l.b16 %v652
      %v692 = vunpack.c.l.b16 %v653
      %v693 = vunpack.c.l.b16 %v654
      %v694 = vpack.c.b16 %v679, %v678
      %v695 = vpack.c.b16 %v681, %v680
      %v696 = vpack.c.b16 %v683, %v682
      %v697 = vpack.c.b16 %v685, %v684
      %v698 = vpack.c.b16 %v687, %v686
      %v699 = vpack.c.b16 %v689, %v688
      %v700 = vpack.c.b16 %v691, %v690
      %v701 = vpack.c.b16 %v693, %v692
      %710 = vmatprep.subr.bf16.mxu0 0
      %711 = vmatpush1.bf16.msra.mxu0 %v701
      %712 = vmatprep.subr.bf16.mxu0 0
      %713 = vmatpush1.bf16.msra.mxu0 %v700
      %714 = vmatprep.subr.bf16.mxu0 0
      %715 = vmatpush1.bf16.msra.mxu0 %v699
      %716 = vmatprep.subr.bf16.mxu0 0
      %717 = vmatpush1.bf16.msra.mxu0 %v698
      %718 = vmatprep.subr.bf16.mxu0 0
      %719 = vmatpush1.bf16.msra.mxu0 %v697
      %720 = vmatprep.subr.bf16.mxu0 0
      %721 = vmatpush1.bf16.msra.mxu0 %v696
      %722 = vmatprep.subr.bf16.mxu0 0
      %723 = vmatpush1.bf16.msra.mxu0 %v695
      %724 = vmatprep.subr.bf16.mxu0 0
      %725 = vmatpush1.bf16.msra.mxu0 %v694
      %726 = vmatprep.subr.bf16.mxu0 0
      %727 = vmatpush2.bf16.msra.mxu0 0
      %728 = vmatprep.subr.bf16.mxu0 0
      %729 = vmatpush2.bf16.msra.mxu0 0
      %730 = vmatprep.subr.bf16.mxu0 0
      %731 = vmatpush2.bf16.msra.mxu0 0
      %732 = vmatprep.subr.bf16.mxu0 0
      %733 = vmatpush2.bf16.msra.mxu0 0
      %734 = vmatprep.subr.bf16.mxu0 0
      %735 = vmatpush2.bf16.msra.mxu0 0
      %736 = vmatprep.subr.bf16.mxu0 0
      %737 = vmatpush2.bf16.msra.mxu0 0
      %738 = vmatprep.subr.bf16.mxu0 0
      %739 = vmatpush2.bf16.msra.mxu0 0
      %740 = vmatprep.subr.bf16.mxu0 0
      %741 = vmatpush2.bf16.msra.mxu0 0
      %742 = vmatprep.mubr.bf16.mxu0 0
      %743 = vmatmul.mubr.bf16.gmra.mxu0 %v638
      %v744 = vpop.f32.mrf.mxu0
      %v745 = vadd.f32 %v660, %v744
      %v746 = vpop.f32.mrf.mxu0
      %v747 = vpop.f32.mrf.mxu0
      %v748 = vpop.f32.mrf.mxu0
      %749 = vdwg.mxu0
      %v750 = vmax.f32 %v745, 0.0
      %v751 = vpack.c.bf16 %v750, %v750
      %v752 = vld [vmem:[%s5] sm:$0xf]
      %v753 = vld [vmem:[%s5 + $0x4] sm:$0xf]
      %v754 = vld [vmem:[%s5 + $0x8] sm:$0xf]
      %v755 = vld [vmem:[%s5 + $0xc] sm:$0xf]
      %v756 = vld [vmem:[%s5 + $0x10] sm:$0xf]
      %v757 = vld [vmem:[%s5 + $0x14] sm:$0xf]
      %v758 = vld [vmem:[%s5 + $0x18] sm:$0xf]
      %v759 = vld [vmem:[%s5 + $0x1c] sm:$0xf]
      %v760 = vld [vmem:[%s5 + $0x20] sm:$0xf]
      %v761 = vld [vmem:[%s5 + $0x24] sm:$0xf]
      %v762 = vld [vmem:[%s5 + $0x28] sm:$0xf]
      %v763 = vld [vmem:[%s5 + $0x2c] sm:$0xf]
      %v764 = vld [vmem:[%s5 + $0x30] sm:$0xf]
      %v765 = vld [vmem:[%s5 + $0x34] sm:$0xf]
      %v766 = vld [vmem:[%s5 + $0x38] sm:$0xf]
      %v767 = vld [vmem:[%s5 + $0x3c] sm:$0xf]
      %v768 = vld [vmem:[%s6] sm:$0x1]
      %v770 = vlaneseq
      %v771 = vshrl.u32 %v770, 7
      %v772 = vsub.s32 0, %v771
      %v773 = vrot.slane %v768, %v772
      %v791 = vunpack.c.l.b16 %v752
      %v792 = vunpack.c.l.b16 %v753
      %v793 = vunpack.c.l.b16 %v754
      %v794 = vunpack.c.l.b16 %v755
      %v795 = vunpack.c.l.b16 %v756
      %v796 = vunpack.c.l.b16 %v757
      %v797 = vunpack.c.l.b16 %v758
      %v798 = vunpack.c.l.b16 %v759
      %v799 = vunpack.c.l.b16 %v760
      %v800 = vunpack.c.l.b16 %v761
      %v801 = vunpack.c.l.b16 %v762
      %v802 = vunpack.c.l.b16 %v763
      %v803 = vunpack.c.l.b16 %v764
      %v804 = vunpack.c.l.b16 %v765
      %v805 = vunpack.c.l.b16 %v766
      %v806 = vunpack.c.l.b16 %v767
      %v807 = vpack.c.b16 %v792, %v791
      %v808 = vpack.c.b16 %v794, %v793
      %v809 = vpack.c.b16 %v796, %v795
      %v810 = vpack.c.b16 %v798, %v797
      %v811 = vpack.c.b16 %v800, %v799
      %v812 = vpack.c.b16 %v802, %v801
      %v813 = vpack.c.b16 %v804, %v803
      %v814 = vpack.c.b16 %v806, %v805
      %823 = vmatprep.subr.bf16.mxu0 0
      %824 = vmatpush1.bf16.msra.mxu0 %v814
      %825 = vmatprep.subr.bf16.mxu0 0
      %826 = vmatpush1.bf16.msra.mxu0 %v813
      %827 = vmatprep.subr.bf16.mxu0 0
      %828 = vmatpush1.bf16.msra.mxu0 %v812
      %829 = vmatprep.subr.bf16.mxu0 0
      %830 = vmatpush1.bf16.msra.mxu0 %v811
      %831 = vmatprep.subr.bf16.mxu0 0
      %832 = vmatpush1.bf16.msra.mxu0 %v810
      %833 = vmatprep.subr.bf16.mxu0 0
      %834 = vmatpush1.bf16.msra.mxu0 %v809
      %835 = vmatprep.subr.bf16.mxu0 0
      %836 = vmatpush1.bf16.msra.mxu0 %v808
      %837 = vmatprep.subr.bf16.mxu0 0
      %838 = vmatpush1.bf16.msra.mxu0 %v807
      %839 = vmatprep.subr.bf16.mxu0 0
      %840 = vmatpush2.bf16.msra.mxu0 0
      %841 = vmatprep.subr.bf16.mxu0 0
      %842 = vmatpush2.bf16.msra.mxu0 0
      %843 = vmatprep.subr.bf16.mxu0 0
      %844 = vmatpush2.bf16.msra.mxu0 0
      %845 = vmatprep.subr.bf16.mxu0 0
      %846 = vmatpush2.bf16.msra.mxu0 0
      %847 = vmatprep.subr.bf16.mxu0 0
      %848 = vmatpush2.bf16.msra.mxu0 0
      %849 = vmatprep.subr.bf16.mxu0 0
      %850 = vmatpush2.bf16.msra.mxu0 0
      %851 = vmatprep.subr.bf16.mxu0 0
      %852 = vmatpush2.bf16.msra.mxu0 0
      %853 = vmatprep.subr.bf16.mxu0 0
      %854 = vmatpush2.bf16.msra.mxu0 0
      %855 = vmatprep.mubr.bf16.mxu0 0
      %856 = vmatmul.mubr.bf16.gmra.mxu0 %v751
      %v857 = vpop.f32.mrf.mxu0
      %v858 = vadd.f32 %v773, %v857
      %v859 = vpop.f32.mrf.mxu0
      %v860 = vpop.f32.mrf.mxu0
      %v861 = vpop.f32.mrf.mxu0
      %862 = vdwg.mxu0
      %863 = vst [vmem:[%s276] sm:$0xff] %v858
      %p864 = scmp.lt.s32.totalorder %s18, 1
      %s865 = scalar_select %p864, %s18, 1
      %s866 = smul.addr %s865, 8
      %s867 = scalar_lea.vmem %s7, %s866
      // Predicated region
      $region49: #{lenet_pallas.5} parent=47 // pred_check
        %p868 = pneg %p188
      $region50: #{lenet_pallas.5} parent=47 // pred_check_branch
        %870 = sbr.rel (%p868) target = $region52
      $region51: #{lenet_pallas.5} parent=47 // pred_region
        _
      $region52: #{lenet_pallas.5} parent=47 // pred_fallthru
        _
    $region48: #{lenet_pallas.5} parent=5 // pred_fallthru
      _
    %p871 = scmp.le.s32.totalorder 2, %s13
    // Predicated region
    $region53: #{lenet_pallas.5} parent=5 // pred_check
      %p872 = pneg %p871
    $region54: #{lenet_pallas.5} parent=5 // pred_check_branch
      %874 = sbr.rel (%p872) target = $region56
    $region55: #{lenet_pallas.5} parent=5 // pred_region
      %s875 = ssub.s32 %s13, 2
      // Predicated region
      $region57: #{lenet_pallas.5} parent=55 // pred_check
        %p876 = pneg %p194
      $region58: #{lenet_pallas.5} parent=55 // pred_check_branch
        %878 = sbr.rel (%p876) target = $region60
      $region59: #{lenet_pallas.5} parent=55 // pred_region
        %p879 = scmp.lt.s32.totalorder %s19, 1
        %s880 = scalar_select %p879, %s19, 1
        %s881 = smul.addr %s880, 8
        %s882 = scalar_lea.vmem %s7, %s881
      $region60: #{lenet_pallas.5} parent=55 // pred_fallthru
        _
    $region56: #{lenet_pallas.5} parent=5 // pred_fallthru
      _
  $region6: #{lenet_pallas.5} parent=0 // loop_footer
    %s17 = sadd.s32 1, %s13
  $region7: #{lenet_pallas.5} parent=0 // loop_footer_branch
    %12 = sbr.rel target = $region3
  $region8: #{lenet_pallas.5} parent=0 // loop_exit
    _

</llo_original>
